<compile_context>
chip_gen: v6e
topology: v6e:2x2x1
jax: 0.10.0
libtpu: 0.0.40
codegen_flags: <defaults>
</compile_context>

<pallas_src>
import functools
import math

import jax
import jax.numpy as jnp
from jax.experimental import pallas as pl
from jax.experimental.pallas import tpu as pltpu


# ---------------------------------------------------------------------------
# Fused CBAM kernel: one batch element per grid step.
# ---------------------------------------------------------------------------
def _cbam_kernel(x_ref, w1_ref, w2_ref, coords_ref, wsa_ref, o_ref, *, H, W, k):
    """Fused CBAM forward for one batch element.

    x_ref:      (1, C, HW)  input block, HW lane-dense
    w1_ref:     (HID, C)    first 1x1-conv weight, hidden dim zero-padded to HID
    w2_ref:     (C, HID)    second 1x1-conv weight, zero-padded
    coords_ref: (2, HW)     int32 [row; col] image coordinates of each flat pixel
    wsa_ref:    (2*k*k,)    SMEM, flattened spatial-conv weights in [c, dy, dx] order
    o_ref:      (1, C, HW)  output block
    """
    p = k // 2
    HW = H * W

    x = x_ref[0].astype(jnp.float32)                        # (C, HW)

    # ---- Channel attention: adaptive avg/max pool over HW (lane reductions) ----
    avg_c = jnp.mean(x, axis=1, keepdims=True)              # (C, 1)
    max_c = jnp.max(x, axis=1, keepdims=True)               # (C, 1)
    # Shared bias-free MLP (1x1 convs): relu(W1@avg + W1@max) -> W2 -> sigmoid.
    a1 = jnp.dot(w1_ref[...], avg_c, preferred_element_type=jnp.float32)   # (HID, 1)
    m1 = jnp.dot(w1_ref[...], max_c, preferred_element_type=jnp.float32)   # (HID, 1)
    h = jnp.maximum(a1 + m1, 0.0)
    logits = jnp.dot(w2_ref[...], h, preferred_element_type=jnp.float32)   # (C, 1)
    ca = 1.0 / (1.0 + jnp.exp(-logits))                     # (C, 1)

    x_ca = x * ca                                           # (C, HW), lane broadcast

    # ---- Spatial attention stats: channel mean/max (sublane reductions) ----
    avg_s = jnp.mean(x_ca, axis=0, keepdims=True)           # (1, HW)
    max_s = jnp.max(x_ca, axis=0, keepdims=True)            # (1, HW)

    # ---- 7x7 conv on the 2-channel stat map, in-VMEM via masked lane rolls ----
    coords = coords_ref[...]
    row = coords[0:1, :]                                    # (1, HW) int32
    col = coords[1:2, :]
    row_ok = [(row >= (p - dy)) & (row < (H + p - dy)) for dy in range(k)]
    col_ok = [(col >= (p - dx)) & (col < (W + p - dx)) for dx in range(k)]

    logit = jnp.zeros((1, HW), jnp.float32)
    for dy in range(k):
        for dx in range(k):
            # out[hw] += w * stat[hw + src_off]   (zero-padded conv, cross-correlation)
            src_off = (dy - p) * W + (dx - p)
            s = (-src_off) % HW                             # jnp.roll-style shift
            if s == 0:
                ra, rm = avg_s, max_s
            else:
                ra = pltpu.roll(avg_s, s, axis=1)
                rm = pltpu.roll(max_s, s, axis=1)
            w_a = wsa_ref[dy * k + dx]                      # scalar from SMEM
            w_m = wsa_ref[k * k + dy * k + dx]
            contrib = w_a * ra + w_m * rm
            logit = logit + jnp.where(row_ok[dy] & col_ok[dx], contrib, 0.0)

    sa = 1.0 / (1.0 + jnp.exp(-logit))                      # (1, HW)

    # ---- Fused output: x * CA(x) * SA(x*CA(x)) -> single lane-dense store ----
    o_ref[0] = (x_ca * sa).astype(o_ref.dtype)


# ---------------------------------------------------------------------------
# Forward wrapper (NCHW in / NCHW out, matching the PyTorch module)
# ---------------------------------------------------------------------------
def cbam_forward(x_nchw, w_ca1, w_ca2, w_sa, *, kernel_size=7):
    N, C, H, W = x_nchw.shape
    HW = H * W
    Cr = w_ca1.shape[0]
    k = kernel_size
    assert w_sa.shape == (1, 2, k, k)
    HID = 128                         # MXU-friendly padded hidden dim
    assert Cr <= HID

    # Free reshape (row-major collapse of H,W): no transpose, no data movement.
    x2 = x_nchw.reshape(N, C, HW)

    # 1x1-conv weights as zero-padded matrices (hidden dim padded to HID).
    w1p = jnp.zeros((HID, C), jnp.float32).at[:Cr, :].set(
        w_ca1.reshape(Cr, C).astype(jnp.float32))
    w2p = jnp.zeros((C, HID), jnp.float32).at[:, :Cr].set(
        w_ca2.reshape(C, Cr).astype(jnp.float32))

    # (row, col) of every flattened pixel -- drives the conv boundary masks.
    hw_idx = jnp.arange(HW, dtype=jnp.int32)
    coords = jnp.stack([hw_idx // W, hw_idx % W], axis=0)           # (2, HW) int32

    w_sa_flat = w_sa.reshape(2 * k * k).astype(jnp.float32)         # SMEM scalars

    # VMEM budget derived from actual block sizes (double-buffered in + out plus
    # f32 working copies), clamped to v7x's 64 MiB physical VMEM.
    blk_bytes = C * HW * x_nchw.dtype.itemsize
    vmem_limit = int(min(max(6 * blk_bytes + (4 << 20), 16 << 20), 64 << 20))

    kernel = functools.partial(_cbam_kernel, H=H, W=W, k=k)

    out2 = pl.pallas_call(
        kernel,
        out_shape=jax.ShapeDtypeStruct((N, C, HW), x_nchw.dtype),
        grid_spec=pltpu.PrefetchScalarGridSpec(
            num_scalar_prefetch=0,
            grid=(N,),
            in_specs=[
                pl.BlockSpec((1, C, HW), lambda n: (n, 0, 0)),
                pl.BlockSpec((HID, C), lambda n: (0, 0)),
                pl.BlockSpec((C, HID), lambda n: (0, 0)),
                pl.BlockSpec((2, HW), lambda n: (0, 0)),
                pl.BlockSpec(memory_space=pltpu.MemorySpace.SMEM),
            ],
            out_specs=pl.BlockSpec((1, C, HW), lambda n: (n, 0, 0)),
        ),
        compiler_params=pltpu.CompilerParams(
            dimension_semantics=("parallel",),
            vmem_limit_bytes=vmem_limit,
        ),
    )(x2, w1p, w2p, coords, w_sa_flat)

    return out2.reshape(N, C, H, W)


# ---------------------------------------------------------------------------
# Pure-JAX reference (mirrors the PyTorch module) for the correctness check
# ---------------------------------------------------------------------------
def cbam_reference(x, w_ca1, w_ca2, w_sa, *, kernel_size=7):
    with jax.default_matmul_precision("highest"):
        avg = jnp.mean(x, axis=(2, 3), keepdims=True)               # (N, C, 1, 1)
        mx = jnp.max(x, axis=(2, 3), keepdims=True)
        w1 = w_ca1[:, :, 0, 0]
        w2 = w_ca2[:, :, 0, 0]
        a = jnp.einsum("oc,ncij->noij", w1, avg)
        m = jnp.einsum("oc,ncij->noij", w1, mx)
        h = jnp.maximum(a + m, 0.0)
        ca = jax.nn.sigmoid(jnp.einsum("oc,ncij->noij", w2, h))
        x = x * ca
        avg_s = jnp.mean(x, axis=1, keepdims=True)
        max_s = jnp.max(x, axis=1, keepdims=True)
        s = jnp.concatenate([avg_s, max_s], axis=1)                  # (N, 2, H, W)
        pad = kernel_size // 2
        sa = jax.lax.conv_general_dilated(
            s, w_sa, window_strides=(1, 1), padding=[(pad, pad), (pad, pad)],
            dimension_numbers=("NCHW", "OIHW", "NCHW"))
        return x * jax.nn.sigmoid(sa)


if __name__ == "__main__":
    key = jax.random.PRNGKey(0)
    kx, k1, k2, k3 = jax.random.split(key, 4)
    N, C, H, W = 2, 64, 16, 16
    reduction, ksize = 16, 7
    Cr = C // reduction

    x = jax.random.normal(kx, (N, C, H, W), jnp.float32)
    w_ca1 = jax.random.normal(k1, (Cr, C, 1, 1), jnp.float32) / math.sqrt(C)
    w_ca2 = jax.random.normal(k2, (C, Cr, 1, 1), jnp.float32) / math.sqrt(Cr)
    w_sa = jax.random.normal(k3, (1, 2, ksize, ksize), jnp.float32) / math.sqrt(2.0 * ksize * ksize)

    fwd = jax.jit(functools.partial(cbam_forward, kernel_size=ksize))
    out = jax.block_until_ready(fwd(x, w_ca1, w_ca2, w_sa))

    assert out.shape == (N, C, H, W), out.shape
    assert bool(jnp.all(jnp.isfinite(out)))

    ref = cbam_reference(x, w_ca1, w_ca2, w_sa, kernel_size=ksize)
    max_err = float(jnp.max(jnp.abs(out - ref)))
    assert bool(jnp.allclose(out, ref, atol=1e-4, rtol=1e-4)), max_err

    print("KERNEL_OK")
</pallas_src>

<mosaic_0001>
module attributes {stable_mosaic.version = 11 : i64} {
  func.func @_cbam_kernel(%arg0: i32, %arg1: memref<1x64x256xf32, #tpu.memory_space<vmem>>, %arg2: memref<128x64xf32, #tpu.memory_space<vmem>>, %arg3: memref<64x128xf32, #tpu.memory_space<vmem>>, %arg4: memref<2x256xi32, #tpu.memory_space<vmem>>, %arg5: memref<98xf32, #tpu.memory_space<smem>>, %arg6: memref<1x64x256xf32, #tpu.memory_space<vmem>>) attributes {dimension_semantics = [#tpu.dimension_semantics<parallel>], iteration_bounds = array<i64: 2>, scalar_prefetch = 0 : i64, scratch_operands = 0 : i64, tpu.core_type = #tpu.core_type<tc>, window_params = [{transform_indices = @transform_0, window_bounds = array<i64: 1, 64, 256>}, {pipeline_mode = #tpu.pipeline_mode<synchronous>, transform_indices = @transform_1, window_bounds = array<i64: 128, 64>}, {pipeline_mode = #tpu.pipeline_mode<synchronous>, transform_indices = @transform_2, window_bounds = array<i64: 64, 128>}, {pipeline_mode = #tpu.pipeline_mode<synchronous>, transform_indices = @transform_3, window_bounds = array<i64: 2, 256>}, {transform_indices = @transform_4, window_bounds = array<i64: 98>}, {transform_indices = @transform_5, window_bounds = array<i64: 1, 64, 256>}]} {
    %c0 = arith.constant 0 : index
    %c0_0 = arith.constant 0 : index
    %c0_1 = arith.constant 0 : index
    %0 = vector.load %arg1[%c0, %c0_0, %c0_1] : memref<1x64x256xf32, #tpu.memory_space<vmem>>, vector<1x64x256xf32>
    %1 = vector.shape_cast %0 : vector<1x64x256xf32> to vector<64x256xf32>
    %cst = arith.constant dense<0.000000e+00> : vector<64xf32>
    %2 = vector.multi_reduction <add>, %1, %cst [1] : vector<64x256xf32> to vector<64xf32>
    %3 = vector.shape_cast %2 : vector<64xf32> to vector<64x1xf32>
    %cst_2 = arith.constant 2.560000e+02 : f32
    %4 = vector.broadcast %cst_2 : f32 to vector<64x1xf32>
    %5 = arith.divf %3, %4 : vector<64x1xf32>
    %cst_3 = arith.constant dense<0xFF800000> : vector<64xf32>
    %6 = vector.multi_reduction <maximumf>, %1, %cst_3 [1] : vector<64x256xf32> to vector<64xf32>
    %7 = vector.shape_cast %6 : vector<64xf32> to vector<64x1xf32>
    %c0_4 = arith.constant 0 : index
    %c0_5 = arith.constant 0 : index
    %8 = vector.load %arg2[%c0_4, %c0_5] : memref<128x64xf32, #tpu.memory_space<vmem>>, vector<128x64xf32>
    %cst_6 = arith.constant dense<0.000000e+00> : vector<128x1xf32>
    %9 = tpu.matmul %8, %5, %cst_6 {dimension_numbers = #tpu.dot_dimension_numbers<[1], [0], [0], [1], [0, 0, 1, 1], [], []>} : vector<128x64xf32>, vector<64x1xf32>, vector<128x1xf32> -> vector<128x1xf32>
    %c0_7 = arith.constant 0 : index
    %c0_8 = arith.constant 0 : index
    %10 = vector.load %arg2[%c0_7, %c0_8] : memref<128x64xf32, #tpu.memory_space<vmem>>, vector<128x64xf32>
    %cst_9 = arith.constant dense<0.000000e+00> : vector<128x1xf32>
    %11 = tpu.matmul %10, %7, %cst_9 {dimension_numbers = #tpu.dot_dimension_numbers<[1], [0], [0], [1], [0, 0, 1, 1], [], []>} : vector<128x64xf32>, vector<64x1xf32>, vector<128x1xf32> -> vector<128x1xf32>
    %12 = arith.addf %9, %11 : vector<128x1xf32>
    %cst_10 = arith.constant 0.000000e+00 : f32
    %13 = vector.broadcast %cst_10 : f32 to vector<128x1xf32>
    %14 = arith.maximumf %12, %13 : vector<128x1xf32>
    %c0_11 = arith.constant 0 : index
    %c0_12 = arith.constant 0 : index
    %15 = vector.load %arg3[%c0_11, %c0_12] : memref<64x128xf32, #tpu.memory_space<vmem>>, vector<64x128xf32>
    %cst_13 = arith.constant dense<0.000000e+00> : vector<64x1xf32>
    %16 = tpu.matmul %15, %14, %cst_13 {dimension_numbers = #tpu.dot_dimension_numbers<[1], [0], [0], [1], [0, 0, 1, 1], [], []>} : vector<64x128xf32>, vector<128x1xf32>, vector<64x1xf32> -> vector<64x1xf32>
    %cst_14 = arith.constant 0.000000e+00 : f32
    %17 = vector.broadcast %cst_14 : f32 to vector<64x1xf32>
    %18 = arith.subf %17, %16 : vector<64x1xf32>
    %19 = math.exp %18 : vector<64x1xf32>
    %cst_15 = arith.constant 1.000000e+00 : f32
    %20 = vector.broadcast %cst_15 : f32 to vector<64x1xf32>
    %21 = arith.addf %20, %19 : vector<64x1xf32>
    %cst_16 = arith.constant 1.000000e+00 : f32
    %22 = vector.broadcast %cst_16 : f32 to vector<64x1xf32>
    %23 = arith.divf %22, %21 : vector<64x1xf32>
    %24 = vector.broadcast %23 : vector<64x1xf32> to vector<64x256xf32>
    %25 = arith.mulf %1, %24 : vector<64x256xf32>
    %cst_17 = arith.constant dense<0.000000e+00> : vector<256xf32>
    %26 = vector.multi_reduction <add>, %25, %cst_17 [0] : vector<64x256xf32> to vector<256xf32>
    %27 = vector.shape_cast %26 : vector<256xf32> to vector<1x256xf32>
    %cst_18 = arith.constant 6.400000e+01 : f32
    %28 = vector.broadcast %cst_18 : f32 to vector<1x256xf32>
    %29 = arith.divf %27, %28 : vector<1x256xf32>
    %cst_19 = arith.constant dense<0xFF800000> : vector<256xf32>
    %30 = vector.multi_reduction <maximumf>, %25, %cst_19 [0] : vector<64x256xf32> to vector<256xf32>
    %31 = vector.shape_cast %30 : vector<256xf32> to vector<1x256xf32>
    %c0_20 = arith.constant 0 : index
    %c0_21 = arith.constant 0 : index
    %32 = vector.load %arg4[%c0_20, %c0_21] : memref<2x256xi32, #tpu.memory_space<vmem>>, vector<2x256xi32>
    %33 = vector.extract_strided_slice %32 {offsets = [0, 0], sizes = [1, 256], strides = [1, 1]} : vector<2x256xi32> to vector<1x256xi32>
    %34 = vector.extract_strided_slice %32 {offsets = [1, 0], sizes = [1, 256], strides = [1, 1]} : vector<2x256xi32> to vector<1x256xi32>
    %c3_i32 = arith.constant 3 : i32
    %35 = vector.broadcast %c3_i32 : i32 to vector<1x256xi32>
    %36 = arith.cmpi sge, %33, %35 : vector<1x256xi32>
    %c19_i32 = arith.constant 19 : i32
    %37 = vector.broadcast %c19_i32 : i32 to vector<1x256xi32>
    %38 = arith.cmpi slt, %33, %37 : vector<1x256xi32>
    %39 = arith.andi %36, %38 : vector<1x256xi1>
    %c2_i32 = arith.constant 2 : i32
    %40 = vector.broadcast %c2_i32 : i32 to vector<1x256xi32>
    %41 = arith.cmpi sge, %33, %40 : vector<1x256xi32>
    %c18_i32 = arith.constant 18 : i32
    %42 = vector.broadcast %c18_i32 : i32 to vector<1x256xi32>
    %43 = arith.cmpi slt, %33, %42 : vector<1x256xi32>
    %44 = arith.andi %41, %43 : vector<1x256xi1>
    %c1_i32 = arith.constant 1 : i32
    %45 = vector.broadcast %c1_i32 : i32 to vector<1x256xi32>
    %46 = arith.cmpi sge, %33, %45 : vector<1x256xi32>
    %c17_i32 = arith.constant 17 : i32
    %47 = vector.broadcast %c17_i32 : i32 to vector<1x256xi32>
    %48 = arith.cmpi slt, %33, %47 : vector<1x256xi32>
    %49 = arith.andi %46, %48 : vector<1x256xi1>
    %c0_i32 = arith.constant 0 : i32
    %50 = vector.broadcast %c0_i32 : i32 to vector<1x256xi32>
    %51 = arith.cmpi sge, %33, %50 : vector<1x256xi32>
    %c16_i32 = arith.constant 16 : i32
    %52 = vector.broadcast %c16_i32 : i32 to vector<1x256xi32>
    %53 = arith.cmpi slt, %33, %52 : vector<1x256xi32>
    %54 = arith.andi %51, %53 : vector<1x256xi1>
    %c-1_i32 = arith.constant -1 : i32
    %55 = vector.broadcast %c-1_i32 : i32 to vector<1x256xi32>
    %56 = arith.cmpi sge, %33, %55 : vector<1x256xi32>
    %c15_i32 = arith.constant 15 : i32
    %57 = vector.broadcast %c15_i32 : i32 to vector<1x256xi32>
    %58 = arith.cmpi slt, %33, %57 : vector<1x256xi32>
    %59 = arith.andi %56, %58 : vector<1x256xi1>
    %c-2_i32 = arith.constant -2 : i32
    %60 = vector.broadcast %c-2_i32 : i32 to vector<1x256xi32>
    %61 = arith.cmpi sge, %33, %60 : vector<1x256xi32>
    %c14_i32 = arith.constant 14 : i32
    %62 = vector.broadcast %c14_i32 : i32 to vector<1x256xi32>
    %63 = arith.cmpi slt, %33, %62 : vector<1x256xi32>
    %64 = arith.andi %61, %63 : vector<1x256xi1>
    %c-3_i32 = arith.constant -3 : i32
    %65 = vector.broadcast %c-3_i32 : i32 to vector<1x256xi32>
    %66 = arith.cmpi sge, %33, %65 : vector<1x256xi32>
    %c13_i32 = arith.constant 13 : i32
    %67 = vector.broadcast %c13_i32 : i32 to vector<1x256xi32>
    %68 = arith.cmpi slt, %33, %67 : vector<1x256xi32>
    %69 = arith.andi %66, %68 : vector<1x256xi1>
    %c3_i32_22 = arith.constant 3 : i32
    %70 = vector.broadcast %c3_i32_22 : i32 to vector<1x256xi32>
    %71 = arith.cmpi sge, %34, %70 : vector<1x256xi32>
    %c19_i32_23 = arith.constant 19 : i32
    %72 = vector.broadcast %c19_i32_23 : i32 to vector<1x256xi32>
    %73 = arith.cmpi slt, %34, %72 : vector<1x256xi32>
    %74 = arith.andi %71, %73 : vector<1x256xi1>
    %c2_i32_24 = arith.constant 2 : i32
    %75 = vector.broadcast %c2_i32_24 : i32 to vector<1x256xi32>
    %76 = arith.cmpi sge, %34, %75 : vector<1x256xi32>
    %c18_i32_25 = arith.constant 18 : i32
    %77 = vector.broadcast %c18_i32_25 : i32 to vector<1x256xi32>
    %78 = arith.cmpi slt, %34, %77 : vector<1x256xi32>
    %79 = arith.andi %76, %78 : vector<1x256xi1>
    %c1_i32_26 = arith.constant 1 : i32
    %80 = vector.broadcast %c1_i32_26 : i32 to vector<1x256xi32>
    %81 = arith.cmpi sge, %34, %80 : vector<1x256xi32>
    %c17_i32_27 = arith.constant 17 : i32
    %82 = vector.broadcast %c17_i32_27 : i32 to vector<1x256xi32>
    %83 = arith.cmpi slt, %34, %82 : vector<1x256xi32>
    %84 = arith.andi %81, %83 : vector<1x256xi1>
    %c0_i32_28 = arith.constant 0 : i32
    %85 = vector.broadcast %c0_i32_28 : i32 to vector<1x256xi32>
    %86 = arith.cmpi sge, %34, %85 : vector<1x256xi32>
    %c16_i32_29 = arith.constant 16 : i32
    %87 = vector.broadcast %c16_i32_29 : i32 to vector<1x256xi32>
    %88 = arith.cmpi slt, %34, %87 : vector<1x256xi32>
    %89 = arith.andi %86, %88 : vector<1x256xi1>
    %c-1_i32_30 = arith.constant -1 : i32
    %90 = vector.broadcast %c-1_i32_30 : i32 to vector<1x256xi32>
    %91 = arith.cmpi sge, %34, %90 : vector<1x256xi32>
    %c15_i32_31 = arith.constant 15 : i32
    %92 = vector.broadcast %c15_i32_31 : i32 to vector<1x256xi32>
    %93 = arith.cmpi slt, %34, %92 : vector<1x256xi32>
    %94 = arith.andi %91, %93 : vector<1x256xi1>
    %c-2_i32_32 = arith.constant -2 : i32
    %95 = vector.broadcast %c-2_i32_32 : i32 to vector<1x256xi32>
    %96 = arith.cmpi sge, %34, %95 : vector<1x256xi32>
    %c14_i32_33 = arith.constant 14 : i32
    %97 = vector.broadcast %c14_i32_33 : i32 to vector<1x256xi32>
    %98 = arith.cmpi slt, %34, %97 : vector<1x256xi32>
    %99 = arith.andi %96, %98 : vector<1x256xi1>
    %c-3_i32_34 = arith.constant -3 : i32
    %100 = vector.broadcast %c-3_i32_34 : i32 to vector<1x256xi32>
    %101 = arith.cmpi sge, %34, %100 : vector<1x256xi32>
    %c13_i32_35 = arith.constant 13 : i32
    %102 = vector.broadcast %c13_i32_35 : i32 to vector<1x256xi32>
    %103 = arith.cmpi slt, %34, %102 : vector<1x256xi32>
    %104 = arith.andi %101, %103 : vector<1x256xi1>
    %cst_36 = arith.constant 0.000000e+00 : f32
    %105 = vector.broadcast %cst_36 : f32 to vector<1x256xf32>
    %c51_i32 = arith.constant 51 : i32
    %106 = tpu.dynamic_rotate %29 by %c51_i32 dim 1 : vector<1x256xf32>, i32 -> vector<1x256xf32>
    %c51_i32_37 = arith.constant 51 : i32
    %107 = tpu.dynamic_rotate %31 by %c51_i32_37 dim 1 : vector<1x256xf32>, i32 -> vector<1x256xf32>
    %c0_38 = arith.constant 0 : index
    %108 = memref.load %arg5[%c0_38] : memref<98xf32, #tpu.memory_space<smem>>
    %c49 = arith.constant 49 : index
    %109 = memref.load %arg5[%c49] : memref<98xf32, #tpu.memory_space<smem>>
    %110 = vector.broadcast %108 : f32 to vector<1x256xf32>
    %111 = arith.mulf %110, %106 : vector<1x256xf32>
    %112 = vector.broadcast %109 : f32 to vector<1x256xf32>
    %113 = arith.mulf %112, %107 : vector<1x256xf32>
    %114 = arith.addf %111, %113 : vector<1x256xf32>
    %115 = arith.andi %39, %74 : vector<1x256xi1>
    %cst_39 = arith.constant 0.000000e+00 : f32
    %116 = vector.broadcast %cst_39 : f32 to vector<1x256xf32>
    %117 = arith.select %115, %114, %116 : vector<1x256xi1>, vector<1x256xf32>
    %118 = arith.addf %105, %117 : vector<1x256xf32>
    %c50_i32 = arith.constant 50 : i32
    %119 = tpu.dynamic_rotate %29 by %c50_i32 dim 1 : vector<1x256xf32>, i32 -> vector<1x256xf32>
    %c50_i32_40 = arith.constant 50 : i32
    %120 = tpu.dynamic_rotate %31 by %c50_i32_40 dim 1 : vector<1x256xf32>, i32 -> vector<1x256xf32>
    %c1 = arith.constant 1 : index
    %121 = memref.load %arg5[%c1] : memref<98xf32, #tpu.memory_space<smem>>
    %c50 = arith.constant 50 : index
    %122 = memref.load %arg5[%c50] : memref<98xf32, #tpu.memory_space<smem>>
    %123 = vector.broadcast %121 : f32 to vector<1x256xf32>
    %124 = arith.mulf %123, %119 : vector<1x256xf32>
    %125 = vector.broadcast %122 : f32 to vector<1x256xf32>
    %126 = arith.mulf %125, %120 : vector<1x256xf32>
    %127 = arith.addf %124, %126 : vector<1x256xf32>
    %128 = arith.andi %39, %79 : vector<1x256xi1>
    %cst_41 = arith.constant 0.000000e+00 : f32
    %129 = vector.broadcast %cst_41 : f32 to vector<1x256xf32>
    %130 = arith.select %128, %127, %129 : vector<1x256xi1>, vector<1x256xf32>
    %131 = arith.addf %118, %130 : vector<1x256xf32>
    %c49_i32 = arith.constant 49 : i32
    %132 = tpu.dynamic_rotate %29 by %c49_i32 dim 1 : vector<1x256xf32>, i32 -> vector<1x256xf32>
    %c49_i32_42 = arith.constant 49 : i32
    %133 = tpu.dynamic_rotate %31 by %c49_i32_42 dim 1 : vector<1x256xf32>, i32 -> vector<1x256xf32>
    %c2 = arith.constant 2 : index
    %134 = memref.load %arg5[%c2] : memref<98xf32, #tpu.memory_space<smem>>
    %c51 = arith.constant 51 : index
    %135 = memref.load %arg5[%c51] : memref<98xf32, #tpu.memory_space<smem>>
    %136 = vector.broadcast %134 : f32 to vector<1x256xf32>
    %137 = arith.mulf %136, %132 : vector<1x256xf32>
    %138 = vector.broadcast %135 : f32 to vector<1x256xf32>
    %139 = arith.mulf %138, %133 : vector<1x256xf32>
    %140 = arith.addf %137, %139 : vector<1x256xf32>
    %141 = arith.andi %39, %84 : vector<1x256xi1>
    %cst_43 = arith.constant 0.000000e+00 : f32
    %142 = vector.broadcast %cst_43 : f32 to vector<1x256xf32>
    %143 = arith.select %141, %140, %142 : vector<1x256xi1>, vector<1x256xf32>
    %144 = arith.addf %131, %143 : vector<1x256xf32>
    %c48_i32 = arith.constant 48 : i32
    %145 = tpu.dynamic_rotate %29 by %c48_i32 dim 1 : vector<1x256xf32>, i32 -> vector<1x256xf32>
    %c48_i32_44 = arith.constant 48 : i32
    %146 = tpu.dynamic_rotate %31 by %c48_i32_44 dim 1 : vector<1x256xf32>, i32 -> vector<1x256xf32>
    %c3 = arith.constant 3 : index
    %147 = memref.load %arg5[%c3] : memref<98xf32, #tpu.memory_space<smem>>
    %c52 = arith.constant 52 : index
    %148 = memref.load %arg5[%c52] : memref<98xf32, #tpu.memory_space<smem>>
    %149 = vector.broadcast %147 : f32 to vector<1x256xf32>
    %150 = arith.mulf %149, %145 : vector<1x256xf32>
    %151 = vector.broadcast %148 : f32 to vector<1x256xf32>
    %152 = arith.mulf %151, %146 : vector<1x256xf32>
    %153 = arith.addf %150, %152 : vector<1x256xf32>
    %154 = arith.andi %39, %89 : vector<1x256xi1>
    %cst_45 = arith.constant 0.000000e+00 : f32
    %155 = vector.broadcast %cst_45 : f32 to vector<1x256xf32>
    %156 = arith.select %154, %153, %155 : vector<1x256xi1>, vector<1x256xf32>
    %157 = arith.addf %144, %156 : vector<1x256xf32>
    %c47_i32 = arith.constant 47 : i32
    %158 = tpu.dynamic_rotate %29 by %c47_i32 dim 1 : vector<1x256xf32>, i32 -> vector<1x256xf32>
    %c47_i32_46 = arith.constant 47 : i32
    %159 = tpu.dynamic_rotate %31 by %c47_i32_46 dim 1 : vector<1x256xf32>, i32 -> vector<1x256xf32>
    %c4 = arith.constant 4 : index
    %160 = memref.load %arg5[%c4] : memref<98xf32, #tpu.memory_space<smem>>
    %c53 = arith.constant 53 : index
    %161 = memref.load %arg5[%c53] : memref<98xf32, #tpu.memory_space<smem>>
    %162 = vector.broadcast %160 : f32 to vector<1x256xf32>
    %163 = arith.mulf %162, %158 : vector<1x256xf32>
    %164 = vector.broadcast %161 : f32 to vector<1x256xf32>
    %165 = arith.mulf %164, %159 : vector<1x256xf32>
    %166 = arith.addf %163, %165 : vector<1x256xf32>
    %167 = arith.andi %39, %94 : vector<1x256xi1>
    %cst_47 = arith.constant 0.000000e+00 : f32
    %168 = vector.broadcast %cst_47 : f32 to vector<1x256xf32>
    %169 = arith.select %167, %166, %168 : vector<1x256xi1>, vector<1x256xf32>
    %170 = arith.addf %157, %169 : vector<1x256xf32>
    %c46_i32 = arith.constant 46 : i32
    %171 = tpu.dynamic_rotate %29 by %c46_i32 dim 1 : vector<1x256xf32>, i32 -> vector<1x256xf32>
    %c46_i32_48 = arith.constant 46 : i32
    %172 = tpu.dynamic_rotate %31 by %c46_i32_48 dim 1 : vector<1x256xf32>, i32 -> vector<1x256xf32>
    %c5 = arith.constant 5 : index
    %173 = memref.load %arg5[%c5] : memref<98xf32, #tpu.memory_space<smem>>
    %c54 = arith.constant 54 : index
    %174 = memref.load %arg5[%c54] : memref<98xf32, #tpu.memory_space<smem>>
    %175 = vector.broadcast %173 : f32 to vector<1x256xf32>
    %176 = arith.mulf %175, %171 : vector<1x256xf32>
    %177 = vector.broadcast %174 : f32 to vector<1x256xf32>
    %178 = arith.mulf %177, %172 : vector<1x256xf32>
    %179 = arith.addf %176, %178 : vector<1x256xf32>
    %180 = arith.andi %39, %99 : vector<1x256xi1>
    %cst_49 = arith.constant 0.000000e+00 : f32
    %181 = vector.broadcast %cst_49 : f32 to vector<1x256xf32>
    %182 = arith.select %180, %179, %181 : vector<1x256xi1>, vector<1x256xf32>
    %183 = arith.addf %170, %182 : vector<1x256xf32>
    %c45_i32 = arith.constant 45 : i32
    %184 = tpu.dynamic_rotate %29 by %c45_i32 dim 1 : vector<1x256xf32>, i32 -> vector<1x256xf32>
    %c45_i32_50 = arith.constant 45 : i32
    %185 = tpu.dynamic_rotate %31 by %c45_i32_50 dim 1 : vector<1x256xf32>, i32 -> vector<1x256xf32>
    %c6 = arith.constant 6 : index
    %186 = memref.load %arg5[%c6] : memref<98xf32, #tpu.memory_space<smem>>
    %c55 = arith.constant 55 : index
    %187 = memref.load %arg5[%c55] : memref<98xf32, #tpu.memory_space<smem>>
    %188 = vector.broadcast %186 : f32 to vector<1x256xf32>
    %189 = arith.mulf %188, %184 : vector<1x256xf32>
    %190 = vector.broadcast %187 : f32 to vector<1x256xf32>
    %191 = arith.mulf %190, %185 : vector<1x256xf32>
    %192 = arith.addf %189, %191 : vector<1x256xf32>
    %193 = arith.andi %39, %104 : vector<1x256xi1>
    %cst_51 = arith.constant 0.000000e+00 : f32
    %194 = vector.broadcast %cst_51 : f32 to vector<1x256xf32>
    %195 = arith.select %193, %192, %194 : vector<1x256xi1>, vector<1x256xf32>
    %196 = arith.addf %183, %195 : vector<1x256xf32>
    %c35_i32 = arith.constant 35 : i32
    %197 = tpu.dynamic_rotate %29 by %c35_i32 dim 1 : vector<1x256xf32>, i32 -> vector<1x256xf32>
    %c35_i32_52 = arith.constant 35 : i32
    %198 = tpu.dynamic_rotate %31 by %c35_i32_52 dim 1 : vector<1x256xf32>, i32 -> vector<1x256xf32>
    %c7 = arith.constant 7 : index
    %199 = memref.load %arg5[%c7] : memref<98xf32, #tpu.memory_space<smem>>
    %c56 = arith.constant 56 : index
    %200 = memref.load %arg5[%c56] : memref<98xf32, #tpu.memory_space<smem>>
    %201 = vector.broadcast %199 : f32 to vector<1x256xf32>
    %202 = arith.mulf %201, %197 : vector<1x256xf32>
    %203 = vector.broadcast %200 : f32 to vector<1x256xf32>
    %204 = arith.mulf %203, %198 : vector<1x256xf32>
    %205 = arith.addf %202, %204 : vector<1x256xf32>
    %206 = arith.andi %44, %74 : vector<1x256xi1>
    %cst_53 = arith.constant 0.000000e+00 : f32
    %207 = vector.broadcast %cst_53 : f32 to vector<1x256xf32>
    %208 = arith.select %206, %205, %207 : vector<1x256xi1>, vector<1x256xf32>
    %209 = arith.addf %196, %208 : vector<1x256xf32>
    %c34_i32 = arith.constant 34 : i32
    %210 = tpu.dynamic_rotate %29 by %c34_i32 dim 1 : vector<1x256xf32>, i32 -> vector<1x256xf32>
    %c34_i32_54 = arith.constant 34 : i32
    %211 = tpu.dynamic_rotate %31 by %c34_i32_54 dim 1 : vector<1x256xf32>, i32 -> vector<1x256xf32>
    %c8 = arith.constant 8 : index
    %212 = memref.load %arg5[%c8] : memref<98xf32, #tpu.memory_space<smem>>
    %c57 = arith.constant 57 : index
    %213 = memref.load %arg5[%c57] : memref<98xf32, #tpu.memory_space<smem>>
    %214 = vector.broadcast %212 : f32 to vector<1x256xf32>
    %215 = arith.mulf %214, %210 : vector<1x256xf32>
    %216 = vector.broadcast %213 : f32 to vector<1x256xf32>
    %217 = arith.mulf %216, %211 : vector<1x256xf32>
    %218 = arith.addf %215, %217 : vector<1x256xf32>
    %219 = arith.andi %44, %79 : vector<1x256xi1>
    %cst_55 = arith.constant 0.000000e+00 : f32
    %220 = vector.broadcast %cst_55 : f32 to vector<1x256xf32>
    %221 = arith.select %219, %218, %220 : vector<1x256xi1>, vector<1x256xf32>
    %222 = arith.addf %209, %221 : vector<1x256xf32>
    %c33_i32 = arith.constant 33 : i32
    %223 = tpu.dynamic_rotate %29 by %c33_i32 dim 1 : vector<1x256xf32>, i32 -> vector<1x256xf32>
    %c33_i32_56 = arith.constant 33 : i32
    %224 = tpu.dynamic_rotate %31 by %c33_i32_56 dim 1 : vector<1x256xf32>, i32 -> vector<1x256xf32>
    %c9 = arith.constant 9 : index
    %225 = memref.load %arg5[%c9] : memref<98xf32, #tpu.memory_space<smem>>
    %c58 = arith.constant 58 : index
    %226 = memref.load %arg5[%c58] : memref<98xf32, #tpu.memory_space<smem>>
    %227 = vector.broadcast %225 : f32 to vector<1x256xf32>
    %228 = arith.mulf %227, %223 : vector<1x256xf32>
    %229 = vector.broadcast %226 : f32 to vector<1x256xf32>
    %230 = arith.mulf %229, %224 : vector<1x256xf32>
    %231 = arith.addf %228, %230 : vector<1x256xf32>
    %232 = arith.andi %44, %84 : vector<1x256xi1>
    %cst_57 = arith.constant 0.000000e+00 : f32
    %233 = vector.broadcast %cst_57 : f32 to vector<1x256xf32>
    %234 = arith.select %232, %231, %233 : vector<1x256xi1>, vector<1x256xf32>
    %235 = arith.addf %222, %234 : vector<1x256xf32>
    %c32_i32 = arith.constant 32 : i32
    %236 = tpu.dynamic_rotate %29 by %c32_i32 dim 1 : vector<1x256xf32>, i32 -> vector<1x256xf32>
    %c32_i32_58 = arith.constant 32 : i32
    %237 = tpu.dynamic_rotate %31 by %c32_i32_58 dim 1 : vector<1x256xf32>, i32 -> vector<1x256xf32>
    %c10 = arith.constant 10 : index
    %238 = memref.load %arg5[%c10] : memref<98xf32, #tpu.memory_space<smem>>
    %c59 = arith.constant 59 : index
    %239 = memref.load %arg5[%c59] : memref<98xf32, #tpu.memory_space<smem>>
    %240 = vector.broadcast %238 : f32 to vector<1x256xf32>
    %241 = arith.mulf %240, %236 : vector<1x256xf32>
    %242 = vector.broadcast %239 : f32 to vector<1x256xf32>
    %243 = arith.mulf %242, %237 : vector<1x256xf32>
    %244 = arith.addf %241, %243 : vector<1x256xf32>
    %245 = arith.andi %44, %89 : vector<1x256xi1>
    %cst_59 = arith.constant 0.000000e+00 : f32
    %246 = vector.broadcast %cst_59 : f32 to vector<1x256xf32>
    %247 = arith.select %245, %244, %246 : vector<1x256xi1>, vector<1x256xf32>
    %248 = arith.addf %235, %247 : vector<1x256xf32>
    %c31_i32 = arith.constant 31 : i32
    %249 = tpu.dynamic_rotate %29 by %c31_i32 dim 1 : vector<1x256xf32>, i32 -> vector<1x256xf32>
    %c31_i32_60 = arith.constant 31 : i32
    %250 = tpu.dynamic_rotate %31 by %c31_i32_60 dim 1 : vector<1x256xf32>, i32 -> vector<1x256xf32>
    %c11 = arith.constant 11 : index
    %251 = memref.load %arg5[%c11] : memref<98xf32, #tpu.memory_space<smem>>
    %c60 = arith.constant 60 : index
    %252 = memref.load %arg5[%c60] : memref<98xf32, #tpu.memory_space<smem>>
    %253 = vector.broadcast %251 : f32 to vector<1x256xf32>
    %254 = arith.mulf %253, %249 : vector<1x256xf32>
    %255 = vector.broadcast %252 : f32 to vector<1x256xf32>
    %256 = arith.mulf %255, %250 : vector<1x256xf32>
    %257 = arith.addf %254, %256 : vector<1x256xf32>
    %258 = arith.andi %44, %94 : vector<1x256xi1>
    %cst_61 = arith.constant 0.000000e+00 : f32
    %259 = vector.broadcast %cst_61 : f32 to vector<1x256xf32>
    %260 = arith.select %258, %257, %259 : vector<1x256xi1>, vector<1x256xf32>
    %261 = arith.addf %248, %260 : vector<1x256xf32>
    %c30_i32 = arith.constant 30 : i32
    %262 = tpu.dynamic_rotate %29 by %c30_i32 dim 1 : vector<1x256xf32>, i32 -> vector<1x256xf32>
    %c30_i32_62 = arith.constant 30 : i32
    %263 = tpu.dynamic_rotate %31 by %c30_i32_62 dim 1 : vector<1x256xf32>, i32 -> vector<1x256xf32>
    %c12 = arith.constant 12 : index
    %264 = memref.load %arg5[%c12] : memref<98xf32, #tpu.memory_space<smem>>
    %c61 = arith.constant 61 : index
    %265 = memref.load %arg5[%c61] : memref<98xf32, #tpu.memory_space<smem>>
    %266 = vector.broadcast %264 : f32 to vector<1x256xf32>
    %267 = arith.mulf %266, %262 : vector<1x256xf32>
    %268 = vector.broadcast %265 : f32 to vector<1x256xf32>
    %269 = arith.mulf %268, %263 : vector<1x256xf32>
    %270 = arith.addf %267, %269 : vector<1x256xf32>
    %271 = arith.andi %44, %99 : vector<1x256xi1>
    %cst_63 = arith.constant 0.000000e+00 : f32
    %272 = vector.broadcast %cst_63 : f32 to vector<1x256xf32>
    %273 = arith.select %271, %270, %272 : vector<1x256xi1>, vector<1x256xf32>
    %274 = arith.addf %261, %273 : vector<1x256xf32>
    %c29_i32 = arith.constant 29 : i32
    %275 = tpu.dynamic_rotate %29 by %c29_i32 dim 1 : vector<1x256xf32>, i32 -> vector<1x256xf32>
    %c29_i32_64 = arith.constant 29 : i32
    %276 = tpu.dynamic_rotate %31 by %c29_i32_64 dim 1 : vector<1x256xf32>, i32 -> vector<1x256xf32>
    %c13 = arith.constant 13 : index
    %277 = memref.load %arg5[%c13] : memref<98xf32, #tpu.memory_space<smem>>
    %c62 = arith.constant 62 : index
    %278 = memref.load %arg5[%c62] : memref<98xf32, #tpu.memory_space<smem>>
    %279 = vector.broadcast %277 : f32 to vector<1x256xf32>
    %280 = arith.mulf %279, %275 : vector<1x256xf32>
    %281 = vector.broadcast %278 : f32 to vector<1x256xf32>
    %282 = arith.mulf %281, %276 : vector<1x256xf32>
    %283 = arith.addf %280, %282 : vector<1x256xf32>
    %284 = arith.andi %44, %104 : vector<1x256xi1>
    %cst_65 = arith.constant 0.000000e+00 : f32
    %285 = vector.broadcast %cst_65 : f32 to vector<1x256xf32>
    %286 = arith.select %284, %283, %285 : vector<1x256xi1>, vector<1x256xf32>
    %287 = arith.addf %274, %286 : vector<1x256xf32>
    %c19_i32_66 = arith.constant 19 : i32
    %288 = tpu.dynamic_rotate %29 by %c19_i32_66 dim 1 : vector<1x256xf32>, i32 -> vector<1x256xf32>
    %c19_i32_67 = arith.constant 19 : i32
    %289 = tpu.dynamic_rotate %31 by %c19_i32_67 dim 1 : vector<1x256xf32>, i32 -> vector<1x256xf32>
    %c14 = arith.constant 14 : index
    %290 = memref.load %arg5[%c14] : memref<98xf32, #tpu.memory_space<smem>>
    %c63 = arith.constant 63 : index
    %291 = memref.load %arg5[%c63] : memref<98xf32, #tpu.memory_space<smem>>
    %292 = vector.broadcast %290 : f32 to vector<1x256xf32>
    %293 = arith.mulf %292, %288 : vector<1x256xf32>
    %294 = vector.broadcast %291 : f32 to vector<1x256xf32>
    %295 = arith.mulf %294, %289 : vector<1x256xf32>
    %296 = arith.addf %293, %295 : vector<1x256xf32>
    %297 = arith.andi %49, %74 : vector<1x256xi1>
    %cst_68 = arith.constant 0.000000e+00 : f32
    %298 = vector.broadcast %cst_68 : f32 to vector<1x256xf32>
    %299 = arith.select %297, %296, %298 : vector<1x256xi1>, vector<1x256xf32>
    %300 = arith.addf %287, %299 : vector<1x256xf32>
    %c18_i32_69 = arith.constant 18 : i32
    %301 = tpu.dynamic_rotate %29 by %c18_i32_69 dim 1 : vector<1x256xf32>, i32 -> vector<1x256xf32>
    %c18_i32_70 = arith.constant 18 : i32
    %302 = tpu.dynamic_rotate %31 by %c18_i32_70 dim 1 : vector<1x256xf32>, i32 -> vector<1x256xf32>
    %c15 = arith.constant 15 : index
    %303 = memref.load %arg5[%c15] : memref<98xf32, #tpu.memory_space<smem>>
    %c64 = arith.constant 64 : index
    %304 = memref.load %arg5[%c64] : memref<98xf32, #tpu.memory_space<smem>>
    %305 = vector.broadcast %303 : f32 to vector<1x256xf32>
    %306 = arith.mulf %305, %301 : vector<1x256xf32>
    %307 = vector.broadcast %304 : f32 to vector<1x256xf32>
    %308 = arith.mulf %307, %302 : vector<1x256xf32>
    %309 = arith.addf %306, %308 : vector<1x256xf32>
    %310 = arith.andi %49, %79 : vector<1x256xi1>
    %cst_71 = arith.constant 0.000000e+00 : f32
    %311 = vector.broadcast %cst_71 : f32 to vector<1x256xf32>
    %312 = arith.select %310, %309, %311 : vector<1x256xi1>, vector<1x256xf32>
    %313 = arith.addf %300, %312 : vector<1x256xf32>
    %c17_i32_72 = arith.constant 17 : i32
    %314 = tpu.dynamic_rotate %29 by %c17_i32_72 dim 1 : vector<1x256xf32>, i32 -> vector<1x256xf32>
    %c17_i32_73 = arith.constant 17 : i32
    %315 = tpu.dynamic_rotate %31 by %c17_i32_73 dim 1 : vector<1x256xf32>, i32 -> vector<1x256xf32>
    %c16 = arith.constant 16 : index
    %316 = memref.load %arg5[%c16] : memref<98xf32, #tpu.memory_space<smem>>
    %c65 = arith.constant 65 : index
    %317 = memref.load %arg5[%c65] : memref<98xf32, #tpu.memory_space<smem>>
    %318 = vector.broadcast %316 : f32 to vector<1x256xf32>
    %319 = arith.mulf %318, %314 : vector<1x256xf32>
    %320 = vector.broadcast %317 : f32 to vector<1x256xf32>
    %321 = arith.mulf %320, %315 : vector<1x256xf32>
    %322 = arith.addf %319, %321 : vector<1x256xf32>
    %323 = arith.andi %49, %84 : vector<1x256xi1>
    %cst_74 = arith.constant 0.000000e+00 : f32
    %324 = vector.broadcast %cst_74 : f32 to vector<1x256xf32>
    %325 = arith.select %323, %322, %324 : vector<1x256xi1>, vector<1x256xf32>
    %326 = arith.addf %313, %325 : vector<1x256xf32>
    %c16_i32_75 = arith.constant 16 : i32
    %327 = tpu.dynamic_rotate %29 by %c16_i32_75 dim 1 : vector<1x256xf32>, i32 -> vector<1x256xf32>
    %c16_i32_76 = arith.constant 16 : i32
    %328 = tpu.dynamic_rotate %31 by %c16_i32_76 dim 1 : vector<1x256xf32>, i32 -> vector<1x256xf32>
    %c17 = arith.constant 17 : index
    %329 = memref.load %arg5[%c17] : memref<98xf32, #tpu.memory_space<smem>>
    %c66 = arith.constant 66 : index
    %330 = memref.load %arg5[%c66] : memref<98xf32, #tpu.memory_space<smem>>
    %331 = vector.broadcast %329 : f32 to vector<1x256xf32>
    %332 = arith.mulf %331, %327 : vector<1x256xf32>
    %333 = vector.broadcast %330 : f32 to vector<1x256xf32>
    %334 = arith.mulf %333, %328 : vector<1x256xf32>
    %335 = arith.addf %332, %334 : vector<1x256xf32>
    %336 = arith.andi %49, %89 : vector<1x256xi1>
    %cst_77 = arith.constant 0.000000e+00 : f32
    %337 = vector.broadcast %cst_77 : f32 to vector<1x256xf32>
    %338 = arith.select %336, %335, %337 : vector<1x256xi1>, vector<1x256xf32>
    %339 = arith.addf %326, %338 : vector<1x256xf32>
    %c15_i32_78 = arith.constant 15 : i32
    %340 = tpu.dynamic_rotate %29 by %c15_i32_78 dim 1 : vector<1x256xf32>, i32 -> vector<1x256xf32>
    %c15_i32_79 = arith.constant 15 : i32
    %341 = tpu.dynamic_rotate %31 by %c15_i32_79 dim 1 : vector<1x256xf32>, i32 -> vector<1x256xf32>
    %c18 = arith.constant 18 : index
    %342 = memref.load %arg5[%c18] : memref<98xf32, #tpu.memory_space<smem>>
    %c67 = arith.constant 67 : index
    %343 = memref.load %arg5[%c67] : memref<98xf32, #tpu.memory_space<smem>>
    %344 = vector.broadcast %342 : f32 to vector<1x256xf32>
    %345 = arith.mulf %344, %340 : vector<1x256xf32>
    %346 = vector.broadcast %343 : f32 to vector<1x256xf32>
    %347 = arith.mulf %346, %341 : vector<1x256xf32>
    %348 = arith.addf %345, %347 : vector<1x256xf32>
    %349 = arith.andi %49, %94 : vector<1x256xi1>
    %cst_80 = arith.constant 0.000000e+00 : f32
    %350 = vector.broadcast %cst_80 : f32 to vector<1x256xf32>
    %351 = arith.select %349, %348, %350 : vector<1x256xi1>, vector<1x256xf32>
    %352 = arith.addf %339, %351 : vector<1x256xf32>
    %c14_i32_81 = arith.constant 14 : i32
    %353 = tpu.dynamic_rotate %29 by %c14_i32_81 dim 1 : vector<1x256xf32>, i32 -> vector<1x256xf32>
    %c14_i32_82 = arith.constant 14 : i32
    %354 = tpu.dynamic_rotate %31 by %c14_i32_82 dim 1 : vector<1x256xf32>, i32 -> vector<1x256xf32>
    %c19 = arith.constant 19 : index
    %355 = memref.load %arg5[%c19] : memref<98xf32, #tpu.memory_space<smem>>
    %c68 = arith.constant 68 : index
    %356 = memref.load %arg5[%c68] : memref<98xf32, #tpu.memory_space<smem>>
    %357 = vector.broadcast %355 : f32 to vector<1x256xf32>
    %358 = arith.mulf %357, %353 : vector<1x256xf32>
    %359 = vector.broadcast %356 : f32 to vector<1x256xf32>
    %360 = arith.mulf %359, %354 : vector<1x256xf32>
    %361 = arith.addf %358, %360 : vector<1x256xf32>
    %362 = arith.andi %49, %99 : vector<1x256xi1>
    %cst_83 = arith.constant 0.000000e+00 : f32
    %363 = vector.broadcast %cst_83 : f32 to vector<1x256xf32>
    %364 = arith.select %362, %361, %363 : vector<1x256xi1>, vector<1x256xf32>
    %365 = arith.addf %352, %364 : vector<1x256xf32>
    %c13_i32_84 = arith.constant 13 : i32
    %366 = tpu.dynamic_rotate %29 by %c13_i32_84 dim 1 : vector<1x256xf32>, i32 -> vector<1x256xf32>
    %c13_i32_85 = arith.constant 13 : i32
    %367 = tpu.dynamic_rotate %31 by %c13_i32_85 dim 1 : vector<1x256xf32>, i32 -> vector<1x256xf32>
    %c20 = arith.constant 20 : index
    %368 = memref.load %arg5[%c20] : memref<98xf32, #tpu.memory_space<smem>>
    %c69 = arith.constant 69 : index
    %369 = memref.load %arg5[%c69] : memref<98xf32, #tpu.memory_space<smem>>
    %370 = vector.broadcast %368 : f32 to vector<1x256xf32>
    %371 = arith.mulf %370, %366 : vector<1x256xf32>
    %372 = vector.broadcast %369 : f32 to vector<1x256xf32>
    %373 = arith.mulf %372, %367 : vector<1x256xf32>
    %374 = arith.addf %371, %373 : vector<1x256xf32>
    %375 = arith.andi %49, %104 : vector<1x256xi1>
    %cst_86 = arith.constant 0.000000e+00 : f32
    %376 = vector.broadcast %cst_86 : f32 to vector<1x256xf32>
    %377 = arith.select %375, %374, %376 : vector<1x256xi1>, vector<1x256xf32>
    %378 = arith.addf %365, %377 : vector<1x256xf32>
    %c3_i32_87 = arith.constant 3 : i32
    %379 = tpu.dynamic_rotate %29 by %c3_i32_87 dim 1 : vector<1x256xf32>, i32 -> vector<1x256xf32>
    %c3_i32_88 = arith.constant 3 : i32
    %380 = tpu.dynamic_rotate %31 by %c3_i32_88 dim 1 : vector<1x256xf32>, i32 -> vector<1x256xf32>
    %c21 = arith.constant 21 : index
    %381 = memref.load %arg5[%c21] : memref<98xf32, #tpu.memory_space<smem>>
    %c70 = arith.constant 70 : index
    %382 = memref.load %arg5[%c70] : memref<98xf32, #tpu.memory_space<smem>>
    %383 = vector.broadcast %381 : f32 to vector<1x256xf32>
    %384 = arith.mulf %383, %379 : vector<1x256xf32>
    %385 = vector.broadcast %382 : f32 to vector<1x256xf32>
    %386 = arith.mulf %385, %380 : vector<1x256xf32>
    %387 = arith.addf %384, %386 : vector<1x256xf32>
    %388 = arith.andi %54, %74 : vector<1x256xi1>
    %cst_89 = arith.constant 0.000000e+00 : f32
    %389 = vector.broadcast %cst_89 : f32 to vector<1x256xf32>
    %390 = arith.select %388, %387, %389 : vector<1x256xi1>, vector<1x256xf32>
    %391 = arith.addf %378, %390 : vector<1x256xf32>
    %c2_i32_90 = arith.constant 2 : i32
    %392 = tpu.dynamic_rotate %29 by %c2_i32_90 dim 1 : vector<1x256xf32>, i32 -> vector<1x256xf32>
    %c2_i32_91 = arith.constant 2 : i32
    %393 = tpu.dynamic_rotate %31 by %c2_i32_91 dim 1 : vector<1x256xf32>, i32 -> vector<1x256xf32>
    %c22 = arith.constant 22 : index
    %394 = memref.load %arg5[%c22] : memref<98xf32, #tpu.memory_space<smem>>
    %c71 = arith.constant 71 : index
    %395 = memref.load %arg5[%c71] : memref<98xf32, #tpu.memory_space<smem>>
    %396 = vector.broadcast %394 : f32 to vector<1x256xf32>
    %397 = arith.mulf %396, %392 : vector<1x256xf32>
    %398 = vector.broadcast %395 : f32 to vector<1x256xf32>
    %399 = arith.mulf %398, %393 : vector<1x256xf32>
    %400 = arith.addf %397, %399 : vector<1x256xf32>
    %401 = arith.andi %54, %79 : vector<1x256xi1>
    %cst_92 = arith.constant 0.000000e+00 : f32
    %402 = vector.broadcast %cst_92 : f32 to vector<1x256xf32>
    %403 = arith.select %401, %400, %402 : vector<1x256xi1>, vector<1x256xf32>
    %404 = arith.addf %391, %403 : vector<1x256xf32>
    %c1_i32_93 = arith.constant 1 : i32
    %405 = tpu.dynamic_rotate %29 by %c1_i32_93 dim 1 : vector<1x256xf32>, i32 -> vector<1x256xf32>
    %c1_i32_94 = arith.constant 1 : i32
    %406 = tpu.dynamic_rotate %31 by %c1_i32_94 dim 1 : vector<1x256xf32>, i32 -> vector<1x256xf32>
    %c23 = arith.constant 23 : index
    %407 = memref.load %arg5[%c23] : memref<98xf32, #tpu.memory_space<smem>>
    %c72 = arith.constant 72 : index
    %408 = memref.load %arg5[%c72] : memref<98xf32, #tpu.memory_space<smem>>
    %409 = vector.broadcast %407 : f32 to vector<1x256xf32>
    %410 = arith.mulf %409, %405 : vector<1x256xf32>
    %411 = vector.broadcast %408 : f32 to vector<1x256xf32>
    %412 = arith.mulf %411, %406 : vector<1x256xf32>
    %413 = arith.addf %410, %412 : vector<1x256xf32>
    %414 = arith.andi %54, %84 : vector<1x256xi1>
    %cst_95 = arith.constant 0.000000e+00 : f32
    %415 = vector.broadcast %cst_95 : f32 to vector<1x256xf32>
    %416 = arith.select %414, %413, %415 : vector<1x256xi1>, vector<1x256xf32>
    %417 = arith.addf %404, %416 : vector<1x256xf32>
    %c24 = arith.constant 24 : index
    %418 = memref.load %arg5[%c24] : memref<98xf32, #tpu.memory_space<smem>>
    %c73 = arith.constant 73 : index
    %419 = memref.load %arg5[%c73] : memref<98xf32, #tpu.memory_space<smem>>
    %420 = vector.broadcast %418 : f32 to vector<1x256xf32>
    %421 = arith.mulf %420, %29 : vector<1x256xf32>
    %422 = vector.broadcast %419 : f32 to vector<1x256xf32>
    %423 = arith.mulf %422, %31 : vector<1x256xf32>
    %424 = arith.addf %421, %423 : vector<1x256xf32>
    %425 = arith.andi %54, %89 : vector<1x256xi1>
    %cst_96 = arith.constant 0.000000e+00 : f32
    %426 = vector.broadcast %cst_96 : f32 to vector<1x256xf32>
    %427 = arith.select %425, %424, %426 : vector<1x256xi1>, vector<1x256xf32>
    %428 = arith.addf %417, %427 : vector<1x256xf32>
    %c255_i32 = arith.constant 255 : i32
    %429 = tpu.dynamic_rotate %29 by %c255_i32 dim 1 : vector<1x256xf32>, i32 -> vector<1x256xf32>
    %c255_i32_97 = arith.constant 255 : i32
    %430 = tpu.dynamic_rotate %31 by %c255_i32_97 dim 1 : vector<1x256xf32>, i32 -> vector<1x256xf32>
    %c25 = arith.constant 25 : index
    %431 = memref.load %arg5[%c25] : memref<98xf32, #tpu.memory_space<smem>>
    %c74 = arith.constant 74 : index
    %432 = memref.load %arg5[%c74] : memref<98xf32, #tpu.memory_space<smem>>
    %433 = vector.broadcast %431 : f32 to vector<1x256xf32>
    %434 = arith.mulf %433, %429 : vector<1x256xf32>
    %435 = vector.broadcast %432 : f32 to vector<1x256xf32>
    %436 = arith.mulf %435, %430 : vector<1x256xf32>
    %437 = arith.addf %434, %436 : vector<1x256xf32>
    %438 = arith.andi %54, %94 : vector<1x256xi1>
    %cst_98 = arith.constant 0.000000e+00 : f32
    %439 = vector.broadcast %cst_98 : f32 to vector<1x256xf32>
    %440 = arith.select %438, %437, %439 : vector<1x256xi1>, vector<1x256xf32>
    %441 = arith.addf %428, %440 : vector<1x256xf32>
    %c254_i32 = arith.constant 254 : i32
    %442 = tpu.dynamic_rotate %29 by %c254_i32 dim 1 : vector<1x256xf32>, i32 -> vector<1x256xf32>
    %c254_i32_99 = arith.constant 254 : i32
    %443 = tpu.dynamic_rotate %31 by %c254_i32_99 dim 1 : vector<1x256xf32>, i32 -> vector<1x256xf32>
    %c26 = arith.constant 26 : index
    %444 = memref.load %arg5[%c26] : memref<98xf32, #tpu.memory_space<smem>>
    %c75 = arith.constant 75 : index
    %445 = memref.load %arg5[%c75] : memref<98xf32, #tpu.memory_space<smem>>
    %446 = vector.broadcast %444 : f32 to vector<1x256xf32>
    %447 = arith.mulf %446, %442 : vector<1x256xf32>
    %448 = vector.broadcast %445 : f32 to vector<1x256xf32>
    %449 = arith.mulf %448, %443 : vector<1x256xf32>
    %450 = arith.addf %447, %449 : vector<1x256xf32>
    %451 = arith.andi %54, %99 : vector<1x256xi1>
    %cst_100 = arith.constant 0.000000e+00 : f32
    %452 = vector.broadcast %cst_100 : f32 to vector<1x256xf32>
    %453 = arith.select %451, %450, %452 : vector<1x256xi1>, vector<1x256xf32>
    %454 = arith.addf %441, %453 : vector<1x256xf32>
    %c253_i32 = arith.constant 253 : i32
    %455 = tpu.dynamic_rotate %29 by %c253_i32 dim 1 : vector<1x256xf32>, i32 -> vector<1x256xf32>
    %c253_i32_101 = arith.constant 253 : i32
    %456 = tpu.dynamic_rotate %31 by %c253_i32_101 dim 1 : vector<1x256xf32>, i32 -> vector<1x256xf32>
    %c27 = arith.constant 27 : index
    %457 = memref.load %arg5[%c27] : memref<98xf32, #tpu.memory_space<smem>>
    %c76 = arith.constant 76 : index
    %458 = memref.load %arg5[%c76] : memref<98xf32, #tpu.memory_space<smem>>
    %459 = vector.broadcast %457 : f32 to vector<1x256xf32>
    %460 = arith.mulf %459, %455 : vector<1x256xf32>
    %461 = vector.broadcast %458 : f32 to vector<1x256xf32>
    %462 = arith.mulf %461, %456 : vector<1x256xf32>
    %463 = arith.addf %460, %462 : vector<1x256xf32>
    %464 = arith.andi %54, %104 : vector<1x256xi1>
    %cst_102 = arith.constant 0.000000e+00 : f32
    %465 = vector.broadcast %cst_102 : f32 to vector<1x256xf32>
    %466 = arith.select %464, %463, %465 : vector<1x256xi1>, vector<1x256xf32>
    %467 = arith.addf %454, %466 : vector<1x256xf32>
    %c243_i32 = arith.constant 243 : i32
    %468 = tpu.dynamic_rotate %29 by %c243_i32 dim 1 : vector<1x256xf32>, i32 -> vector<1x256xf32>
    %c243_i32_103 = arith.constant 243 : i32
    %469 = tpu.dynamic_rotate %31 by %c243_i32_103 dim 1 : vector<1x256xf32>, i32 -> vector<1x256xf32>
    %c28 = arith.constant 28 : index
    %470 = memref.load %arg5[%c28] : memref<98xf32, #tpu.memory_space<smem>>
    %c77 = arith.constant 77 : index
    %471 = memref.load %arg5[%c77] : memref<98xf32, #tpu.memory_space<smem>>
    %472 = vector.broadcast %470 : f32 to vector<1x256xf32>
    %473 = arith.mulf %472, %468 : vector<1x256xf32>
    %474 = vector.broadcast %471 : f32 to vector<1x256xf32>
    %475 = arith.mulf %474, %469 : vector<1x256xf32>
    %476 = arith.addf %473, %475 : vector<1x256xf32>
    %477 = arith.andi %59, %74 : vector<1x256xi1>
    %cst_104 = arith.constant 0.000000e+00 : f32
    %478 = vector.broadcast %cst_104 : f32 to vector<1x256xf32>
    %479 = arith.select %477, %476, %478 : vector<1x256xi1>, vector<1x256xf32>
    %480 = arith.addf %467, %479 : vector<1x256xf32>
    %c242_i32 = arith.constant 242 : i32
    %481 = tpu.dynamic_rotate %29 by %c242_i32 dim 1 : vector<1x256xf32>, i32 -> vector<1x256xf32>
    %c242_i32_105 = arith.constant 242 : i32
    %482 = tpu.dynamic_rotate %31 by %c242_i32_105 dim 1 : vector<1x256xf32>, i32 -> vector<1x256xf32>
    %c29 = arith.constant 29 : index
    %483 = memref.load %arg5[%c29] : memref<98xf32, #tpu.memory_space<smem>>
    %c78 = arith.constant 78 : index
    %484 = memref.load %arg5[%c78] : memref<98xf32, #tpu.memory_space<smem>>
    %485 = vector.broadcast %483 : f32 to vector<1x256xf32>
    %486 = arith.mulf %485, %481 : vector<1x256xf32>
    %487 = vector.broadcast %484 : f32 to vector<1x256xf32>
    %488 = arith.mulf %487, %482 : vector<1x256xf32>
    %489 = arith.addf %486, %488 : vector<1x256xf32>
    %490 = arith.andi %59, %79 : vector<1x256xi1>
    %cst_106 = arith.constant 0.000000e+00 : f32
    %491 = vector.broadcast %cst_106 : f32 to vector<1x256xf32>
    %492 = arith.select %490, %489, %491 : vector<1x256xi1>, vector<1x256xf32>
    %493 = arith.addf %480, %492 : vector<1x256xf32>
    %c241_i32 = arith.constant 241 : i32
    %494 = tpu.dynamic_rotate %29 by %c241_i32 dim 1 : vector<1x256xf32>, i32 -> vector<1x256xf32>
    %c241_i32_107 = arith.constant 241 : i32
    %495 = tpu.dynamic_rotate %31 by %c241_i32_107 dim 1 : vector<1x256xf32>, i32 -> vector<1x256xf32>
    %c30 = arith.constant 30 : index
    %496 = memref.load %arg5[%c30] : memref<98xf32, #tpu.memory_space<smem>>
    %c79 = arith.constant 79 : index
    %497 = memref.load %arg5[%c79] : memref<98xf32, #tpu.memory_space<smem>>
    %498 = vector.broadcast %496 : f32 to vector<1x256xf32>
    %499 = arith.mulf %498, %494 : vector<1x256xf32>
    %500 = vector.broadcast %497 : f32 to vector<1x256xf32>
    %501 = arith.mulf %500, %495 : vector<1x256xf32>
    %502 = arith.addf %499, %501 : vector<1x256xf32>
    %503 = arith.andi %59, %84 : vector<1x256xi1>
    %cst_108 = arith.constant 0.000000e+00 : f32
    %504 = vector.broadcast %cst_108 : f32 to vector<1x256xf32>
    %505 = arith.select %503, %502, %504 : vector<1x256xi1>, vector<1x256xf32>
    %506 = arith.addf %493, %505 : vector<1x256xf32>
    %c240_i32 = arith.constant 240 : i32
    %507 = tpu.dynamic_rotate %29 by %c240_i32 dim 1 : vector<1x256xf32>, i32 -> vector<1x256xf32>
    %c240_i32_109 = arith.constant 240 : i32
    %508 = tpu.dynamic_rotate %31 by %c240_i32_109 dim 1 : vector<1x256xf32>, i32 -> vector<1x256xf32>
    %c31 = arith.constant 31 : index
    %509 = memref.load %arg5[%c31] : memref<98xf32, #tpu.memory_space<smem>>
    %c80 = arith.constant 80 : index
    %510 = memref.load %arg5[%c80] : memref<98xf32, #tpu.memory_space<smem>>
    %511 = vector.broadcast %509 : f32 to vector<1x256xf32>
    %512 = arith.mulf %511, %507 : vector<1x256xf32>
    %513 = vector.broadcast %510 : f32 to vector<1x256xf32>
    %514 = arith.mulf %513, %508 : vector<1x256xf32>
    %515 = arith.addf %512, %514 : vector<1x256xf32>
    %516 = arith.andi %59, %89 : vector<1x256xi1>
    %cst_110 = arith.constant 0.000000e+00 : f32
    %517 = vector.broadcast %cst_110 : f32 to vector<1x256xf32>
    %518 = arith.select %516, %515, %517 : vector<1x256xi1>, vector<1x256xf32>
    %519 = arith.addf %506, %518 : vector<1x256xf32>
    %c239_i32 = arith.constant 239 : i32
    %520 = tpu.dynamic_rotate %29 by %c239_i32 dim 1 : vector<1x256xf32>, i32 -> vector<1x256xf32>
    %c239_i32_111 = arith.constant 239 : i32
    %521 = tpu.dynamic_rotate %31 by %c239_i32_111 dim 1 : vector<1x256xf32>, i32 -> vector<1x256xf32>
    %c32 = arith.constant 32 : index
    %522 = memref.load %arg5[%c32] : memref<98xf32, #tpu.memory_space<smem>>
    %c81 = arith.constant 81 : index
    %523 = memref.load %arg5[%c81] : memref<98xf32, #tpu.memory_space<smem>>
    %524 = vector.broadcast %522 : f32 to vector<1x256xf32>
    %525 = arith.mulf %524, %520 : vector<1x256xf32>
    %526 = vector.broadcast %523 : f32 to vector<1x256xf32>
    %527 = arith.mulf %526, %521 : vector<1x256xf32>
    %528 = arith.addf %525, %527 : vector<1x256xf32>
    %529 = arith.andi %59, %94 : vector<1x256xi1>
    %cst_112 = arith.constant 0.000000e+00 : f32
    %530 = vector.broadcast %cst_112 : f32 to vector<1x256xf32>
    %531 = arith.select %529, %528, %530 : vector<1x256xi1>, vector<1x256xf32>
    %532 = arith.addf %519, %531 : vector<1x256xf32>
    %c238_i32 = arith.constant 238 : i32
    %533 = tpu.dynamic_rotate %29 by %c238_i32 dim 1 : vector<1x256xf32>, i32 -> vector<1x256xf32>
    %c238_i32_113 = arith.constant 238 : i32
    %534 = tpu.dynamic_rotate %31 by %c238_i32_113 dim 1 : vector<1x256xf32>, i32 -> vector<1x256xf32>
    %c33 = arith.constant 33 : index
    %535 = memref.load %arg5[%c33] : memref<98xf32, #tpu.memory_space<smem>>
    %c82 = arith.constant 82 : index
    %536 = memref.load %arg5[%c82] : memref<98xf32, #tpu.memory_space<smem>>
    %537 = vector.broadcast %535 : f32 to vector<1x256xf32>
    %538 = arith.mulf %537, %533 : vector<1x256xf32>
    %539 = vector.broadcast %536 : f32 to vector<1x256xf32>
    %540 = arith.mulf %539, %534 : vector<1x256xf32>
    %541 = arith.addf %538, %540 : vector<1x256xf32>
    %542 = arith.andi %59, %99 : vector<1x256xi1>
    %cst_114 = arith.constant 0.000000e+00 : f32
    %543 = vector.broadcast %cst_114 : f32 to vector<1x256xf32>
    %544 = arith.select %542, %541, %543 : vector<1x256xi1>, vector<1x256xf32>
    %545 = arith.addf %532, %544 : vector<1x256xf32>
    %c237_i32 = arith.constant 237 : i32
    %546 = tpu.dynamic_rotate %29 by %c237_i32 dim 1 : vector<1x256xf32>, i32 -> vector<1x256xf32>
    %c237_i32_115 = arith.constant 237 : i32
    %547 = tpu.dynamic_rotate %31 by %c237_i32_115 dim 1 : vector<1x256xf32>, i32 -> vector<1x256xf32>
    %c34 = arith.constant 34 : index
    %548 = memref.load %arg5[%c34] : memref<98xf32, #tpu.memory_space<smem>>
    %c83 = arith.constant 83 : index
    %549 = memref.load %arg5[%c83] : memref<98xf32, #tpu.memory_space<smem>>
    %550 = vector.broadcast %548 : f32 to vector<1x256xf32>
    %551 = arith.mulf %550, %546 : vector<1x256xf32>
    %552 = vector.broadcast %549 : f32 to vector<1x256xf32>
    %553 = arith.mulf %552, %547 : vector<1x256xf32>
    %554 = arith.addf %551, %553 : vector<1x256xf32>
    %555 = arith.andi %59, %104 : vector<1x256xi1>
    %cst_116 = arith.constant 0.000000e+00 : f32
    %556 = vector.broadcast %cst_116 : f32 to vector<1x256xf32>
    %557 = arith.select %555, %554, %556 : vector<1x256xi1>, vector<1x256xf32>
    %558 = arith.addf %545, %557 : vector<1x256xf32>
    %c227_i32 = arith.constant 227 : i32
    %559 = tpu.dynamic_rotate %29 by %c227_i32 dim 1 : vector<1x256xf32>, i32 -> vector<1x256xf32>
    %c227_i32_117 = arith.constant 227 : i32
    %560 = tpu.dynamic_rotate %31 by %c227_i32_117 dim 1 : vector<1x256xf32>, i32 -> vector<1x256xf32>
    %c35 = arith.constant 35 : index
    %561 = memref.load %arg5[%c35] : memref<98xf32, #tpu.memory_space<smem>>
    %c84 = arith.constant 84 : index
    %562 = memref.load %arg5[%c84] : memref<98xf32, #tpu.memory_space<smem>>
    %563 = vector.broadcast %561 : f32 to vector<1x256xf32>
    %564 = arith.mulf %563, %559 : vector<1x256xf32>
    %565 = vector.broadcast %562 : f32 to vector<1x256xf32>
    %566 = arith.mulf %565, %560 : vector<1x256xf32>
    %567 = arith.addf %564, %566 : vector<1x256xf32>
    %568 = arith.andi %64, %74 : vector<1x256xi1>
    %cst_118 = arith.constant 0.000000e+00 : f32
    %569 = vector.broadcast %cst_118 : f32 to vector<1x256xf32>
    %570 = arith.select %568, %567, %569 : vector<1x256xi1>, vector<1x256xf32>
    %571 = arith.addf %558, %570 : vector<1x256xf32>
    %c226_i32 = arith.constant 226 : i32
    %572 = tpu.dynamic_rotate %29 by %c226_i32 dim 1 : vector<1x256xf32>, i32 -> vector<1x256xf32>
    %c226_i32_119 = arith.constant 226 : i32
    %573 = tpu.dynamic_rotate %31 by %c226_i32_119 dim 1 : vector<1x256xf32>, i32 -> vector<1x256xf32>
    %c36 = arith.constant 36 : index
    %574 = memref.load %arg5[%c36] : memref<98xf32, #tpu.memory_space<smem>>
    %c85 = arith.constant 85 : index
    %575 = memref.load %arg5[%c85] : memref<98xf32, #tpu.memory_space<smem>>
    %576 = vector.broadcast %574 : f32 to vector<1x256xf32>
    %577 = arith.mulf %576, %572 : vector<1x256xf32>
    %578 = vector.broadcast %575 : f32 to vector<1x256xf32>
    %579 = arith.mulf %578, %573 : vector<1x256xf32>
    %580 = arith.addf %577, %579 : vector<1x256xf32>
    %581 = arith.andi %64, %79 : vector<1x256xi1>
    %cst_120 = arith.constant 0.000000e+00 : f32
    %582 = vector.broadcast %cst_120 : f32 to vector<1x256xf32>
    %583 = arith.select %581, %580, %582 : vector<1x256xi1>, vector<1x256xf32>
    %584 = arith.addf %571, %583 : vector<1x256xf32>
    %c225_i32 = arith.constant 225 : i32
    %585 = tpu.dynamic_rotate %29 by %c225_i32 dim 1 : vector<1x256xf32>, i32 -> vector<1x256xf32>
    %c225_i32_121 = arith.constant 225 : i32
    %586 = tpu.dynamic_rotate %31 by %c225_i32_121 dim 1 : vector<1x256xf32>, i32 -> vector<1x256xf32>
    %c37 = arith.constant 37 : index
    %587 = memref.load %arg5[%c37] : memref<98xf32, #tpu.memory_space<smem>>
    %c86 = arith.constant 86 : index
    %588 = memref.load %arg5[%c86] : memref<98xf32, #tpu.memory_space<smem>>
    %589 = vector.broadcast %587 : f32 to vector<1x256xf32>
    %590 = arith.mulf %589, %585 : vector<1x256xf32>
    %591 = vector.broadcast %588 : f32 to vector<1x256xf32>
    %592 = arith.mulf %591, %586 : vector<1x256xf32>
    %593 = arith.addf %590, %592 : vector<1x256xf32>
    %594 = arith.andi %64, %84 : vector<1x256xi1>
    %cst_122 = arith.constant 0.000000e+00 : f32
    %595 = vector.broadcast %cst_122 : f32 to vector<1x256xf32>
    %596 = arith.select %594, %593, %595 : vector<1x256xi1>, vector<1x256xf32>
    %597 = arith.addf %584, %596 : vector<1x256xf32>
    %c224_i32 = arith.constant 224 : i32
    %598 = tpu.dynamic_rotate %29 by %c224_i32 dim 1 : vector<1x256xf32>, i32 -> vector<1x256xf32>
    %c224_i32_123 = arith.constant 224 : i32
    %599 = tpu.dynamic_rotate %31 by %c224_i32_123 dim 1 : vector<1x256xf32>, i32 -> vector<1x256xf32>
    %c38 = arith.constant 38 : index
    %600 = memref.load %arg5[%c38] : memref<98xf32, #tpu.memory_space<smem>>
    %c87 = arith.constant 87 : index
    %601 = memref.load %arg5[%c87] : memref<98xf32, #tpu.memory_space<smem>>
    %602 = vector.broadcast %600 : f32 to vector<1x256xf32>
    %603 = arith.mulf %602, %598 : vector<1x256xf32>
    %604 = vector.broadcast %601 : f32 to vector<1x256xf32>
    %605 = arith.mulf %604, %599 : vector<1x256xf32>
    %606 = arith.addf %603, %605 : vector<1x256xf32>
    %607 = arith.andi %64, %89 : vector<1x256xi1>
    %cst_124 = arith.constant 0.000000e+00 : f32
    %608 = vector.broadcast %cst_124 : f32 to vector<1x256xf32>
    %609 = arith.select %607, %606, %608 : vector<1x256xi1>, vector<1x256xf32>
    %610 = arith.addf %597, %609 : vector<1x256xf32>
    %c223_i32 = arith.constant 223 : i32
    %611 = tpu.dynamic_rotate %29 by %c223_i32 dim 1 : vector<1x256xf32>, i32 -> vector<1x256xf32>
    %c223_i32_125 = arith.constant 223 : i32
    %612 = tpu.dynamic_rotate %31 by %c223_i32_125 dim 1 : vector<1x256xf32>, i32 -> vector<1x256xf32>
    %c39 = arith.constant 39 : index
    %613 = memref.load %arg5[%c39] : memref<98xf32, #tpu.memory_space<smem>>
    %c88 = arith.constant 88 : index
    %614 = memref.load %arg5[%c88] : memref<98xf32, #tpu.memory_space<smem>>
    %615 = vector.broadcast %613 : f32 to vector<1x256xf32>
    %616 = arith.mulf %615, %611 : vector<1x256xf32>
    %617 = vector.broadcast %614 : f32 to vector<1x256xf32>
    %618 = arith.mulf %617, %612 : vector<1x256xf32>
    %619 = arith.addf %616, %618 : vector<1x256xf32>
    %620 = arith.andi %64, %94 : vector<1x256xi1>
    %cst_126 = arith.constant 0.000000e+00 : f32
    %621 = vector.broadcast %cst_126 : f32 to vector<1x256xf32>
    %622 = arith.select %620, %619, %621 : vector<1x256xi1>, vector<1x256xf32>
    %623 = arith.addf %610, %622 : vector<1x256xf32>
    %c222_i32 = arith.constant 222 : i32
    %624 = tpu.dynamic_rotate %29 by %c222_i32 dim 1 : vector<1x256xf32>, i32 -> vector<1x256xf32>
    %c222_i32_127 = arith.constant 222 : i32
    %625 = tpu.dynamic_rotate %31 by %c222_i32_127 dim 1 : vector<1x256xf32>, i32 -> vector<1x256xf32>
    %c40 = arith.constant 40 : index
    %626 = memref.load %arg5[%c40] : memref<98xf32, #tpu.memory_space<smem>>
    %c89 = arith.constant 89 : index
    %627 = memref.load %arg5[%c89] : memref<98xf32, #tpu.memory_space<smem>>
    %628 = vector.broadcast %626 : f32 to vector<1x256xf32>
    %629 = arith.mulf %628, %624 : vector<1x256xf32>
    %630 = vector.broadcast %627 : f32 to vector<1x256xf32>
    %631 = arith.mulf %630, %625 : vector<1x256xf32>
    %632 = arith.addf %629, %631 : vector<1x256xf32>
    %633 = arith.andi %64, %99 : vector<1x256xi1>
    %cst_128 = arith.constant 0.000000e+00 : f32
    %634 = vector.broadcast %cst_128 : f32 to vector<1x256xf32>
    %635 = arith.select %633, %632, %634 : vector<1x256xi1>, vector<1x256xf32>
    %636 = arith.addf %623, %635 : vector<1x256xf32>
    %c221_i32 = arith.constant 221 : i32
    %637 = tpu.dynamic_rotate %29 by %c221_i32 dim 1 : vector<1x256xf32>, i32 -> vector<1x256xf32>
    %c221_i32_129 = arith.constant 221 : i32
    %638 = tpu.dynamic_rotate %31 by %c221_i32_129 dim 1 : vector<1x256xf32>, i32 -> vector<1x256xf32>
    %c41 = arith.constant 41 : index
    %639 = memref.load %arg5[%c41] : memref<98xf32, #tpu.memory_space<smem>>
    %c90 = arith.constant 90 : index
    %640 = memref.load %arg5[%c90] : memref<98xf32, #tpu.memory_space<smem>>
    %641 = vector.broadcast %639 : f32 to vector<1x256xf32>
    %642 = arith.mulf %641, %637 : vector<1x256xf32>
    %643 = vector.broadcast %640 : f32 to vector<1x256xf32>
    %644 = arith.mulf %643, %638 : vector<1x256xf32>
    %645 = arith.addf %642, %644 : vector<1x256xf32>
    %646 = arith.andi %64, %104 : vector<1x256xi1>
    %cst_130 = arith.constant 0.000000e+00 : f32
    %647 = vector.broadcast %cst_130 : f32 to vector<1x256xf32>
    %648 = arith.select %646, %645, %647 : vector<1x256xi1>, vector<1x256xf32>
    %649 = arith.addf %636, %648 : vector<1x256xf32>
    %c211_i32 = arith.constant 211 : i32
    %650 = tpu.dynamic_rotate %29 by %c211_i32 dim 1 : vector<1x256xf32>, i32 -> vector<1x256xf32>
    %c211_i32_131 = arith.constant 211 : i32
    %651 = tpu.dynamic_rotate %31 by %c211_i32_131 dim 1 : vector<1x256xf32>, i32 -> vector<1x256xf32>
    %c42 = arith.constant 42 : index
    %652 = memref.load %arg5[%c42] : memref<98xf32, #tpu.memory_space<smem>>
    %c91 = arith.constant 91 : index
    %653 = memref.load %arg5[%c91] : memref<98xf32, #tpu.memory_space<smem>>
    %654 = vector.broadcast %652 : f32 to vector<1x256xf32>
    %655 = arith.mulf %654, %650 : vector<1x256xf32>
    %656 = vector.broadcast %653 : f32 to vector<1x256xf32>
    %657 = arith.mulf %656, %651 : vector<1x256xf32>
    %658 = arith.addf %655, %657 : vector<1x256xf32>
    %659 = arith.andi %69, %74 : vector<1x256xi1>
    %cst_132 = arith.constant 0.000000e+00 : f32
    %660 = vector.broadcast %cst_132 : f32 to vector<1x256xf32>
    %661 = arith.select %659, %658, %660 : vector<1x256xi1>, vector<1x256xf32>
    %662 = arith.addf %649, %661 : vector<1x256xf32>
    %c210_i32 = arith.constant 210 : i32
    %663 = tpu.dynamic_rotate %29 by %c210_i32 dim 1 : vector<1x256xf32>, i32 -> vector<1x256xf32>
    %c210_i32_133 = arith.constant 210 : i32
    %664 = tpu.dynamic_rotate %31 by %c210_i32_133 dim 1 : vector<1x256xf32>, i32 -> vector<1x256xf32>
    %c43 = arith.constant 43 : index
    %665 = memref.load %arg5[%c43] : memref<98xf32, #tpu.memory_space<smem>>
    %c92 = arith.constant 92 : index
    %666 = memref.load %arg5[%c92] : memref<98xf32, #tpu.memory_space<smem>>
    %667 = vector.broadcast %665 : f32 to vector<1x256xf32>
    %668 = arith.mulf %667, %663 : vector<1x256xf32>
    %669 = vector.broadcast %666 : f32 to vector<1x256xf32>
    %670 = arith.mulf %669, %664 : vector<1x256xf32>
    %671 = arith.addf %668, %670 : vector<1x256xf32>
    %672 = arith.andi %69, %79 : vector<1x256xi1>
    %cst_134 = arith.constant 0.000000e+00 : f32
    %673 = vector.broadcast %cst_134 : f32 to vector<1x256xf32>
    %674 = arith.select %672, %671, %673 : vector<1x256xi1>, vector<1x256xf32>
    %675 = arith.addf %662, %674 : vector<1x256xf32>
    %c209_i32 = arith.constant 209 : i32
    %676 = tpu.dynamic_rotate %29 by %c209_i32 dim 1 : vector<1x256xf32>, i32 -> vector<1x256xf32>
    %c209_i32_135 = arith.constant 209 : i32
    %677 = tpu.dynamic_rotate %31 by %c209_i32_135 dim 1 : vector<1x256xf32>, i32 -> vector<1x256xf32>
    %c44 = arith.constant 44 : index
    %678 = memref.load %arg5[%c44] : memref<98xf32, #tpu.memory_space<smem>>
    %c93 = arith.constant 93 : index
    %679 = memref.load %arg5[%c93] : memref<98xf32, #tpu.memory_space<smem>>
    %680 = vector.broadcast %678 : f32 to vector<1x256xf32>
    %681 = arith.mulf %680, %676 : vector<1x256xf32>
    %682 = vector.broadcast %679 : f32 to vector<1x256xf32>
    %683 = arith.mulf %682, %677 : vector<1x256xf32>
    %684 = arith.addf %681, %683 : vector<1x256xf32>
    %685 = arith.andi %69, %84 : vector<1x256xi1>
    %cst_136 = arith.constant 0.000000e+00 : f32
    %686 = vector.broadcast %cst_136 : f32 to vector<1x256xf32>
    %687 = arith.select %685, %684, %686 : vector<1x256xi1>, vector<1x256xf32>
    %688 = arith.addf %675, %687 : vector<1x256xf32>
    %c208_i32 = arith.constant 208 : i32
    %689 = tpu.dynamic_rotate %29 by %c208_i32 dim 1 : vector<1x256xf32>, i32 -> vector<1x256xf32>
    %c208_i32_137 = arith.constant 208 : i32
    %690 = tpu.dynamic_rotate %31 by %c208_i32_137 dim 1 : vector<1x256xf32>, i32 -> vector<1x256xf32>
    %c45 = arith.constant 45 : index
    %691 = memref.load %arg5[%c45] : memref<98xf32, #tpu.memory_space<smem>>
    %c94 = arith.constant 94 : index
    %692 = memref.load %arg5[%c94] : memref<98xf32, #tpu.memory_space<smem>>
    %693 = vector.broadcast %691 : f32 to vector<1x256xf32>
    %694 = arith.mulf %693, %689 : vector<1x256xf32>
    %695 = vector.broadcast %692 : f32 to vector<1x256xf32>
    %696 = arith.mulf %695, %690 : vector<1x256xf32>
    %697 = arith.addf %694, %696 : vector<1x256xf32>
    %698 = arith.andi %69, %89 : vector<1x256xi1>
    %cst_138 = arith.constant 0.000000e+00 : f32
    %699 = vector.broadcast %cst_138 : f32 to vector<1x256xf32>
    %700 = arith.select %698, %697, %699 : vector<1x256xi1>, vector<1x256xf32>
    %701 = arith.addf %688, %700 : vector<1x256xf32>
    %c207_i32 = arith.constant 207 : i32
    %702 = tpu.dynamic_rotate %29 by %c207_i32 dim 1 : vector<1x256xf32>, i32 -> vector<1x256xf32>
    %c207_i32_139 = arith.constant 207 : i32
    %703 = tpu.dynamic_rotate %31 by %c207_i32_139 dim 1 : vector<1x256xf32>, i32 -> vector<1x256xf32>
    %c46 = arith.constant 46 : index
    %704 = memref.load %arg5[%c46] : memref<98xf32, #tpu.memory_space<smem>>
    %c95 = arith.constant 95 : index
    %705 = memref.load %arg5[%c95] : memref<98xf32, #tpu.memory_space<smem>>
    %706 = vector.broadcast %704 : f32 to vector<1x256xf32>
    %707 = arith.mulf %706, %702 : vector<1x256xf32>
    %708 = vector.broadcast %705 : f32 to vector<1x256xf32>
    %709 = arith.mulf %708, %703 : vector<1x256xf32>
    %710 = arith.addf %707, %709 : vector<1x256xf32>
    %711 = arith.andi %69, %94 : vector<1x256xi1>
    %cst_140 = arith.constant 0.000000e+00 : f32
    %712 = vector.broadcast %cst_140 : f32 to vector<1x256xf32>
    %713 = arith.select %711, %710, %712 : vector<1x256xi1>, vector<1x256xf32>
    %714 = arith.addf %701, %713 : vector<1x256xf32>
    %c206_i32 = arith.constant 206 : i32
    %715 = tpu.dynamic_rotate %29 by %c206_i32 dim 1 : vector<1x256xf32>, i32 -> vector<1x256xf32>
    %c206_i32_141 = arith.constant 206 : i32
    %716 = tpu.dynamic_rotate %31 by %c206_i32_141 dim 1 : vector<1x256xf32>, i32 -> vector<1x256xf32>
    %c47 = arith.constant 47 : index
    %717 = memref.load %arg5[%c47] : memref<98xf32, #tpu.memory_space<smem>>
    %c96 = arith.constant 96 : index
    %718 = memref.load %arg5[%c96] : memref<98xf32, #tpu.memory_space<smem>>
    %719 = vector.broadcast %717 : f32 to vector<1x256xf32>
    %720 = arith.mulf %719, %715 : vector<1x256xf32>
    %721 = vector.broadcast %718 : f32 to vector<1x256xf32>
    %722 = arith.mulf %721, %716 : vector<1x256xf32>
    %723 = arith.addf %720, %722 : vector<1x256xf32>
    %724 = arith.andi %69, %99 : vector<1x256xi1>
    %cst_142 = arith.constant 0.000000e+00 : f32
    %725 = vector.broadcast %cst_142 : f32 to vector<1x256xf32>
    %726 = arith.select %724, %723, %725 : vector<1x256xi1>, vector<1x256xf32>
    %727 = arith.addf %714, %726 : vector<1x256xf32>
    %c205_i32 = arith.constant 205 : i32
    %728 = tpu.dynamic_rotate %29 by %c205_i32 dim 1 : vector<1x256xf32>, i32 -> vector<1x256xf32>
    %c205_i32_143 = arith.constant 205 : i32
    %729 = tpu.dynamic_rotate %31 by %c205_i32_143 dim 1 : vector<1x256xf32>, i32 -> vector<1x256xf32>
    %c48 = arith.constant 48 : index
    %730 = memref.load %arg5[%c48] : memref<98xf32, #tpu.memory_space<smem>>
    %c97 = arith.constant 97 : index
    %731 = memref.load %arg5[%c97] : memref<98xf32, #tpu.memory_space<smem>>
    %732 = vector.broadcast %730 : f32 to vector<1x256xf32>
    %733 = arith.mulf %732, %728 : vector<1x256xf32>
    %734 = vector.broadcast %731 : f32 to vector<1x256xf32>
    %735 = arith.mulf %734, %729 : vector<1x256xf32>
    %736 = arith.addf %733, %735 : vector<1x256xf32>
    %737 = arith.andi %69, %104 : vector<1x256xi1>
    %cst_144 = arith.constant 0.000000e+00 : f32
    %738 = vector.broadcast %cst_144 : f32 to vector<1x256xf32>
    %739 = arith.select %737, %736, %738 : vector<1x256xi1>, vector<1x256xf32>
    %740 = arith.addf %727, %739 : vector<1x256xf32>
    %cst_145 = arith.constant 0.000000e+00 : f32
    %741 = vector.broadcast %cst_145 : f32 to vector<1x256xf32>
    %742 = arith.subf %741, %740 : vector<1x256xf32>
    %743 = math.exp %742 : vector<1x256xf32>
    %cst_146 = arith.constant 1.000000e+00 : f32
    %744 = vector.broadcast %cst_146 : f32 to vector<1x256xf32>
    %745 = arith.addf %744, %743 : vector<1x256xf32>
    %cst_147 = arith.constant 1.000000e+00 : f32
    %746 = vector.broadcast %cst_147 : f32 to vector<1x256xf32>
    %747 = arith.divf %746, %745 : vector<1x256xf32>
    %748 = vector.broadcast %747 : vector<1x256xf32> to vector<64x256xf32>
    %749 = arith.mulf %25, %748 : vector<64x256xf32>
    %c0_148 = arith.constant 0 : index
    %c0_149 = arith.constant 0 : index
    %c0_150 = arith.constant 0 : index
    %750 = vector.load %arg6[%c0_148, %c0_149, %c0_150] : memref<1x64x256xf32, #tpu.memory_space<vmem>>, vector<1x64x256xf32>
    %751 = vector.shape_cast %750 : vector<1x64x256xf32> to vector<64x256xf32>
    %752 = vector.shape_cast %749 : vector<64x256xf32> to vector<1x64x256xf32>
    tpu.vector_store %arg6[%c0_148, %c0_149, %c0_150], %752 {strides = array<i32>} : memref<1x64x256xf32, #tpu.memory_space<vmem>>, vector<1x64x256xf32>,
    return
  }
  func.func @transform_0(%arg0: i32) -> (i32, i32, i32) {
    %c0_i32 = arith.constant 0 : i32
    %c0_i32_0 = arith.constant 0 : i32
    %c0_i32_1 = arith.constant 0 : i32
    return %arg0, %c0_i32, %c0_i32_0 : i32, i32, i32
  }
  func.func @transform_1(%arg0: i32) -> (i32, i32) {
    %c0_i32 = arith.constant 0 : i32
    %c0_i32_0 = arith.constant 0 : i32
    %c0_i32_1 = arith.constant 0 : i32
    return %c0_i32, %c0_i32_0 : i32, i32
  }
  func.func @transform_2(%arg0: i32) -> (i32, i32) {
    %c0_i32 = arith.constant 0 : i32
    %c0_i32_0 = arith.constant 0 : i32
    %c0_i32_1 = arith.constant 0 : i32
    return %c0_i32, %c0_i32_0 : i32, i32
  }
  func.func @transform_3(%arg0: i32) -> (i32, i32) {
    %c0_i32 = arith.constant 0 : i32
    %c0_i32_0 = arith.constant 0 : i32
    %c0_i32_1 = arith.constant 0 : i32
    return %c0_i32, %c0_i32_0 : i32, i32
  }
  func.func @transform_4(%arg0: i32) -> i32 {
    %c0_i32 = arith.constant 0 : i32
    %c0_i32_0 = arith.constant 0 : i32
    return %c0_i32 : i32
  }
  func.func @transform_5(%arg0: i32) -> (i32, i32, i32) {
    %c0_i32 = arith.constant 0 : i32
    %c0_i32_0 = arith.constant 0 : i32
    %c0_i32_1 = arith.constant 0 : i32
    return %arg0, %c0_i32, %c0_i32_0 : i32, i32, i32
  }
}

</mosaic_0001>

<llo_original>
// kernel: cbam_forward.1
$region0: #{cbam_forward.1}
  #allocation0 [shape = 'u32[]', space=smem, size = 0x4, offset = 0x4, fixed_abs, tag = 'smem constant byte address 0x4 - core index']
  #allocation1 [shape = 'u32[144,128]{1,0:T(1,128)}', space=vmem, size = 0x12000, scoped, tag = 'internal scratch']
  %s0 = inlined_call_operand.vmem [shape: f32[2,64,256], index: 0, kind: input, shape index: {}]
  %s1 = inlined_call_operand.vmem [shape: f32[128,64], index: 1, kind: input, shape index: {}]
  %s2 = inlined_call_operand.vmem [shape: f32[64,128], index: 2, kind: input, shape index: {}]
  %s3 = inlined_call_operand.vmem [shape: s32[2,256], index: 3, kind: input, shape index: {}]
  %s4 = inlined_call_operand.vmem [shape: f32[98], index: 4, kind: input, shape index: {}]
  %s5 = inlined_call_operand.vmem [shape: f32[2,64,256], index: 5, kind: output, shape index: {}]
  %s6 = sld [smem:[#allocation0]]
  $region57: #{cbam_forward.1} parent=0
    _
  %s8 = ssub.s32 1, %s6
  %s9 = scalar_select 0, %s8, %s6
  $region1: #{cbam_forward.1} parent=0
    #allocation2 [shape = 'u8[512]{0}', space=smem, size = 0x200, scoped, tag = 'input window, operand 4, single buffered']
    #allocation3 [shape = 's32[2]{0}', space=sflag, size = 0x8, scoped, tag = 'scoped memory for cbam_forward.1']
    %10 = vsyncpa [#allocation3], 0
    loop: start=0, step=1, limit=4
    $region2: #{cbam_forward.1} parent=1 // loop_pre_header
      _
    $region3: #{cbam_forward.1} parent=1 // loop_header
      %s12 = sphi 0, %s16
      %p13 = scmp.ge.s32.totalorder %s12, 4
      %s22 = sphi 0, %s24
      %s25 = sphi 0, %s22
      %s26 = sphi 0, %s25
      %s42 = sphi 0, %s26
      %s46 = sphi 0, %s46
      %s48 = sphi 0, %s46
      %s49 = sphi 0, %s48
      %s63 = sphi 0, %s49
      %s67 = sphi 0, %s67
      %s69 = sphi 0, %s67
      %s70 = sphi 0, %s69
      %s84 = sphi 0, %s70
      %s88 = sphi 0, %s88
      %s90 = sphi 0, %s88
      %s91 = sphi 0, %s90
      %s105 = sphi 0, %s91
      %s109 = sphi 0, %s109
      %s111 = sphi 0, %s109
      %s112 = sphi 0, %s111
      %s126 = sphi 0, %s112
      %s132 = sphi 0, %s134
      %s135 = sphi 0, %s132
      %s136 = sphi 0, %s135
      %s152 = sphi 0, %s136
    $region4: #{cbam_forward.1} parent=1 // loop_header_branch
      %15 = sbr.rel (%p13) target = $region8
    $region5: #{cbam_forward.1} parent=1 // loop_body
      %s17 = ssub.s32 %s12, 1
      %s18 = ssub.s32 %s12, 2
      %s19 = sadd.s32 %s12, 1
      %s20 = ssub.s32 %s12, %s19
      %p21 = scmp.eq.s32.totalorder %s20, 0
      %s23 = sadd.s32 %s22, 1
      %s24 = scalar_select %p21, %s22, %s23
      %p27 = pneg %p21
      %p28 = scmp.eq.s32.totalorder %s12, 1
      %p29 = por %p27, %p28
      %p30 = scmp.ne.s32.totalorder %s22, %s25
      %p31 = scmp.eq.s32.totalorder %s12, 0
      %p32 = por %p30, %p31
      %p33 = scmp.ne.s32.totalorder %s22, %s25
      %p34 = scmp.eq.s32.totalorder %s17, 1
      %p35 = por %p33, %p34
      %p36 = scmp.ne.s32.totalorder %s25, %s26
      %p37 = scmp.eq.s32.totalorder %s17, 0
      %p38 = por %p36, %p37
      %p39 = scmp.ne.s32.totalorder %s25, %s26
      %p40 = scmp.eq.s32.totalorder %s18, 1
      %p41 = por %p39, %p40
      %p43 = scmp.ne.s32.totalorder %s26, %s42
      %p44 = scmp.eq.s32.totalorder %s18, 0
      %p45 = por %p43, %p44
      %s47 = sadd.s32 %s46, 1
      %p50 = scmp.eq.s32.totalorder %s12, 1
      %p51 = scmp.ne.s32.totalorder %s46, %s48
      %p52 = scmp.eq.s32.totalorder %s12, 0
      %p53 = por %p51, %p52
      %p54 = scmp.ne.s32.totalorder %s46, %s48
      %p55 = scmp.eq.s32.totalorder %s17, 1
      %p56 = por %p54, %p55
      %p57 = scmp.ne.s32.totalorder %s48, %s49
      %p58 = scmp.eq.s32.totalorder %s17, 0
      %p59 = por %p57, %p58
      %p60 = scmp.ne.s32.totalorder %s48, %s49
      %p61 = scmp.eq.s32.totalorder %s18, 1
      %p62 = por %p60, %p61
      %p64 = scmp.ne.s32.totalorder %s49, %s63
      %p65 = scmp.eq.s32.totalorder %s18, 0
      %p66 = por %p64, %p65
      %s68 = sadd.s32 %s67, 1
      %p71 = scmp.eq.s32.totalorder %s12, 1
      %p72 = scmp.ne.s32.totalorder %s67, %s69
      %p73 = scmp.eq.s32.totalorder %s12, 0
      %p74 = por %p72, %p73
      %p75 = scmp.ne.s32.totalorder %s67, %s69
      %p76 = scmp.eq.s32.totalorder %s17, 1
      %p77 = por %p75, %p76
      %p78 = scmp.ne.s32.totalorder %s69, %s70
      %p79 = scmp.eq.s32.totalorder %s17, 0
      %p80 = por %p78, %p79
      %p81 = scmp.ne.s32.totalorder %s69, %s70
      %p82 = scmp.eq.s32.totalorder %s18, 1
      %p83 = por %p81, %p82
      %p85 = scmp.ne.s32.totalorder %s70, %s84
      %p86 = scmp.eq.s32.totalorder %s18, 0
      %p87 = por %p85, %p86
      %s89 = sadd.s32 %s88, 1
      %p92 = scmp.eq.s32.totalorder %s12, 1
      %p93 = scmp.ne.s32.totalorder %s88, %s90
      %p94 = scmp.eq.s32.totalorder %s12, 0
      %p95 = por %p93, %p94
      %p96 = scmp.ne.s32.totalorder %s88, %s90
      %p97 = scmp.eq.s32.totalorder %s17, 1
      %p98 = por %p96, %p97
      %p99 = scmp.ne.s32.totalorder %s90, %s91
      %p100 = scmp.eq.s32.totalorder %s17, 0
      %p101 = por %p99, %p100
      %p102 = scmp.ne.s32.totalorder %s90, %s91
      %p103 = scmp.eq.s32.totalorder %s18, 1
      %p104 = por %p102, %p103
      %p106 = scmp.ne.s32.totalorder %s91, %s105
      %p107 = scmp.eq.s32.totalorder %s18, 0
      %p108 = por %p106, %p107
      %s110 = sadd.s32 %s109, 1
      %p113 = scmp.eq.s32.totalorder %s12, 1
      %p114 = scmp.ne.s32.totalorder %s109, %s111
      %p115 = scmp.eq.s32.totalorder %s12, 0
      %p116 = por %p114, %p115
      %p117 = scmp.ne.s32.totalorder %s109, %s111
      %p118 = scmp.eq.s32.totalorder %s17, 1
      %p119 = por %p117, %p118
      %p120 = scmp.ne.s32.totalorder %s111, %s112
      %p121 = scmp.eq.s32.totalorder %s17, 0
      %p122 = por %p120, %p121
      %p123 = scmp.ne.s32.totalorder %s111, %s112
      %p124 = scmp.eq.s32.totalorder %s18, 1
      %p125 = por %p123, %p124
      %p127 = scmp.ne.s32.totalorder %s112, %s126
      %p128 = scmp.eq.s32.totalorder %s18, 0
      %p129 = por %p127, %p128
      %s130 = ssub.s32 %s12, %s19
      %p131 = scmp.eq.s32.totalorder %s130, 0
      %s133 = sadd.s32 %s132, 1
      %s134 = scalar_select %p131, %s132, %s133
      %p137 = pneg %p131
      %p138 = scmp.eq.s32.totalorder %s12, 1
      %p139 = por %p137, %p138
      %p140 = scmp.ne.s32.totalorder %s132, %s135
      %p141 = scmp.eq.s32.totalorder %s12, 0
      %p142 = por %p140, %p141
      %p143 = scmp.ne.s32.totalorder %s132, %s135
      %p144 = scmp.eq.s32.totalorder %s17, 1
      %p145 = por %p143, %p144
      %p146 = scmp.ne.s32.totalorder %s135, %s136
      %p147 = scmp.eq.s32.totalorder %s17, 0
      %p148 = por %p146, %p147
      %p149 = scmp.ne.s32.totalorder %s135, %s136
      %p150 = scmp.eq.s32.totalorder %s18, 1
      %p151 = por %p149, %p150
      %p153 = scmp.ne.s32.totalorder %s136, %s152
      %p154 = scmp.eq.s32.totalorder %s18, 0
      %p155 = por %p153, %p154
      %p156 = scmp.le.s32.totalorder 1, %s12
      %p157 = scmp.lt.s32.totalorder %s12, 3
      %p158 = pnand %p156, %p157
      %p159 = pneg %p158
      // Predicated region
      $region9: #{cbam_forward.1} parent=5 // pred_check
        _
      $region10: #{cbam_forward.1} parent=5 // pred_check_branch
        %161 = sbr.rel (%p158) target = $region12
      $region11: #{cbam_forward.1} parent=5 // pred_region
        %s162 = ssub.s32 %s12, 1
        // Predicated region
        $region13: #{cbam_forward.1} parent=11 // pred_check
          %p163 = pneg %p59
        $region14: #{cbam_forward.1} parent=11 // pred_check_branch
          %165 = sbr.rel (%p163) target = $region16
        $region15: #{cbam_forward.1} parent=11 // pred_region
          _
        $region16: #{cbam_forward.1} parent=11 // pred_fallthru
          _
        // Predicated region
        $region17: #{cbam_forward.1} parent=11 // pred_check
          %p166 = pneg %p80
        $region18: #{cbam_forward.1} parent=11 // pred_check_branch
          %168 = sbr.rel (%p166) target = $region20
        $region19: #{cbam_forward.1} parent=11 // pred_region
          _
        $region20: #{cbam_forward.1} parent=11 // pred_fallthru
          _
        // Predicated region
        $region21: #{cbam_forward.1} parent=11 // pred_check
          %p169 = pneg %p101
        $region22: #{cbam_forward.1} parent=11 // pred_check_branch
          %171 = sbr.rel (%p169) target = $region24
        $region23: #{cbam_forward.1} parent=11 // pred_region
          _
        $region24: #{cbam_forward.1} parent=11 // pred_fallthru
          _
        // Predicated region
        $region25: #{cbam_forward.1} parent=11 // pred_check
          %p172 = pneg %p122
        $region26: #{cbam_forward.1} parent=11 // pred_check_branch
          %174 = sbr.rel (%p172) target = $region28
        $region27: #{cbam_forward.1} parent=11 // pred_region
          %s176 = ssub.s32 16, 16
          %177 = vsyncadd [#allocation3], %s176
          %s179 = sshll.u32 %s4, 4
          %s180 = int_to_ptr.vmem [resolvable:$true] %s179
          %182 = dma.vmem_to_smem %s180, 16, [#allocation2], [#allocation3]
        $region28: #{cbam_forward.1} parent=11 // pred_fallthru
          _
      $region12: #{cbam_forward.1} parent=5 // pred_fallthru
        _
      %p183 = scmp.lt.s32.totalorder %s12, 2
      // Predicated region
      $region29: #{cbam_forward.1} parent=5 // pred_check
        %p184 = pneg %p183
      $region30: #{cbam_forward.1} parent=5 // pred_check_branch
        %186 = sbr.rel (%p184) target = $region32
      $region31: #{cbam_forward.1} parent=5 // pred_region
        // Predicated region
        $region33: #{cbam_forward.1} parent=31 // pred_check
          %p187 = pneg %p32
        $region34: #{cbam_forward.1} parent=31 // pred_check_branch
          %189 = sbr.rel (%p187) target = $region36
        $region35: #{cbam_forward.1} parent=31 // pred_region
          %p190 = scmp.lt.s32.totalorder %s12, 1
          %s191 = scalar_select %p190, %s12, 1
          %s192 = smul.addr %s191, 16
          %s193 = smul.addr %s192, 8
          %s194 = scalar_lea.vmem %s0, %s193
        $region36: #{cbam_forward.1} parent=31 // pred_fallthru
          _
      $region32: #{cbam_forward.1} parent=5 // pred_fallthru
        _
      %p195 = scmp.le.s32.totalorder 1, %s12
      %p196 = scmp.lt.s32.totalorder %s12, 3
      %p197 = pnand %p195, %p196
      %p198 = pneg %p197
      // Predicated region
      $region37: #{cbam_forward.1} parent=5 // pred_check
        _
      $region38: #{cbam_forward.1} parent=5 // pred_check_branch
        %200 = sbr.rel (%p197) target = $region40
      $region39: #{cbam_forward.1} parent=5 // pred_region
        %s201 = ssub.s32 %s12, 1
        // Predicated region
        $region41: #{cbam_forward.1} parent=39 // pred_check
          %p202 = pneg %p122
        $region42: #{cbam_forward.1} parent=39 // pred_check_branch
          %204 = sbr.rel (%p202) target = $region44
        $region43: #{cbam_forward.1} parent=39 // pred_region
          %205 = dma.done [#allocation3], 16
        $region44: #{cbam_forward.1} parent=39 // pred_fallthru
          _
        %206 = sfence
        %p207 = scmp.lt.s32.totalorder %s17, 1
        %s208 = scalar_select %p207, %s17, 1
        %s209 = smul.addr %s208, 16
        %s210 = smul.addr %s209, 8
        %s211 = scalar_lea.vmem %s0, %s210
        %p212 = pneg %p38
        %p213 = pneg %p35
        %p214 = pneg %p59
        %p215 = pneg %p56
        %p216 = pneg %p80
        %p217 = pneg %p77
        %p218 = pneg %p101
        %p219 = pneg %p98
        %p220 = pneg %p122
        %p221 = pneg %p119
        %p222 = pneg %p148
        %p223 = pneg %p145
        %p224 = scmp.lt.s32.totalorder %s17, 1
        %s225 = scalar_select %p224, %s17, 1
        %s226 = smul.addr %s225, 16
        %s227 = smul.addr %s226, 8
        %s228 = scalar_lea.vmem %s5, %s227
        %p229 = scmp.lt.s32.totalorder %s17, 1
        %s230 = scalar_select %p229, %s17, 1
        %s231 = smul.addr %s230, 16
        %s232 = smul.addr %s231, 8
        %s233 = scalar_lea.vmem %s0, %s232
        %p234 = scmp.lt.s32.totalorder %s17, 1
        %s235 = scalar_select %p234, %s17, 1
        %s236 = smul.addr %s235, 16
        %s237 = smul.addr %s236, 8
        %s238 = scalar_lea.vmem %s5, %s237
        %v239 = vld [vmem:[%s233] sm:$0xff]
        %v240 = vld [vmem:[%s233 + $0x8] sm:$0xff]
        %v241 = vld [vmem:[%s233 + $0x10] sm:$0xff]
        %v242 = vld [vmem:[%s233 + $0x18] sm:$0xff]
        %v243 = vld [vmem:[%s233 + $0x20] sm:$0xff]
        %v244 = vld [vmem:[%s233 + $0x28] sm:$0xff]
        %v245 = vld [vmem:[%s233 + $0x30] sm:$0xff]
        %v246 = vld [vmem:[%s233 + $0x38] sm:$0xff]
        %v247 = vld [vmem:[%s233 + $0x40] sm:$0xff]
        %v248 = vld [vmem:[%s233 + $0x48] sm:$0xff]
        %v249 = vld [vmem:[%s233 + $0x50] sm:$0xff]
        %v250 = vld [vmem:[%s233 + $0x58] sm:$0xff]
        %v251 = vld [vmem:[%s233 + $0x60] sm:$0xff]
        %v252 = vld [vmem:[%s233 + $0x68] sm:$0xff]
        %v253 = vld [vmem:[%s233 + $0x70] sm:$0xff]
        %v254 = vld [vmem:[%s233 + $0x78] sm:$0xff]
        %v255 = vadd.f32 %v239, %v240
        %256 = vadd.xlane.f32.xlu0 %v255
        %v257 = vpop.xlane.xlu0 %256
        %v258 = vadd.f32 %v241, %v242
        %259 = vadd.xlane.f32.xlu0 %v258
        %v260 = vpop.xlane.xlu0 %259
        %v261 = vadd.f32 %v243, %v244
        %262 = vadd.xlane.f32.xlu0 %v261
        %v263 = vpop.xlane.xlu0 %262
        %v264 = vadd.f32 %v245, %v246
        %265 = vadd.xlane.f32.xlu0 %v264
        %v266 = vpop.xlane.xlu0 %265
        %v267 = vadd.f32 %v247, %v248
        %268 = vadd.xlane.f32.xlu0 %v267
        %v269 = vpop.xlane.xlu0 %268
        %v270 = vadd.f32 %v249, %v250
        %271 = vadd.xlane.f32.xlu0 %v270
        %v272 = vpop.xlane.xlu0 %271
        %v273 = vadd.f32 %v251, %v252
        %274 = vadd.xlane.f32.xlu0 %v273
        %v275 = vpop.xlane.xlu0 %274
        %v276 = vadd.f32 %v253, %v254
        %277 = vadd.xlane.f32.xlu0 %v276
        %v278 = vpop.xlane.xlu0 %277
        %v279 = vrcp.pop 256.0
        %v280 = vmul.f32 %v257, %v279
        %v281 = vmul.f32 %v260, %v279
        %v282 = vmul.f32 %v263, %v279
        %v283 = vmul.f32 %v266, %v279
        %v284 = vmul.f32 %v269, %v279
        %v285 = vmul.f32 %v272, %v279
        %v286 = vmul.f32 %v275, %v279
        %v287 = vmul.f32 %v278, %v279
        %v288 = vmax.f32 %v239, %v240
        %289 = vmax.xlane.f32.xlu0 %v288
        %v290 = vpop.xlane.xlu0 %289
        %v291 = vmax.f32 %v241, %v242
        %292 = vmax.xlane.f32.xlu0 %v291
        %v293 = vpop.xlane.xlu0 %292
        %v294 = vmax.f32 %v243, %v244
        %295 = vmax.xlane.f32.xlu0 %v294
        %v296 = vpop.xlane.xlu0 %295
        %v297 = vmax.f32 %v245, %v246
        %298 = vmax.xlane.f32.xlu0 %v297
        %v299 = vpop.xlane.xlu0 %298
        %v300 = vmax.f32 %v247, %v248
        %301 = vmax.xlane.f32.xlu0 %v300
        %v302 = vpop.xlane.xlu0 %301
        %v303 = vmax.f32 %v249, %v250
        %304 = vmax.xlane.f32.xlu0 %v303
        %v305 = vpop.xlane.xlu0 %304
        %v306 = vmax.f32 %v251, %v252
        %307 = vmax.xlane.f32.xlu0 %v306
        %v308 = vpop.xlane.xlu0 %307
        %v309 = vmax.f32 %v253, %v254
        %310 = vmax.xlane.f32.xlu0 %v309
        %v311 = vpop.xlane.xlu0 %310
        %v312 = vld [vmem:[%s1] sm:$0xff]
        %v313 = vld [vmem:[%s1 + $0x8] sm:$0xff]
        %v314 = vld [vmem:[%s1 + $0x10] sm:$0xff]
        %v315 = vld [vmem:[%s1 + $0x18] sm:$0xff]
        %v316 = vld [vmem:[%s1 + $0x20] sm:$0xff]
        %v317 = vld [vmem:[%s1 + $0x28] sm:$0xff]
        %v318 = vld [vmem:[%s1 + $0x30] sm:$0xff]
        %v319 = vld [vmem:[%s1 + $0x38] sm:$0xff]
        %v320 = vld [vmem:[%s1 + $0x40] sm:$0xff]
        %v321 = vld [vmem:[%s1 + $0x48] sm:$0xff]
        %v322 = vld [vmem:[%s1 + $0x50] sm:$0xff]
        %v323 = vld [vmem:[%s1 + $0x58] sm:$0xff]
        %v324 = vld [vmem:[%s1 + $0x60] sm:$0xff]
        %v325 = vld [vmem:[%s1 + $0x68] sm:$0xff]
        %v326 = vld [vmem:[%s1 + $0x70] sm:$0xff]
        %v327 = vld [vmem:[%s1 + $0x78] sm:$0xff]
        %vm328 = vcmask 523264
        %v330 = vsel %vm328, %v312, 0
        %v333 = vsel %vm328, %v313, 0
        %v336 = vsel %vm328, %v314, 0
        %v339 = vsel %vm328, %v315, 0
        %v342 = vsel %vm328, %v316, 0
        %v345 = vsel %vm328, %v317, 0
        %v348 = vsel %vm328, %v318, 0
        %v351 = vsel %vm328, %v319, 0
        %v354 = vsel %vm328, %v320, 0
        %v357 = vsel %vm328, %v321, 0
        %v360 = vsel %vm328, %v322, 0
        %v363 = vsel %vm328, %v323, 0
        %v366 = vsel %vm328, %v324, 0
        %v369 = vsel %vm328, %v325, 0
        %v372 = vsel %vm328, %v326, 0
        %v375 = vsel %vm328, %v327, 0
        %377 = vmatprep.subr.mxu0 0.0
        %378 = vmatpush1.msra.mxu0 0.0
        %379 = vmatprep.subr.mxu0 0.0
        %380 = vmatpush1.msra.mxu0 0.0
        %381 = vmatprep.subr.mxu0 0.0
        %382 = vmatpush1.msra.mxu0 0.0
        %383 = vmatprep.subr.mxu0 0.0
        %384 = vmatpush1.msra.mxu0 0.0
        %385 = vmatprep.subr.mxu0 0.0
        %386 = vmatpush1.msra.mxu0 0.0
        %387 = vmatprep.subr.mxu0 0.0
        %388 = vmatpush1.msra.mxu0 0.0
        %389 = vmatprep.subr.mxu0 0.0
        %390 = vmatpush1.msra.mxu0 0.0
        %391 = vmatprep.subr.mxu0 0.0
        %392 = vmatpush1.msra.mxu0 0.0
        %393 = vmatprep.subr.mxu0 0.0
        %394 = vmatpush1.msra.mxu0 %v311
        %395 = vmatprep.subr.mxu0 0.0
        %396 = vmatpush1.msra.mxu0 %v308
        %397 = vmatprep.subr.mxu0 0.0
        %398 = vmatpush1.msra.mxu0 %v305
        %399 = vmatprep.subr.mxu0 0.0
        %400 = vmatpush1.msra.mxu0 %v302
        %401 = vmatprep.subr.mxu0 0.0
        %402 = vmatpush1.msra.mxu0 %v299
        %403 = vmatprep.subr.mxu0 0.0
        %404 = vmatpush1.msra.mxu0 %v296
        %405 = vmatprep.subr.mxu0 0.0
        %406 = vmatpush1.msra.mxu0 %v293
        %407 = vmatprep.subr.mxu0 0.0
        %408 = vmatpush1.msra.mxu0 %v290
        %409 = vmatprep.subr.mxu0 0.0
        %410 = vmatpush2.msra.mxu0 0.0
        %411 = vmatprep.subr.mxu0 0.0
        %412 = vmatpush2.msra.mxu0 0.0
        %413 = vmatprep.subr.mxu0 0.0
        %414 = vmatpush2.msra.mxu0 0.0
        %415 = vmatprep.subr.mxu0 0.0
        %416 = vmatpush2.msra.mxu0 0.0
        %417 = vmatprep.subr.mxu0 0.0
        %418 = vmatpush2.msra.mxu0 0.0
        %419 = vmatprep.subr.mxu0 0.0
        %420 = vmatpush2.msra.mxu0 0.0
        %421 = vmatprep.subr.mxu0 0.0
        %422 = vmatpush2.msra.mxu0 0.0
        %423 = vmatprep.subr.mxu0 0.0
        %424 = vmatpush2.msra.mxu0 0.0
        %425 = vmatprep.subr.mxu0 0.0
        %426 = vmatpush2.msra.mxu0 0.0
        %427 = vmatprep.subr.mxu0 0.0
        %428 = vmatpush2.msra.mxu0 0.0
        %429 = vmatprep.subr.mxu0 0.0
        %430 = vmatpush2.msra.mxu0 0.0
        %431 = vmatprep.subr.mxu0 0.0
        %432 = vmatpush2.msra.mxu0 0.0
        %433 = vmatprep.subr.mxu0 0.0
        %434 = vmatpush2.msra.mxu0 0.0
        %435 = vmatprep.subr.mxu0 0.0
        %436 = vmatpush2.msra.mxu0 0.0
        %437 = vmatprep.subr.mxu0 0.0
        %438 = vmatpush2.msra.mxu0 0.0
        %439 = vmatprep.subr.mxu0 0.0
        %440 = vmatpush2.msra.mxu0 0.0
        %441 = vmatprep.mubr.f32.mxu0 0.0
        %442 = vmatmul.mubr.f32.gmra.mxu0 %v330
        %v443 = vpop.f32.mrf.mxu0
        %v444 = vadd.f32 0.0, %v443
        %v445 = vpop.f32.mrf.mxu0
        %446 = vmatprep.mubr.f32.mxu0 0.0
        %447 = vmatmul.mubr.f32.gmra.mxu0 %v333
        %v448 = vpop.f32.mrf.mxu0
        %v449 = vadd.f32 0.0, %v448
        %v450 = vpop.f32.mrf.mxu0
        %451 = vmatprep.mubr.f32.mxu0 0.0
        %452 = vmatmul.mubr.f32.gmra.mxu0 %v336
        %v453 = vpop.f32.mrf.mxu0
        %v454 = vadd.f32 0.0, %v453
        %v455 = vpop.f32.mrf.mxu0
        %456 = vmatprep.mubr.f32.mxu0 0.0
        %457 = vmatmul.mubr.f32.gmra.mxu0 %v339
        %v458 = vpop.f32.mrf.mxu0
        %v459 = vadd.f32 0.0, %v458
        %v460 = vpop.f32.mrf.mxu0
        %461 = vmatprep.mubr.f32.mxu0 0.0
        %462 = vmatmul.mubr.f32.gmra.mxu0 %v342
        %v463 = vpop.f32.mrf.mxu0
        %v464 = vadd.f32 0.0, %v463
        %v465 = vpop.f32.mrf.mxu0
        %466 = vmatprep.mubr.f32.mxu0 0.0
        %467 = vmatmul.mubr.f32.gmra.mxu0 %v345
        %v468 = vpop.f32.mrf.mxu0
        %v469 = vadd.f32 0.0, %v468
        %v470 = vpop.f32.mrf.mxu0
        %471 = vmatprep.mubr.f32.mxu0 0.0
        %472 = vmatmul.mubr.f32.gmra.mxu0 %v348
        %v473 = vpop.f32.mrf.mxu0
        %v474 = vadd.f32 0.0, %v473
        %v475 = vpop.f32.mrf.mxu0
        %476 = vmatprep.mubr.f32.mxu0 0.0
        %477 = vmatmul.mubr.f32.gmra.mxu0 %v351
        %v478 = vpop.f32.mrf.mxu0
        %v479 = vadd.f32 0.0, %v478
        %v480 = vpop.f32.mrf.mxu0
        %481 = vmatprep.mubr.f32.mxu0 0.0
        %482 = vmatmul.mubr.f32.gmra.mxu0 %v354
        %v483 = vpop.f32.mrf.mxu0
        %v484 = vadd.f32 0.0, %v483
        %v485 = vpop.f32.mrf.mxu0
        %486 = vmatprep.mubr.f32.mxu0 0.0
        %487 = vmatmul.mubr.f32.gmra.mxu0 %v357
        %v488 = vpop.f32.mrf.mxu0
        %v489 = vadd.f32 0.0, %v488
        %v490 = vpop.f32.mrf.mxu0
        %491 = vmatprep.mubr.f32.mxu0 0.0
        %492 = vmatmul.mubr.f32.gmra.mxu0 %v360
        %v493 = vpop.f32.mrf.mxu0
        %v494 = vadd.f32 0.0, %v493
        %v495 = vpop.f32.mrf.mxu0
        %496 = vmatprep.mubr.f32.mxu0 0.0
        %497 = vmatmul.mubr.f32.gmra.mxu0 %v363
        %v498 = vpop.f32.mrf.mxu0
        %v499 = vadd.f32 0.0, %v498
        %v500 = vpop.f32.mrf.mxu0
        %501 = vmatprep.mubr.f32.mxu0 0.0
        %502 = vmatmul.mubr.f32.gmra.mxu0 %v366
        %v503 = vpop.f32.mrf.mxu0
        %v504 = vadd.f32 0.0, %v503
        %v505 = vpop.f32.mrf.mxu0
        %506 = vmatprep.mubr.f32.mxu0 0.0
        %507 = vmatmul.mubr.f32.gmra.mxu0 %v369
        %v508 = vpop.f32.mrf.mxu0
        %v509 = vadd.f32 0.0, %v508
        %v510 = vpop.f32.mrf.mxu0
        %511 = vmatprep.mubr.f32.mxu0 0.0
        %512 = vmatmul.mubr.f32.gmra.mxu0 %v372
        %v513 = vpop.f32.mrf.mxu0
        %v514 = vadd.f32 0.0, %v513
        %v515 = vpop.f32.mrf.mxu0
        %516 = vmatprep.mubr.f32.mxu0 0.0
        %517 = vmatmul.mubr.f32.gmra.mxu0 %v375
        %v518 = vpop.f32.mrf.mxu0
        %v519 = vadd.f32 0.0, %v518
        %v520 = vpop.f32.mrf.mxu0
        %521 = vdwg.mxu0
        %522 = vmatprep.subr.mxu0 0.0
        %523 = vmatpush1.msra.mxu0 0.0
        %524 = vmatprep.subr.mxu0 0.0
        %525 = vmatpush1.msra.mxu0 0.0
        %526 = vmatprep.subr.mxu0 0.0
        %527 = vmatpush1.msra.mxu0 0.0
        %528 = vmatprep.subr.mxu0 0.0
        %529 = vmatpush1.msra.mxu0 0.0
        %530 = vmatprep.subr.mxu0 0.0
        %531 = vmatpush1.msra.mxu0 0.0
        %532 = vmatprep.subr.mxu0 0.0
        %533 = vmatpush1.msra.mxu0 0.0
        %534 = vmatprep.subr.mxu0 0.0
        %535 = vmatpush1.msra.mxu0 0.0
        %536 = vmatprep.subr.mxu0 0.0
        %537 = vmatpush1.msra.mxu0 0.0
        %538 = vmatprep.subr.mxu0 0.0
        %539 = vmatpush1.msra.mxu0 %v287
        %540 = vmatprep.subr.mxu0 0.0
        %541 = vmatpush1.msra.mxu0 %v286
        %542 = vmatprep.subr.mxu0 0.0
        %543 = vmatpush1.msra.mxu0 %v285
        %544 = vmatprep.subr.mxu0 0.0
        %545 = vmatpush1.msra.mxu0 %v284
        %546 = vmatprep.subr.mxu0 0.0
        %547 = vmatpush1.msra.mxu0 %v283
        %548 = vmatprep.subr.mxu0 0.0
        %549 = vmatpush1.msra.mxu0 %v282
        %550 = vmatprep.subr.mxu0 0.0
        %551 = vmatpush1.msra.mxu0 %v281
        %552 = vmatprep.subr.mxu0 0.0
        %553 = vmatpush1.msra.mxu0 %v280
        %554 = vmatprep.subr.mxu0 0.0
        %555 = vmatpush2.msra.mxu0 0.0
        %556 = vmatprep.subr.mxu0 0.0
        %557 = vmatpush2.msra.mxu0 0.0
        %558 = vmatprep.subr.mxu0 0.0
        %559 = vmatpush2.msra.mxu0 0.0
        %560 = vmatprep.subr.mxu0 0.0
        %561 = vmatpush2.msra.mxu0 0.0
        %562 = vmatprep.subr.mxu0 0.0
        %563 = vmatpush2.msra.mxu0 0.0
        %564 = vmatprep.subr.mxu0 0.0
        %565 = vmatpush2.msra.mxu0 0.0
        %566 = vmatprep.subr.mxu0 0.0
        %567 = vmatpush2.msra.mxu0 0.0
        %568 = vmatprep.subr.mxu0 0.0
        %569 = vmatpush2.msra.mxu0 0.0
        %570 = vmatprep.subr.mxu0 0.0
        %571 = vmatpush2.msra.mxu0 0.0
        %572 = vmatprep.subr.mxu0 0.0
        %573 = vmatpush2.msra.mxu0 0.0
        %574 = vmatprep.subr.mxu0 0.0
        %575 = vmatpush2.msra.mxu0 0.0
        %576 = vmatprep.subr.mxu0 0.0
        %577 = vmatpush2.msra.mxu0 0.0
        %578 = vmatprep.subr.mxu0 0.0
        %579 = vmatpush2.msra.mxu0 0.0
        %580 = vmatprep.subr.mxu0 0.0
        %581 = vmatpush2.msra.mxu0 0.0
        %582 = vmatprep.subr.mxu0 0.0
        %583 = vmatpush2.msra.mxu0 0.0
        %584 = vmatprep.subr.mxu0 0.0
        %585 = vmatpush2.msra.mxu0 0.0
        %586 = vmatprep.mubr.f32.mxu0 0.0
        %587 = vmatmul.mubr.f32.gmra.mxu0 %v330
        %v588 = vpop.f32.mrf.mxu0
        %v589 = vadd.f32 %v444, %v588
        %v590 = vpop.f32.mrf.mxu0
        %591 = vmatprep.mubr.f32.mxu0 0.0
        %592 = vmatmul.mubr.f32.gmra.mxu0 %v333
        %v593 = vpop.f32.mrf.mxu0
        %v594 = vadd.f32 %v449, %v593
        %v595 = vpop.f32.mrf.mxu0
        %596 = vmatprep.mubr.f32.mxu0 0.0
        %597 = vmatmul.mubr.f32.gmra.mxu0 %v336
        %v598 = vpop.f32.mrf.mxu0
        %v599 = vadd.f32 %v454, %v598
        %v600 = vpop.f32.mrf.mxu0
        %601 = vmatprep.mubr.f32.mxu0 0.0
        %602 = vmatmul.mubr.f32.gmra.mxu0 %v339
        %v603 = vpop.f32.mrf.mxu0
        %v604 = vadd.f32 %v459, %v603
        %v605 = vpop.f32.mrf.mxu0
        %606 = vmatprep.mubr.f32.mxu0 0.0
        %607 = vmatmul.mubr.f32.gmra.mxu0 %v342
        %v608 = vpop.f32.mrf.mxu0
        %v609 = vadd.f32 %v464, %v608
        %v610 = vpop.f32.mrf.mxu0
        %611 = vmatprep.mubr.f32.mxu0 0.0
        %612 = vmatmul.mubr.f32.gmra.mxu0 %v345
        %v613 = vpop.f32.mrf.mxu0
        %v614 = vadd.f32 %v469, %v613
        %v615 = vpop.f32.mrf.mxu0
        %616 = vmatprep.mubr.f32.mxu0 0.0
        %617 = vmatmul.mubr.f32.gmra.mxu0 %v348
        %v618 = vpop.f32.mrf.mxu0
        %v619 = vadd.f32 %v474, %v618
        %v620 = vpop.f32.mrf.mxu0
        %621 = vmatprep.mubr.f32.mxu0 0.0
        %622 = vmatmul.mubr.f32.gmra.mxu0 %v351
        %v623 = vpop.f32.mrf.mxu0
        %v624 = vadd.f32 %v479, %v623
        %v625 = vpop.f32.mrf.mxu0
        %626 = vmatprep.mubr.f32.mxu0 0.0
        %627 = vmatmul.mubr.f32.gmra.mxu0 %v354
        %v628 = vpop.f32.mrf.mxu0
        %v629 = vadd.f32 %v484, %v628
        %v630 = vpop.f32.mrf.mxu0
        %631 = vmatprep.mubr.f32.mxu0 0.0
        %632 = vmatmul.mubr.f32.gmra.mxu0 %v357
        %v633 = vpop.f32.mrf.mxu0
        %v634 = vadd.f32 %v489, %v633
        %v635 = vpop.f32.mrf.mxu0
        %636 = vmatprep.mubr.f32.mxu0 0.0
        %637 = vmatmul.mubr.f32.gmra.mxu0 %v360
        %v638 = vpop.f32.mrf.mxu0
        %v639 = vadd.f32 %v494, %v638
        %v640 = vpop.f32.mrf.mxu0
        %641 = vmatprep.mubr.f32.mxu0 0.0
        %642 = vmatmul.mubr.f32.gmra.mxu0 %v363
        %v643 = vpop.f32.mrf.mxu0
        %v644 = vadd.f32 %v499, %v643
        %v645 = vpop.f32.mrf.mxu0
        %646 = vmatprep.mubr.f32.mxu0 0.0
        %647 = vmatmul.mubr.f32.gmra.mxu0 %v366
        %v648 = vpop.f32.mrf.mxu0
        %v649 = vadd.f32 %v504, %v648
        %v650 = vpop.f32.mrf.mxu0
        %651 = vmatprep.mubr.f32.mxu0 0.0
        %652 = vmatmul.mubr.f32.gmra.mxu0 %v369
        %v653 = vpop.f32.mrf.mxu0
        %v654 = vadd.f32 %v509, %v653
        %v655 = vpop.f32.mrf.mxu0
        %656 = vmatprep.mubr.f32.mxu0 0.0
        %657 = vmatmul.mubr.f32.gmra.mxu0 %v372
        %v658 = vpop.f32.mrf.mxu0
        %v659 = vadd.f32 %v514, %v658
        %v660 = vpop.f32.mrf.mxu0
        %661 = vmatprep.mubr.f32.mxu0 0.0
        %662 = vmatmul.mubr.f32.gmra.mxu0 %v375
        %v663 = vpop.f32.mrf.mxu0
        %v664 = vadd.f32 %v519, %v663
        %v665 = vpop.f32.mrf.mxu0
        %666 = vdwg.mxu0
        %v667 = vmax.f32 %v589, 0.0
        %v668 = vmax.f32 %v594, 0.0
        %v669 = vmax.f32 %v599, 0.0
        %v670 = vmax.f32 %v604, 0.0
        %v671 = vmax.f32 %v609, 0.0
        %v672 = vmax.f32 %v614, 0.0
        %v673 = vmax.f32 %v619, 0.0
        %v674 = vmax.f32 %v624, 0.0
        %v675 = vmax.f32 %v629, 0.0
        %v676 = vmax.f32 %v634, 0.0
        %v677 = vmax.f32 %v639, 0.0
        %v678 = vmax.f32 %v644, 0.0
        %v679 = vmax.f32 %v649, 0.0
        %v680 = vmax.f32 %v654, 0.0
        %v681 = vmax.f32 %v659, 0.0
        %v682 = vmax.f32 %v664, 0.0
        %v683 = vld [vmem:[%s2] sm:$0xff]
        %v684 = vld [vmem:[%s2 + $0x8] sm:$0xff]
        %v685 = vld [vmem:[%s2 + $0x10] sm:$0xff]
        %v686 = vld [vmem:[%s2 + $0x18] sm:$0xff]
        %v687 = vld [vmem:[%s2 + $0x20] sm:$0xff]
        %v688 = vld [vmem:[%s2 + $0x28] sm:$0xff]
        %v689 = vld [vmem:[%s2 + $0x30] sm:$0xff]
        %v690 = vld [vmem:[%s2 + $0x38] sm:$0xff]
        %691 = vmatprep.subr.mxu0 0.0
        %692 = vmatpush1.msra.mxu0 %v682
        %693 = vmatprep.subr.mxu0 0.0
        %694 = vmatpush1.msra.mxu0 %v681
        %695 = vmatprep.subr.mxu0 0.0
        %696 = vmatpush1.msra.mxu0 %v680
        %697 = vmatprep.subr.mxu0 0.0
        %698 = vmatpush1.msra.mxu0 %v679
        %699 = vmatprep.subr.mxu0 0.0
        %700 = vmatpush1.msra.mxu0 %v678
        %701 = vmatprep.subr.mxu0 0.0
        %702 = vmatpush1.msra.mxu0 %v677
        %703 = vmatprep.subr.mxu0 0.0
        %704 = vmatpush1.msra.mxu0 %v676
        %705 = vmatprep.subr.mxu0 0.0
        %706 = vmatpush1.msra.mxu0 %v675
        %707 = vmatprep.subr.mxu0 0.0
        %708 = vmatpush1.msra.mxu0 %v674
        %709 = vmatprep.subr.mxu0 0.0
        %710 = vmatpush1.msra.mxu0 %v673
        %711 = vmatprep.subr.mxu0 0.0
        %712 = vmatpush1.msra.mxu0 %v672
        %713 = vmatprep.subr.mxu0 0.0
        %714 = vmatpush1.msra.mxu0 %v671
        %715 = vmatprep.subr.mxu0 0.0
        %716 = vmatpush1.msra.mxu0 %v670
        %717 = vmatprep.subr.mxu0 0.0
        %718 = vmatpush1.msra.mxu0 %v669
        %719 = vmatprep.subr.mxu0 0.0
        %720 = vmatpush1.msra.mxu0 %v668
        %721 = vmatprep.subr.mxu0 0.0
        %722 = vmatpush1.msra.mxu0 %v667
        %723 = vmatprep.subr.mxu0 0.0
        %724 = vmatpush2.msra.mxu0 0.0
        %725 = vmatprep.subr.mxu0 0.0
        %726 = vmatpush2.msra.mxu0 0.0
        %727 = vmatprep.subr.mxu0 0.0
        %728 = vmatpush2.msra.mxu0 0.0
        %729 = vmatprep.subr.mxu0 0.0
        %730 = vmatpush2.msra.mxu0 0.0
        %731 = vmatprep.subr.mxu0 0.0
        %732 = vmatpush2.msra.mxu0 0.0
        %733 = vmatprep.subr.mxu0 0.0
        %734 = vmatpush2.msra.mxu0 0.0
        %735 = vmatprep.subr.mxu0 0.0
        %736 = vmatpush2.msra.mxu0 0.0
        %737 = vmatprep.subr.mxu0 0.0
        %738 = vmatpush2.msra.mxu0 0.0
        %739 = vmatprep.subr.mxu0 0.0
        %740 = vmatpush2.msra.mxu0 0.0
        %741 = vmatprep.subr.mxu0 0.0
        %742 = vmatpush2.msra.mxu0 0.0
        %743 = vmatprep.subr.mxu0 0.0
        %744 = vmatpush2.msra.mxu0 0.0
        %745 = vmatprep.subr.mxu0 0.0
        %746 = vmatpush2.msra.mxu0 0.0
        %747 = vmatprep.subr.mxu0 0.0
        %748 = vmatpush2.msra.mxu0 0.0
        %749 = vmatprep.subr.mxu0 0.0
        %750 = vmatpush2.msra.mxu0 0.0
        %751 = vmatprep.subr.mxu0 0.0
        %752 = vmatpush2.msra.mxu0 0.0
        %753 = vmatprep.subr.mxu0 0.0
        %754 = vmatpush2.msra.mxu0 0.0
        %755 = vmatprep.mubr.f32.mxu0 0.0
        %756 = vmatmul.mubr.f32.gmra.mxu0 %v683
        %v757 = vpop.f32.mrf.mxu0
        %v758 = vadd.f32 0.0, %v757
        %v759 = vpop.f32.mrf.mxu0
        %760 = vmatprep.mubr.f32.mxu0 0.0
        %761 = vmatmul.mubr.f32.gmra.mxu0 %v684
        %v762 = vpop.f32.mrf.mxu0
        %v763 = vadd.f32 0.0, %v762
        %v764 = vpop.f32.mrf.mxu0
        %765 = vmatprep.mubr.f32.mxu0 0.0
        %766 = vmatmul.mubr.f32.gmra.mxu0 %v685
        %v767 = vpop.f32.mrf.mxu0
        %v768 = vadd.f32 0.0, %v767
        %v769 = vpop.f32.mrf.mxu0
        %770 = vmatprep.mubr.f32.mxu0 0.0
        %771 = vmatmul.mubr.f32.gmra.mxu0 %v686
        %v772 = vpop.f32.mrf.mxu0
        %v773 = vadd.f32 0.0, %v772
        %v774 = vpop.f32.mrf.mxu0
        %775 = vmatprep.mubr.f32.mxu0 0.0
        %776 = vmatmul.mubr.f32.gmra.mxu0 %v687
        %v777 = vpop.f32.mrf.mxu0
        %v778 = vadd.f32 0.0, %v777
        %v779 = vpop.f32.mrf.mxu0
        %780 = vmatprep.mubr.f32.mxu0 0.0
        %781 = vmatmul.mubr.f32.gmra.mxu0 %v688
        %v782 = vpop.f32.mrf.mxu0
        %v783 = vadd.f32 0.0, %v782
        %v784 = vpop.f32.mrf.mxu0
        %785 = vmatprep.mubr.f32.mxu0 0.0
        %786 = vmatmul.mubr.f32.gmra.mxu0 %v689
        %v787 = vpop.f32.mrf.mxu0
        %v788 = vadd.f32 0.0, %v787
        %v789 = vpop.f32.mrf.mxu0
        %790 = vmatprep.mubr.f32.mxu0 0.0
        %791 = vmatmul.mubr.f32.gmra.mxu0 %v690
        %v792 = vpop.f32.mrf.mxu0
        %v793 = vadd.f32 0.0, %v792
        %v794 = vpop.f32.mrf.mxu0
        %795 = vdwg.mxu0
        %v796 = vsub.f32 0.0, %v758
        %v797 = vsub.f32 0.0, %v763
        %v798 = vsub.f32 0.0, %v768
        %v799 = vsub.f32 0.0, %v773
        %v800 = vsub.f32 0.0, %v778
        %v801 = vsub.f32 0.0, %v783
        %v802 = vsub.f32 0.0, %v788
        %v803 = vsub.f32 0.0, %v793
        %v804 = vmul.f32 %v796, 1.442695
        %v805 = vpow.pop %v804
        %v806 = vmul.f32 %v797, 1.442695
        %v807 = vpow.pop %v806
        %v808 = vmul.f32 %v798, 1.442695
        %v809 = vpow.pop %v808
        %v810 = vmul.f32 %v799, 1.442695
        %v811 = vpow.pop %v810
        %v812 = vmul.f32 %v800, 1.442695
        %v813 = vpow.pop %v812
        %v814 = vmul.f32 %v801, 1.442695
        %v815 = vpow.pop %v814
        %v816 = vmul.f32 %v802, 1.442695
        %v817 = vpow.pop %v816
        %v818 = vmul.f32 %v803, 1.442695
        %v819 = vpow.pop %v818
        %v820 = vadd.f32 %v805, 1.0
        %v821 = vadd.f32 %v807, 1.0
        %v822 = vadd.f32 %v809, 1.0
        %v823 = vadd.f32 %v811, 1.0
        %v824 = vadd.f32 %v813, 1.0
        %v825 = vadd.f32 %v815, 1.0
        %v826 = vadd.f32 %v817, 1.0
        %v827 = vadd.f32 %v819, 1.0
        %v828 = vrcp.pop %v820
        %v829 = vmul.f32 1.0, %v828
        %v830 = vrcp.pop %v821
        %v831 = vmul.f32 1.0, %v830
        %v832 = vrcp.pop %v822
        %v833 = vmul.f32 1.0, %v832
        %v834 = vrcp.pop %v823
        %v835 = vmul.f32 1.0, %v834
        %v836 = vrcp.pop %v824
        %v837 = vmul.f32 1.0, %v836
        %v838 = vrcp.pop %v825
        %v839 = vmul.f32 1.0, %v838
        %v840 = vrcp.pop %v826
        %v841 = vmul.f32 1.0, %v840
        %v842 = vrcp.pop %v827
        %v843 = vmul.f32 1.0, %v842
        %845 = vset.pattern.permute.xlu0 0
        %846 = vperm.xlu0 %845, %v829
        %v847 = vpop.permute.xlu0 %846
        %850 = vset.pattern.permute.xlu0 0
        %851 = vperm.xlu0 %850, %v831
        %v852 = vpop.permute.xlu0 %851
        %855 = vset.pattern.permute.xlu0 0
        %856 = vperm.xlu0 %855, %v833
        %v857 = vpop.permute.xlu0 %856
        %860 = vset.pattern.permute.xlu0 0
        %861 = vperm.xlu0 %860, %v835
        %v862 = vpop.permute.xlu0 %861
        %865 = vset.pattern.permute.xlu0 0
        %866 = vperm.xlu0 %865, %v837
        %v867 = vpop.permute.xlu0 %866
        %870 = vset.pattern.permute.xlu0 0
        %871 = vperm.xlu0 %870, %v839
        %v872 = vpop.permute.xlu0 %871
        %875 = vset.pattern.permute.xlu0 0
        %876 = vperm.xlu0 %875, %v841
        %v877 = vpop.permute.xlu0 %876
        %880 = vset.pattern.permute.xlu0 0
        %881 = vperm.xlu0 %880, %v843
        %v882 = vpop.permute.xlu0 %881
        %v884 = vmul.f32 %v239, %v847
        %v885 = vmul.f32 %v240, %v847
        %v886 = vmul.f32 %v241, %v852
        %v887 = vmul.f32 %v242, %v852
        %v888 = vmul.f32 %v243, %v857
        %v889 = vmul.f32 %v244, %v857
        %v890 = vmul.f32 %v245, %v862
        %v891 = vmul.f32 %v246, %v862
        %v892 = vmul.f32 %v247, %v867
        %v893 = vmul.f32 %v248, %v867
        %v894 = vmul.f32 %v249, %v872
        %v895 = vmul.f32 %v250, %v872
        %v896 = vmul.f32 %v251, %v877
        %v897 = vmul.f32 %v252, %v877
        %v898 = vmul.f32 %v253, %v882
        %v899 = vmul.f32 %v254, %v882
        %v900 = vadd.f32 %v884, %v886
        %v901 = vadd.f32 %v900, %v888
        %v902 = vadd.f32 %v901, %v890
        %v903 = vadd.f32 %v902, %v892
        %v904 = vadd.f32 %v903, %v894
        %v905 = vadd.f32 %v904, %v896
        %v906 = vadd.f32 %v905, %v898
        %v907 = vrot.slane %v906, 4
        %v908 = vadd.f32 %v906, %v907
        %v909 = vrot.slane %v908, 2
        %v910 = vadd.f32 %v908, %v909
        %v911 = vrot.slane %v910, 1
        %v912 = vadd.f32 %v910, %v911
        %v913 = vadd.f32 %v885, %v887
        %v914 = vadd.f32 %v913, %v889
        %v915 = vadd.f32 %v914, %v891
        %v916 = vadd.f32 %v915, %v893
        %v917 = vadd.f32 %v916, %v895
        %v918 = vadd.f32 %v917, %v897
        %v919 = vadd.f32 %v918, %v899
        %v920 = vrot.slane %v919, 4
        %v921 = vadd.f32 %v919, %v920
        %v922 = vrot.slane %v921, 2
        %v923 = vadd.f32 %v921, %v922
        %v924 = vrot.slane %v923, 1
        %v925 = vadd.f32 %v923, %v924
        %v926 = vrcp.pop 64.0
        %v927 = vmul.f32 %v912, %v926
        %v928 = vmul.f32 %v925, %v926
        %v929 = vmax.f32 %v884, %v888
        %v930 = vmax.f32 %v886, %v890
        %v931 = vmax.f32 %v929, %v892
        %v932 = vmax.f32 %v930, %v894
        %v933 = vmax.f32 %v931, %v896
        %v934 = vmax.f32 %v932, %v898
        %v935 = vmax.f32 %v933, %v934
        %v936 = vrot.slane %v935, 4
        %v937 = vmax.f32 %v935, %v936
        %v938 = vrot.slane %v937, 2
        %v939 = vmax.f32 %v937, %v938
        %v940 = vrot.slane %v939, 1
        %v941 = vmax.f32 %v939, %v940
        %v942 = vmax.f32 %v885, %v889
        %v943 = vmax.f32 %v887, %v891
        %v944 = vmax.f32 %v942, %v893
        %v945 = vmax.f32 %v943, %v895
        %v946 = vmax.f32 %v944, %v897
        %v947 = vmax.f32 %v945, %v899
        %v948 = vmax.f32 %v946, %v947
        %v949 = vrot.slane %v948, 4
        %v950 = vmax.f32 %v948, %v949
        %v951 = vrot.slane %v950, 2
        %v952 = vmax.f32 %v950, %v951
        %v953 = vrot.slane %v952, 1
        %v954 = vmax.f32 %v952, %v953
        %v955 = vld [vmem:[%s3] sm:$0xf]
        %vm956 = vcmp.ge.s32.totalorder %v955, 3
        %vm957 = vcmp.lt.s32.totalorder %v955, 19
        %vm958 = vmand %vm956, %vm957
        %vm959 = vcmp.ge.s32.totalorder %v955, 2
        %vm960 = vcmp.lt.s32.totalorder %v955, 18
        %vm961 = vmand %vm959, %vm960
        %vm962 = vcmp.ge.s32.totalorder %v955, 1
        %vm963 = vcmp.lt.s32.totalorder %v955, 17
        %vm964 = vmand %vm962, %vm963
        %vm965 = vcmp.ge.s32.totalorder %v955, 0
        %vm966 = vcmp.lt.s32.totalorder %v955, 16
        %vm967 = vmand %vm965, %vm966
        %vm968 = vcmp.ge.s32.totalorder %v955, 4294967295
        %vm969 = vcmp.lt.s32.totalorder %v955, 15
        %vm970 = vmand %vm968, %vm969
        %vm971 = vcmp.ge.s32.totalorder %v955, 4294967294
        %vm972 = vcmp.lt.s32.totalorder %v955, 14
        %vm973 = vmand %vm971, %vm972
        %vm974 = vcmp.ge.s32.totalorder %v955, 4294967293
        %vm975 = vcmp.lt.s32.totalorder %v955, 13
        %vm976 = vmand %vm974, %vm975
        %977 = vrot.lane.b32.xlu0 %v927, 51
        %v978 = vpop.permute.xlu0 %977
        %979 = vrot.lane.b32.xlu0 %v928, 51
        %v980 = vpop.permute.xlu0 %979
        %v981 = vlaneseq
        %v982 = vand.u32 %v981, 127
        %vm983 = vcmp.lt.s32.totalorder %v982, 51
        %v984 = vsel %vm983, %v978, %v980
        %v985 = vsel %vm983, %v980, %v978
        %986 = vrot.lane.b32.xlu0 %v941, 51
        %v987 = vpop.permute.xlu0 %986
        %988 = vrot.lane.b32.xlu0 %v954, 51
        %v989 = vpop.permute.xlu0 %988
        %v990 = vsel %vm983, %v987, %v989
        %v991 = vsel %vm983, %v989, %v987
        %s992 = sld [smem:[#allocation2]]
        %s993 = sld [smem:[#allocation2 + $0x31]]
        %v994 = vstv %s992
        %v995 = vmul.f32 %v994, %v985
        %v996 = vmul.f32 %v994, %v984
        %v997 = vstv %s993
        %v998 = vmul.f32 %v997, %v991
        %v999 = vmul.f32 %v997, %v990
        %v1000 = vadd.f32 %v995, %v998
        %v1001 = vadd.f32 %v996, %v999
        %v1002 = vsel %vm958, 1, 0
        %v1003 = vrot.slane %v1002, 7
        %v1004 = vrot.slane %v1003, 2
        %vm1005 = vcmp.ne.s32.totalorder %v1004, 0
        %vm1006 = vmand %vm958, %vm1005
        %v1009 = vcombine.low %v1000, %v1001
        %v1011 = vunpack.c.l.s4 1983009808
        %v1012 = vunpack.c.0.s8 %v1011
        %v1013 = vlaneseq
        %v1014 = vshrl.u32 %v1013, 7
        %v1015 = vsub.s32 %v1012, %v1014
        %v1016 = vrot.slane %v1009, %v1015
        %v1018 = vsel %vm1006, %v1016, 0.0
        %v1019 = vadd.f32 %v1018, 0.0
        %1020 = vrot.lane.b32.xlu0 %v927, 50
        %v1021 = vpop.permute.xlu0 %1020
        %1022 = vrot.lane.b32.xlu0 %v928, 50
        %v1023 = vpop.permute.xlu0 %1022
        %vm1024 = vcmp.lt.s32.totalorder %v982, 50
        %v1025 = vsel %vm1024, %v1021, %v1023
        %v1026 = vsel %vm1024, %v1023, %v1021
        %1027 = vrot.lane.b32.xlu0 %v941, 50
        %v1028 = vpop.permute.xlu0 %1027
        %1029 = vrot.lane.b32.xlu0 %v954, 50
        %v1030 = vpop.permute.xlu0 %1029
        %v1031 = vsel %vm1024, %v1028, %v1030
        %v1032 = vsel %vm1024, %v1030, %v1028
        %s1033 = sld [smem:[#allocation2 + $0x1]]
        %s1034 = sld [smem:[#allocation2 + $0x32]]
        %v1035 = vstv %s1033
        %v1036 = vmul.f32 %v1035, %v1026
        %v1037 = vmul.f32 %v1035, %v1025
        %v1038 = vstv %s1034
        %v1039 = vmul.f32 %v1038, %v1032
        %v1040 = vmul.f32 %v1038, %v1031
        %v1041 = vadd.f32 %v1036, %v1039
        %v1042 = vadd.f32 %v1037, %v1040
        %v1043 = vsel %vm961, 1, 0
        %v1044 = vrot.slane %v1043, 7
        %v1045 = vrot.slane %v1044, 2
        %vm1046 = vcmp.ne.s32.totalorder %v1045, 0
        %vm1047 = vmand %vm958, %vm1046
        %v1050 = vcombine.low %v1041, %v1042
        %v1052 = vunpack.c.l.s4 1983009808
        %v1053 = vunpack.c.0.s8 %v1052
        %v1054 = vlaneseq
        %v1055 = vshrl.u32 %v1054, 7
        %v1056 = vsub.s32 %v1053, %v1055
        %v1057 = vrot.slane %v1050, %v1056
        %v1059 = vsel %vm1047, %v1057, 0.0
        %v1060 = vadd.f32 %v1019, %v1059
        %1061 = vrot.lane.b32.xlu0 %v927, 49
        %v1062 = vpop.permute.xlu0 %1061
        %1063 = vrot.lane.b32.xlu0 %v928, 49
        %v1064 = vpop.permute.xlu0 %1063
        %vm1065 = vcmp.lt.s32.totalorder %v982, 49
        %v1066 = vsel %vm1065, %v1062, %v1064
        %v1067 = vsel %vm1065, %v1064, %v1062
        %1068 = vrot.lane.b32.xlu0 %v941, 49
        %v1069 = vpop.permute.xlu0 %1068
        %1070 = vrot.lane.b32.xlu0 %v954, 49
        %v1071 = vpop.permute.xlu0 %1070
        %v1072 = vsel %vm1065, %v1069, %v1071
        %v1073 = vsel %vm1065, %v1071, %v1069
        %s1074 = sld [smem:[#allocation2 + $0x2]]
        %s1075 = sld [smem:[#allocation2 + $0x33]]
        %v1076 = vstv %s1074
        %v1077 = vmul.f32 %v1076, %v1067
        %v1078 = vmul.f32 %v1076, %v1066
        %v1079 = vstv %s1075
        %v1080 = vmul.f32 %v1079, %v1073
        %v1081 = vmul.f32 %v1079, %v1072
        %v1082 = vadd.f32 %v1077, %v1080
        %v1083 = vadd.f32 %v1078, %v1081
        %v1084 = vsel %vm964, 1, 0
        %v1085 = vrot.slane %v1084, 7
        %v1086 = vrot.slane %v1085, 2
        %vm1087 = vcmp.ne.s32.totalorder %v1086, 0
        %vm1088 = vmand %vm958, %vm1087
        %v1091 = vcombine.low %v1082, %v1083
        %v1093 = vunpack.c.l.s4 1983009808
        %v1094 = vunpack.c.0.s8 %v1093
        %v1095 = vlaneseq
        %v1096 = vshrl.u32 %v1095, 7
        %v1097 = vsub.s32 %v1094, %v1096
        %v1098 = vrot.slane %v1091, %v1097
        %v1100 = vsel %vm1088, %v1098, 0.0
        %v1101 = vadd.f32 %v1060, %v1100
        %1102 = vrot.lane.b32.xlu0 %v927, 48
        %v1103 = vpop.permute.xlu0 %1102
        %1104 = vrot.lane.b32.xlu0 %v928, 48
        %v1105 = vpop.permute.xlu0 %1104
        %vm1106 = vcmp.lt.s32.totalorder %v982, 48
        %v1107 = vsel %vm1106, %v1103, %v1105
        %v1108 = vsel %vm1106, %v1105, %v1103
        %1109 = vrot.lane.b32.xlu0 %v941, 48
        %v1110 = vpop.permute.xlu0 %1109
        %1111 = vrot.lane.b32.xlu0 %v954, 48
        %v1112 = vpop.permute.xlu0 %1111
        %v1113 = vsel %vm1106, %v1110, %v1112
        %v1114 = vsel %vm1106, %v1112, %v1110
        %s1115 = sld [smem:[#allocation2 + $0x3]]
        %s1116 = sld [smem:[#allocation2 + $0x34]]
        %v1117 = vstv %s1115
        %v1118 = vmul.f32 %v1117, %v1108
        %v1119 = vmul.f32 %v1117, %v1107
        %v1120 = vstv %s1116
        %v1121 = vmul.f32 %v1120, %v1114
        %v1122 = vmul.f32 %v1120, %v1113
        %v1123 = vadd.f32 %v1118, %v1121
        %v1124 = vadd.f32 %v1119, %v1122
        %v1125 = vsel %vm967, 1, 0
        %v1126 = vrot.slane %v1125, 7
        %v1127 = vrot.slane %v1126, 2
        %vm1128 = vcmp.ne.s32.totalorder %v1127, 0
        %vm1129 = vmand %vm958, %vm1128
        %v1132 = vcombine.low %v1123, %v1124
        %v1134 = vunpack.c.l.s4 1983009808
        %v1135 = vunpack.c.0.s8 %v1134
        %v1136 = vlaneseq
        %v1137 = vshrl.u32 %v1136, 7
        %v1138 = vsub.s32 %v1135, %v1137
        %v1139 = vrot.slane %v1132, %v1138
        %v1141 = vsel %vm1129, %v1139, 0.0
        %v1142 = vadd.f32 %v1101, %v1141
        %1143 = vrot.lane.b32.xlu0 %v927, 47
        %v1144 = vpop.permute.xlu0 %1143
        %1145 = vrot.lane.b32.xlu0 %v928, 47
        %v1146 = vpop.permute.xlu0 %1145
        %vm1147 = vcmp.lt.s32.totalorder %v982, 47
        %v1148 = vsel %vm1147, %v1144, %v1146
        %v1149 = vsel %vm1147, %v1146, %v1144
        %1150 = vrot.lane.b32.xlu0 %v941, 47
        %v1151 = vpop.permute.xlu0 %1150
        %1152 = vrot.lane.b32.xlu0 %v954, 47
        %v1153 = vpop.permute.xlu0 %1152
        %v1154 = vsel %vm1147, %v1151, %v1153
        %v1155 = vsel %vm1147, %v1153, %v1151
        %s1156 = sld [smem:[#allocation2 + $0x4]]
        %s1157 = sld [smem:[#allocation2 + $0x35]]
        %v1158 = vstv %s1156
        %v1159 = vmul.f32 %v1158, %v1149
        %v1160 = vmul.f32 %v1158, %v1148
        %v1161 = vstv %s1157
        %v1162 = vmul.f32 %v1161, %v1155
        %v1163 = vmul.f32 %v1161, %v1154
        %v1164 = vadd.f32 %v1159, %v1162
        %v1165 = vadd.f32 %v1160, %v1163
        %v1166 = vsel %vm970, 1, 0
        %v1167 = vrot.slane %v1166, 7
        %v1168 = vrot.slane %v1167, 2
        %vm1169 = vcmp.ne.s32.totalorder %v1168, 0
        %vm1170 = vmand %vm958, %vm1169
        %v1173 = vcombine.low %v1164, %v1165
        %v1175 = vunpack.c.l.s4 1983009808
        %v1176 = vunpack.c.0.s8 %v1175
        %v1177 = vlaneseq
        %v1178 = vshrl.u32 %v1177, 7
        %v1179 = vsub.s32 %v1176, %v1178
        %v1180 = vrot.slane %v1173, %v1179
        %v1182 = vsel %vm1170, %v1180, 0.0
        %v1183 = vadd.f32 %v1142, %v1182
        %1184 = vrot.lane.b32.xlu0 %v927, 46
        %v1185 = vpop.permute.xlu0 %1184
        %1186 = vrot.lane.b32.xlu0 %v928, 46
        %v1187 = vpop.permute.xlu0 %1186
        %vm1188 = vcmp.lt.s32.totalorder %v982, 46
        %v1189 = vsel %vm1188, %v1185, %v1187
        %v1190 = vsel %vm1188, %v1187, %v1185
        %1191 = vrot.lane.b32.xlu0 %v941, 46
        %v1192 = vpop.permute.xlu0 %1191
        %1193 = vrot.lane.b32.xlu0 %v954, 46
        %v1194 = vpop.permute.xlu0 %1193
        %v1195 = vsel %vm1188, %v1192, %v1194
        %v1196 = vsel %vm1188, %v1194, %v1192
        %s1197 = sld [smem:[#allocation2 + $0x5]]
        %s1198 = sld [smem:[#allocation2 + $0x36]]
        %v1199 = vstv %s1197
        %v1200 = vmul.f32 %v1199, %v1190
        %v1201 = vmul.f32 %v1199, %v1189
        %v1202 = vstv %s1198
        %v1203 = vmul.f32 %v1202, %v1196
        %v1204 = vmul.f32 %v1202, %v1195
        %v1205 = vadd.f32 %v1200, %v1203
        %v1206 = vadd.f32 %v1201, %v1204
        %v1207 = vsel %vm973, 1, 0
        %v1208 = vrot.slane %v1207, 7
        %v1209 = vrot.slane %v1208, 2
        %vm1210 = vcmp.ne.s32.totalorder %v1209, 0
        %vm1211 = vmand %vm958, %vm1210
        %v1214 = vcombine.low %v1205, %v1206
        %v1216 = vunpack.c.l.s4 1983009808
        %v1217 = vunpack.c.0.s8 %v1216
        %v1218 = vlaneseq
        %v1219 = vshrl.u32 %v1218, 7
        %v1220 = vsub.s32 %v1217, %v1219
        %v1221 = vrot.slane %v1214, %v1220
        %v1223 = vsel %vm1211, %v1221, 0.0
        %v1224 = vadd.f32 %v1183, %v1223
        %1225 = vrot.lane.b32.xlu0 %v927, 45
        %v1226 = vpop.permute.xlu0 %1225
        %1227 = vrot.lane.b32.xlu0 %v928, 45
        %v1228 = vpop.permute.xlu0 %1227
        %vm1229 = vcmp.lt.s32.totalorder %v982, 45
        %v1230 = vsel %vm1229, %v1226, %v1228
        %v1231 = vsel %vm1229, %v1228, %v1226
        %1232 = vrot.lane.b32.xlu0 %v941, 45
        %v1233 = vpop.permute.xlu0 %1232
        %1234 = vrot.lane.b32.xlu0 %v954, 45
        %v1235 = vpop.permute.xlu0 %1234
        %v1236 = vsel %vm1229, %v1233, %v1235
        %v1237 = vsel %vm1229, %v1235, %v1233
        %s1238 = sld [smem:[#allocation2 + $0x6]]
        %s1239 = sld [smem:[#allocation2 + $0x37]]
        %v1240 = vstv %s1238
        %v1241 = vmul.f32 %v1240, %v1231
        %v1242 = vmul.f32 %v1240, %v1230
        %v1243 = vstv %s1239
        %v1244 = vmul.f32 %v1243, %v1237
        %v1245 = vmul.f32 %v1243, %v1236
        %v1246 = vadd.f32 %v1241, %v1244
        %v1247 = vadd.f32 %v1242, %v1245
        %v1248 = vsel %vm976, 1, 0
        %v1249 = vrot.slane %v1248, 7
        %v1250 = vrot.slane %v1249, 2
        %vm1251 = vcmp.ne.s32.totalorder %v1250, 0
        %vm1252 = vmand %vm958, %vm1251
        %v1255 = vcombine.low %v1246, %v1247
        %v1257 = vunpack.c.l.s4 1983009808
        %v1258 = vunpack.c.0.s8 %v1257
        %v1259 = vlaneseq
        %v1260 = vshrl.u32 %v1259, 7
        %v1261 = vsub.s32 %v1258, %v1260
        %v1262 = vrot.slane %v1255, %v1261
        %v1264 = vsel %vm1252, %v1262, 0.0
        %v1265 = vadd.f32 %v1224, %v1264
        %1266 = vrot.lane.b32.xlu0 %v927, 35
        %v1267 = vpop.permute.xlu0 %1266
        %1268 = vrot.lane.b32.xlu0 %v928, 35
        %v1269 = vpop.permute.xlu0 %1268
        %vm1270 = vcmp.lt.s32.totalorder %v982, 35
        %v1271 = vsel %vm1270, %v1267, %v1269
        %v1272 = vsel %vm1270, %v1269, %v1267
        %1273 = vrot.lane.b32.xlu0 %v941, 35
        %v1274 = vpop.permute.xlu0 %1273
        %1275 = vrot.lane.b32.xlu0 %v954, 35
        %v1276 = vpop.permute.xlu0 %1275
        %v1277 = vsel %vm1270, %v1274, %v1276
        %v1278 = vsel %vm1270, %v1276, %v1274
        %s1279 = sld [smem:[#allocation2 + $0x7]]
        %s1280 = sld [smem:[#allocation2 + $0x38]]
        %v1281 = vstv %s1279
        %v1282 = vmul.f32 %v1281, %v1272
        %v1283 = vmul.f32 %v1281, %v1271
        %v1284 = vstv %s1280
        %v1285 = vmul.f32 %v1284, %v1278
        %v1286 = vmul.f32 %v1284, %v1277
        %v1287 = vadd.f32 %v1282, %v1285
        %v1288 = vadd.f32 %v1283, %v1286
        %vm1289 = vmand %vm961, %vm1005
        %v1292 = vcombine.low %v1287, %v1288
        %v1294 = vunpack.c.l.s4 1983009808
        %v1295 = vunpack.c.0.s8 %v1294
        %v1296 = vlaneseq
        %v1297 = vshrl.u32 %v1296, 7
        %v1298 = vsub.s32 %v1295, %v1297
        %v1299 = vrot.slane %v1292, %v1298
        %v1301 = vsel %vm1289, %v1299, 0.0
        %v1302 = vadd.f32 %v1265, %v1301
        %1303 = vrot.lane.b32.xlu0 %v927, 34
        %v1304 = vpop.permute.xlu0 %1303
        %1305 = vrot.lane.b32.xlu0 %v928, 34
        %v1306 = vpop.permute.xlu0 %1305
        %vm1307 = vcmp.lt.s32.totalorder %v982, 34
        %v1308 = vsel %vm1307, %v1304, %v1306
        %v1309 = vsel %vm1307, %v1306, %v1304
        %1310 = vrot.lane.b32.xlu0 %v941, 34
        %v1311 = vpop.permute.xlu0 %1310
        %1312 = vrot.lane.b32.xlu0 %v954, 34
        %v1313 = vpop.permute.xlu0 %1312
        %v1314 = vsel %vm1307, %v1311, %v1313
        %v1315 = vsel %vm1307, %v1313, %v1311
        %s1316 = sld [smem:[#allocation2 + $0x8]]
        %s1317 = sld [smem:[#allocation2 + $0x39]]
        %v1318 = vstv %s1316
        %v1319 = vmul.f32 %v1318, %v1309
        %v1320 = vmul.f32 %v1318, %v1308
        %v1321 = vstv %s1317
        %v1322 = vmul.f32 %v1321, %v1315
        %v1323 = vmul.f32 %v1321, %v1314
        %v1324 = vadd.f32 %v1319, %v1322
        %v1325 = vadd.f32 %v1320, %v1323
        %vm1326 = vmand %vm961, %vm1046
        %v1329 = vcombine.low %v1324, %v1325
        %v1331 = vunpack.c.l.s4 1983009808
        %v1332 = vunpack.c.0.s8 %v1331
        %v1333 = vlaneseq
        %v1334 = vshrl.u32 %v1333, 7
        %v1335 = vsub.s32 %v1332, %v1334
        %v1336 = vrot.slane %v1329, %v1335
        %v1338 = vsel %vm1326, %v1336, 0.0
        %v1339 = vadd.f32 %v1302, %v1338
        %1340 = vrot.lane.b32.xlu0 %v927, 33
        %v1341 = vpop.permute.xlu0 %1340
        %1342 = vrot.lane.b32.xlu0 %v928, 33
        %v1343 = vpop.permute.xlu0 %1342
        %vm1344 = vcmp.lt.s32.totalorder %v982, 33
        %v1345 = vsel %vm1344, %v1341, %v1343
        %v1346 = vsel %vm1344, %v1343, %v1341
        %1347 = vrot.lane.b32.xlu0 %v941, 33
        %v1348 = vpop.permute.xlu0 %1347
        %1349 = vrot.lane.b32.xlu0 %v954, 33
        %v1350 = vpop.permute.xlu0 %1349
        %v1351 = vsel %vm1344, %v1348, %v1350
        %v1352 = vsel %vm1344, %v1350, %v1348
        %s1353 = sld [smem:[#allocation2 + $0x9]]
        %s1354 = sld [smem:[#allocation2 + $0x3a]]
        %v1355 = vstv %s1353
        %v1356 = vmul.f32 %v1355, %v1346
        %v1357 = vmul.f32 %v1355, %v1345
        %v1358 = vstv %s1354
        %v1359 = vmul.f32 %v1358, %v1352
        %v1360 = vmul.f32 %v1358, %v1351
        %v1361 = vadd.f32 %v1356, %v1359
        %v1362 = vadd.f32 %v1357, %v1360
        %vm1363 = vmand %vm961, %vm1087
        %v1366 = vcombine.low %v1361, %v1362
        %v1368 = vunpack.c.l.s4 1983009808
        %v1369 = vunpack.c.0.s8 %v1368
        %v1370 = vlaneseq
        %v1371 = vshrl.u32 %v1370, 7
        %v1372 = vsub.s32 %v1369, %v1371
        %v1373 = vrot.slane %v1366, %v1372
        %v1375 = vsel %vm1363, %v1373, 0.0
        %v1376 = vadd.f32 %v1339, %v1375
        %1377 = vrot.lane.b32.xlu0 %v927, 32
        %v1378 = vpop.permute.xlu0 %1377
        %1379 = vrot.lane.b32.xlu0 %v928, 32
        %v1380 = vpop.permute.xlu0 %1379
        %vm1381 = vcmp.lt.s32.totalorder %v982, 32
        %v1382 = vsel %vm1381, %v1378, %v1380
        %v1383 = vsel %vm1381, %v1380, %v1378
        %1384 = vrot.lane.b32.xlu0 %v941, 32
        %v1385 = vpop.permute.xlu0 %1384
        %1386 = vrot.lane.b32.xlu0 %v954, 32
        %v1387 = vpop.permute.xlu0 %1386
        %v1388 = vsel %vm1381, %v1385, %v1387
        %v1389 = vsel %vm1381, %v1387, %v1385
        %s1390 = sld [smem:[#allocation2 + $0xa]]
        %s1391 = sld [smem:[#allocation2 + $0x3b]]
        %v1392 = vstv %s1390
        %v1393 = vmul.f32 %v1392, %v1383
        %v1394 = vmul.f32 %v1392, %v1382
        %v1395 = vstv %s1391
        %v1396 = vmul.f32 %v1395, %v1389
        %v1397 = vmul.f32 %v1395, %v1388
        %v1398 = vadd.f32 %v1393, %v1396
        %v1399 = vadd.f32 %v1394, %v1397
        %vm1400 = vmand %vm961, %vm1128
        %v1403 = vcombine.low %v1398, %v1399
        %v1405 = vunpack.c.l.s4 1983009808
        %v1406 = vunpack.c.0.s8 %v1405
        %v1407 = vlaneseq
        %v1408 = vshrl.u32 %v1407, 7
        %v1409 = vsub.s32 %v1406, %v1408
        %v1410 = vrot.slane %v1403, %v1409
        %v1412 = vsel %vm1400, %v1410, 0.0
        %v1413 = vadd.f32 %v1376, %v1412
        %1414 = vrot.lane.b32.xlu0 %v927, 31
        %v1415 = vpop.permute.xlu0 %1414
        %1416 = vrot.lane.b32.xlu0 %v928, 31
        %v1417 = vpop.permute.xlu0 %1416
        %vm1418 = vcmp.lt.s32.totalorder %v982, 31
        %v1419 = vsel %vm1418, %v1415, %v1417
        %v1420 = vsel %vm1418, %v1417, %v1415
        %1421 = vrot.lane.b32.xlu0 %v941, 31
        %v1422 = vpop.permute.xlu0 %1421
        %1423 = vrot.lane.b32.xlu0 %v954, 31
        %v1424 = vpop.permute.xlu0 %1423
        %v1425 = vsel %vm1418, %v1422, %v1424
        %v1426 = vsel %vm1418, %v1424, %v1422
        %s1427 = sld [smem:[#allocation2 + $0xb]]
        %s1428 = sld [smem:[#allocation2 + $0x3c]]
        %v1429 = vstv %s1427
        %v1430 = vmul.f32 %v1429, %v1420
        %v1431 = vmul.f32 %v1429, %v1419
        %v1432 = vstv %s1428
        %v1433 = vmul.f32 %v1432, %v1426
        %v1434 = vmul.f32 %v1432, %v1425
        %v1435 = vadd.f32 %v1430, %v1433
        %v1436 = vadd.f32 %v1431, %v1434
        %vm1437 = vmand %vm961, %vm1169
        %v1440 = vcombine.low %v1435, %v1436
        %v1442 = vunpack.c.l.s4 1983009808
        %v1443 = vunpack.c.0.s8 %v1442
        %v1444 = vlaneseq
        %v1445 = vshrl.u32 %v1444, 7
        %v1446 = vsub.s32 %v1443, %v1445
        %v1447 = vrot.slane %v1440, %v1446
        %v1449 = vsel %vm1437, %v1447, 0.0
        %v1450 = vadd.f32 %v1413, %v1449
        %1451 = vrot.lane.b32.xlu0 %v927, 30
        %v1452 = vpop.permute.xlu0 %1451
        %1453 = vrot.lane.b32.xlu0 %v928, 30
        %v1454 = vpop.permute.xlu0 %1453
        %vm1455 = vcmp.lt.s32.totalorder %v982, 30
        %v1456 = vsel %vm1455, %v1452, %v1454
        %v1457 = vsel %vm1455, %v1454, %v1452
        %1458 = vrot.lane.b32.xlu0 %v941, 30
        %v1459 = vpop.permute.xlu0 %1458
        %1460 = vrot.lane.b32.xlu0 %v954, 30
        %v1461 = vpop.permute.xlu0 %1460
        %v1462 = vsel %vm1455, %v1459, %v1461
        %v1463 = vsel %vm1455, %v1461, %v1459
        %s1464 = sld [smem:[#allocation2 + $0xc]]
        %s1465 = sld [smem:[#allocation2 + $0x3d]]
        %v1466 = vstv %s1464
        %v1467 = vmul.f32 %v1466, %v1457
        %v1468 = vmul.f32 %v1466, %v1456
        %v1469 = vstv %s1465
        %v1470 = vmul.f32 %v1469, %v1463
        %v1471 = vmul.f32 %v1469, %v1462
        %v1472 = vadd.f32 %v1467, %v1470
        %v1473 = vadd.f32 %v1468, %v1471
        %vm1474 = vmand %vm961, %vm1210
        %v1477 = vcombine.low %v1472, %v1473
        %v1479 = vunpack.c.l.s4 1983009808
        %v1480 = vunpack.c.0.s8 %v1479
        %v1481 = vlaneseq
        %v1482 = vshrl.u32 %v1481, 7
        %v1483 = vsub.s32 %v1480, %v1482
        %v1484 = vrot.slane %v1477, %v1483
        %v1486 = vsel %vm1474, %v1484, 0.0
        %v1487 = vadd.f32 %v1450, %v1486
        %1488 = vrot.lane.b32.xlu0 %v927, 29
        %v1489 = vpop.permute.xlu0 %1488
        %1490 = vrot.lane.b32.xlu0 %v928, 29
        %v1491 = vpop.permute.xlu0 %1490
        %vm1492 = vcmp.lt.s32.totalorder %v982, 29
        %v1493 = vsel %vm1492, %v1489, %v1491
        %v1494 = vsel %vm1492, %v1491, %v1489
        %1495 = vrot.lane.b32.xlu0 %v941, 29
        %v1496 = vpop.permute.xlu0 %1495
        %1497 = vrot.lane.b32.xlu0 %v954, 29
        %v1498 = vpop.permute.xlu0 %1497
        %v1499 = vsel %vm1492, %v1496, %v1498
        %v1500 = vsel %vm1492, %v1498, %v1496
        %s1501 = sld [smem:[#allocation2 + $0xd]]
        %s1502 = sld [smem:[#allocation2 + $0x3e]]
        %v1503 = vstv %s1501
        %v1504 = vmul.f32 %v1503, %v1494
        %v1505 = vmul.f32 %v1503, %v1493
        %v1506 = vstv %s1502
        %v1507 = vmul.f32 %v1506, %v1500
        %v1508 = vmul.f32 %v1506, %v1499
        %v1509 = vadd.f32 %v1504, %v1507
        %v1510 = vadd.f32 %v1505, %v1508
        %vm1511 = vmand %vm961, %vm1251
        %v1514 = vcombine.low %v1509, %v1510
        %v1516 = vunpack.c.l.s4 1983009808
        %v1517 = vunpack.c.0.s8 %v1516
        %v1518 = vlaneseq
        %v1519 = vshrl.u32 %v1518, 7
        %v1520 = vsub.s32 %v1517, %v1519
        %v1521 = vrot.slane %v1514, %v1520
        %v1523 = vsel %vm1511, %v1521, 0.0
        %v1524 = vadd.f32 %v1487, %v1523
        %1525 = vrot.lane.b32.xlu0 %v927, 19
        %v1526 = vpop.permute.xlu0 %1525
        %1527 = vrot.lane.b32.xlu0 %v928, 19
        %v1528 = vpop.permute.xlu0 %1527
        %vm1529 = vcmp.lt.s32.totalorder %v982, 19
        %v1530 = vsel %vm1529, %v1526, %v1528
        %v1531 = vsel %vm1529, %v1528, %v1526
        %1532 = vrot.lane.b32.xlu0 %v941, 19
        %v1533 = vpop.permute.xlu0 %1532
        %1534 = vrot.lane.b32.xlu0 %v954, 19
        %v1535 = vpop.permute.xlu0 %1534
        %v1536 = vsel %vm1529, %v1533, %v1535
        %v1537 = vsel %vm1529, %v1535, %v1533
        %s1538 = sld [smem:[#allocation2 + $0xe]]
        %s1539 = sld [smem:[#allocation2 + $0x3f]]
        %v1540 = vstv %s1538
        %v1541 = vmul.f32 %v1540, %v1531
        %v1542 = vmul.f32 %v1540, %v1530
        %v1543 = vstv %s1539
        %v1544 = vmul.f32 %v1543, %v1537
        %v1545 = vmul.f32 %v1543, %v1536
        %v1546 = vadd.f32 %v1541, %v1544
        %v1547 = vadd.f32 %v1542, %v1545
        %vm1548 = vmand %vm964, %vm1005
        %v1551 = vcombine.low %v1546, %v1547
        %v1553 = vunpack.c.l.s4 1983009808
        %v1554 = vunpack.c.0.s8 %v1553
        %v1555 = vlaneseq
        %v1556 = vshrl.u32 %v1555, 7
        %v1557 = vsub.s32 %v1554, %v1556
        %v1558 = vrot.slane %v1551, %v1557
        %v1560 = vsel %vm1548, %v1558, 0.0
        %v1561 = vadd.f32 %v1524, %v1560
        %1562 = vrot.lane.b32.xlu0 %v927, 18
        %v1563 = vpop.permute.xlu0 %1562
        %1564 = vrot.lane.b32.xlu0 %v928, 18
        %v1565 = vpop.permute.xlu0 %1564
        %vm1566 = vcmp.lt.s32.totalorder %v982, 18
        %v1567 = vsel %vm1566, %v1563, %v1565
        %v1568 = vsel %vm1566, %v1565, %v1563
        %1569 = vrot.lane.b32.xlu0 %v941, 18
        %v1570 = vpop.permute.xlu0 %1569
        %1571 = vrot.lane.b32.xlu0 %v954, 18
        %v1572 = vpop.permute.xlu0 %1571
        %v1573 = vsel %vm1566, %v1570, %v1572
        %v1574 = vsel %vm1566, %v1572, %v1570
        %s1575 = sld [smem:[#allocation2 + $0xf]]
        %s1576 = sld [smem:[#allocation2 + $0x40]]
        %v1577 = vstv %s1575
        %v1578 = vmul.f32 %v1577, %v1568
        %v1579 = vmul.f32 %v1577, %v1567
        %v1580 = vstv %s1576
        %v1581 = vmul.f32 %v1580, %v1574
        %v1582 = vmul.f32 %v1580, %v1573
        %v1583 = vadd.f32 %v1578, %v1581
        %v1584 = vadd.f32 %v1579, %v1582
        %vm1585 = vmand %vm964, %vm1046
        %v1588 = vcombine.low %v1583, %v1584
        %v1590 = vunpack.c.l.s4 1983009808
        %v1591 = vunpack.c.0.s8 %v1590
        %v1592 = vlaneseq
        %v1593 = vshrl.u32 %v1592, 7
        %v1594 = vsub.s32 %v1591, %v1593
        %v1595 = vrot.slane %v1588, %v1594
        %v1597 = vsel %vm1585, %v1595, 0.0
        %v1598 = vadd.f32 %v1561, %v1597
        %1599 = vrot.lane.b32.xlu0 %v927, 17
        %v1600 = vpop.permute.xlu0 %1599
        %1601 = vrot.lane.b32.xlu0 %v928, 17
        %v1602 = vpop.permute.xlu0 %1601
        %vm1603 = vcmp.lt.s32.totalorder %v982, 17
        %v1604 = vsel %vm1603, %v1600, %v1602
        %v1605 = vsel %vm1603, %v1602, %v1600
        %1606 = vrot.lane.b32.xlu0 %v941, 17
        %v1607 = vpop.permute.xlu0 %1606
        %1608 = vrot.lane.b32.xlu0 %v954, 17
        %v1609 = vpop.permute.xlu0 %1608
        %v1610 = vsel %vm1603, %v1607, %v1609
        %v1611 = vsel %vm1603, %v1609, %v1607
        %s1612 = sld [smem:[#allocation2 + $0x10]]
        %s1613 = sld [smem:[#allocation2 + $0x41]]
        %v1614 = vstv %s1612
        %v1615 = vmul.f32 %v1614, %v1605
        %v1616 = vmul.f32 %v1614, %v1604
        %v1617 = vstv %s1613
        %v1618 = vmul.f32 %v1617, %v1611
        %v1619 = vmul.f32 %v1617, %v1610
        %v1620 = vadd.f32 %v1615, %v1618
        %v1621 = vadd.f32 %v1616, %v1619
        %vm1622 = vmand %vm964, %vm1087
        %v1625 = vcombine.low %v1620, %v1621
        %v1627 = vunpack.c.l.s4 1983009808
        %v1628 = vunpack.c.0.s8 %v1627
        %v1629 = vlaneseq
        %v1630 = vshrl.u32 %v1629, 7
        %v1631 = vsub.s32 %v1628, %v1630
        %v1632 = vrot.slane %v1625, %v1631
        %v1634 = vsel %vm1622, %v1632, 0.0
        %v1635 = vadd.f32 %v1598, %v1634
        %1636 = vrot.lane.b32.xlu0 %v927, 16
        %v1637 = vpop.permute.xlu0 %1636
        %1638 = vrot.lane.b32.xlu0 %v928, 16
        %v1639 = vpop.permute.xlu0 %1638
        %vm1640 = vcmp.lt.s32.totalorder %v982, 16
        %v1641 = vsel %vm1640, %v1637, %v1639
        %v1642 = vsel %vm1640, %v1639, %v1637
        %1643 = vrot.lane.b32.xlu0 %v941, 16
        %v1644 = vpop.permute.xlu0 %1643
        %1645 = vrot.lane.b32.xlu0 %v954, 16
        %v1646 = vpop.permute.xlu0 %1645
        %v1647 = vsel %vm1640, %v1644, %v1646
        %v1648 = vsel %vm1640, %v1646, %v1644
        %s1649 = sld [smem:[#allocation2 + $0x11]]
        %s1650 = sld [smem:[#allocation2 + $0x42]]
        %v1651 = vstv %s1649
        %v1652 = vmul.f32 %v1651, %v1642
        %v1653 = vmul.f32 %v1651, %v1641
        %v1654 = vstv %s1650
        %v1655 = vmul.f32 %v1654, %v1648
        %v1656 = vmul.f32 %v1654, %v1647
        %v1657 = vadd.f32 %v1652, %v1655
        %v1658 = vadd.f32 %v1653, %v1656
        %vm1659 = vmand %vm964, %vm1128
        %v1662 = vcombine.low %v1657, %v1658
        %v1664 = vunpack.c.l.s4 1983009808
        %v1665 = vunpack.c.0.s8 %v1664
        %v1666 = vlaneseq
        %v1667 = vshrl.u32 %v1666, 7
        %v1668 = vsub.s32 %v1665, %v1667
        %v1669 = vrot.slane %v1662, %v1668
        %v1671 = vsel %vm1659, %v1669, 0.0
        %v1672 = vadd.f32 %v1635, %v1671
        %1673 = vrot.lane.b32.xlu0 %v927, 15
        %v1674 = vpop.permute.xlu0 %1673
        %1675 = vrot.lane.b32.xlu0 %v928, 15
        %v1676 = vpop.permute.xlu0 %1675
        %vm1677 = vcmp.lt.s32.totalorder %v982, 15
        %v1678 = vsel %vm1677, %v1674, %v1676
        %v1679 = vsel %vm1677, %v1676, %v1674
        %1680 = vrot.lane.b32.xlu0 %v941, 15
        %v1681 = vpop.permute.xlu0 %1680
        %1682 = vrot.lane.b32.xlu0 %v954, 15
        %v1683 = vpop.permute.xlu0 %1682
        %v1684 = vsel %vm1677, %v1681, %v1683
        %v1685 = vsel %vm1677, %v1683, %v1681
        %s1686 = sld [smem:[#allocation2 + $0x12]]
        %s1687 = sld [smem:[#allocation2 + $0x43]]
        %v1688 = vstv %s1686
        %v1689 = vmul.f32 %v1688, %v1679
        %v1690 = vmul.f32 %v1688, %v1678
        %v1691 = vstv %s1687
        %v1692 = vmul.f32 %v1691, %v1685
        %v1693 = vmul.f32 %v1691, %v1684
        %v1694 = vadd.f32 %v1689, %v1692
        %v1695 = vadd.f32 %v1690, %v1693
        %vm1696 = vmand %vm964, %vm1169
        %v1699 = vcombine.low %v1694, %v1695
        %v1701 = vunpack.c.l.s4 1983009808
        %v1702 = vunpack.c.0.s8 %v1701
        %v1703 = vlaneseq
        %v1704 = vshrl.u32 %v1703, 7
        %v1705 = vsub.s32 %v1702, %v1704
        %v1706 = vrot.slane %v1699, %v1705
        %v1708 = vsel %vm1696, %v1706, 0.0
        %v1709 = vadd.f32 %v1672, %v1708
        %1710 = vrot.lane.b32.xlu0 %v927, 14
        %v1711 = vpop.permute.xlu0 %1710
        %1712 = vrot.lane.b32.xlu0 %v928, 14
        %v1713 = vpop.permute.xlu0 %1712
        %vm1714 = vcmp.lt.s32.totalorder %v982, 14
        %v1715 = vsel %vm1714, %v1711, %v1713
        %v1716 = vsel %vm1714, %v1713, %v1711
        %1717 = vrot.lane.b32.xlu0 %v941, 14
        %v1718 = vpop.permute.xlu0 %1717
        %1719 = vrot.lane.b32.xlu0 %v954, 14
        %v1720 = vpop.permute.xlu0 %1719
        %v1721 = vsel %vm1714, %v1718, %v1720
        %v1722 = vsel %vm1714, %v1720, %v1718
        %s1723 = sld [smem:[#allocation2 + $0x13]]
        %s1724 = sld [smem:[#allocation2 + $0x44]]
        %v1725 = vstv %s1723
        %v1726 = vmul.f32 %v1725, %v1716
        %v1727 = vmul.f32 %v1725, %v1715
        %v1728 = vstv %s1724
        %v1729 = vmul.f32 %v1728, %v1722
        %v1730 = vmul.f32 %v1728, %v1721
        %v1731 = vadd.f32 %v1726, %v1729
        %v1732 = vadd.f32 %v1727, %v1730
        %vm1733 = vmand %vm964, %vm1210
        %v1736 = vcombine.low %v1731, %v1732
        %v1738 = vunpack.c.l.s4 1983009808
        %v1739 = vunpack.c.0.s8 %v1738
        %v1740 = vlaneseq
        %v1741 = vshrl.u32 %v1740, 7
        %v1742 = vsub.s32 %v1739, %v1741
        %v1743 = vrot.slane %v1736, %v1742
        %v1745 = vsel %vm1733, %v1743, 0.0
        %v1746 = vadd.f32 %v1709, %v1745
        %1747 = vrot.lane.b32.xlu0 %v927, 13
        %v1748 = vpop.permute.xlu0 %1747
        %1749 = vrot.lane.b32.xlu0 %v928, 13
        %v1750 = vpop.permute.xlu0 %1749
        %vm1751 = vcmp.lt.s32.totalorder %v982, 13
        %v1752 = vsel %vm1751, %v1748, %v1750
        %v1753 = vsel %vm1751, %v1750, %v1748
        %1754 = vrot.lane.b32.xlu0 %v941, 13
        %v1755 = vpop.permute.xlu0 %1754
        %1756 = vrot.lane.b32.xlu0 %v954, 13
        %v1757 = vpop.permute.xlu0 %1756
        %v1758 = vsel %vm1751, %v1755, %v1757
        %v1759 = vsel %vm1751, %v1757, %v1755
        %s1760 = sld [smem:[#allocation2 + $0x14]]
        %s1761 = sld [smem:[#allocation2 + $0x45]]
        %v1762 = vstv %s1760
        %v1763 = vmul.f32 %v1762, %v1753
        %v1764 = vmul.f32 %v1762, %v1752
        %v1765 = vstv %s1761
        %v1766 = vmul.f32 %v1765, %v1759
        %v1767 = vmul.f32 %v1765, %v1758
        %v1768 = vadd.f32 %v1763, %v1766
        %v1769 = vadd.f32 %v1764, %v1767
        %vm1770 = vmand %vm964, %vm1251
        %v1773 = vcombine.low %v1768, %v1769
        %v1775 = vunpack.c.l.s4 1983009808
        %v1776 = vunpack.c.0.s8 %v1775
        %v1777 = vlaneseq
        %v1778 = vshrl.u32 %v1777, 7
        %v1779 = vsub.s32 %v1776, %v1778
        %v1780 = vrot.slane %v1773, %v1779
        %v1782 = vsel %vm1770, %v1780, 0.0
        %v1783 = vadd.f32 %v1746, %v1782
        %1784 = vrot.lane.b32.xlu0 %v927, 3
        %v1785 = vpop.permute.xlu0 %1784
        %1786 = vrot.lane.b32.xlu0 %v928, 3
        %v1787 = vpop.permute.xlu0 %1786
        %vm1788 = vcmp.lt.s32.totalorder %v982, 3
        %v1789 = vsel %vm1788, %v1785, %v1787
        %v1790 = vsel %vm1788, %v1787, %v1785
        %1791 = vrot.lane.b32.xlu0 %v941, 3
        %v1792 = vpop.permute.xlu0 %1791
        %1793 = vrot.lane.b32.xlu0 %v954, 3
        %v1794 = vpop.permute.xlu0 %1793
        %v1795 = vsel %vm1788, %v1792, %v1794
        %v1796 = vsel %vm1788, %v1794, %v1792
        %s1797 = sld [smem:[#allocation2 + $0x15]]
        %s1798 = sld [smem:[#allocation2 + $0x46]]
        %v1799 = vstv %s1797
        %v1800 = vmul.f32 %v1799, %v1790
        %v1801 = vmul.f32 %v1799, %v1789
        %v1802 = vstv %s1798
        %v1803 = vmul.f32 %v1802, %v1796
        %v1804 = vmul.f32 %v1802, %v1795
        %v1805 = vadd.f32 %v1800, %v1803
        %v1806 = vadd.f32 %v1801, %v1804
        %vm1807 = vmand %vm967, %vm1005
        %v1810 = vcombine.low %v1805, %v1806
        %v1812 = vunpack.c.l.s4 1983009808
        %v1813 = vunpack.c.0.s8 %v1812
        %v1814 = vlaneseq
        %v1815 = vshrl.u32 %v1814, 7
        %v1816 = vsub.s32 %v1813, %v1815
        %v1817 = vrot.slane %v1810, %v1816
        %v1819 = vsel %vm1807, %v1817, 0.0
        %v1820 = vadd.f32 %v1783, %v1819
        %1821 = vrot.lane.b32.xlu0 %v927, 2
        %v1822 = vpop.permute.xlu0 %1821
        %1823 = vrot.lane.b32.xlu0 %v928, 2
        %v1824 = vpop.permute.xlu0 %1823
        %vm1825 = vcmp.lt.s32.totalorder %v982, 2
        %v1826 = vsel %vm1825, %v1822, %v1824
        %v1827 = vsel %vm1825, %v1824, %v1822
        %1828 = vrot.lane.b32.xlu0 %v941, 2
        %v1829 = vpop.permute.xlu0 %1828
        %1830 = vrot.lane.b32.xlu0 %v954, 2
        %v1831 = vpop.permute.xlu0 %1830
        %v1832 = vsel %vm1825, %v1829, %v1831
        %v1833 = vsel %vm1825, %v1831, %v1829
        %s1834 = sld [smem:[#allocation2 + $0x16]]
        %s1835 = sld [smem:[#allocation2 + $0x47]]
        %v1836 = vstv %s1834
        %v1837 = vmul.f32 %v1836, %v1827
        %v1838 = vmul.f32 %v1836, %v1826
        %v1839 = vstv %s1835
        %v1840 = vmul.f32 %v1839, %v1833
        %v1841 = vmul.f32 %v1839, %v1832
        %v1842 = vadd.f32 %v1837, %v1840
        %v1843 = vadd.f32 %v1838, %v1841
        %vm1844 = vmand %vm967, %vm1046
        %v1847 = vcombine.low %v1842, %v1843
        %v1849 = vunpack.c.l.s4 1983009808
        %v1850 = vunpack.c.0.s8 %v1849
        %v1851 = vlaneseq
        %v1852 = vshrl.u32 %v1851, 7
        %v1853 = vsub.s32 %v1850, %v1852
        %v1854 = vrot.slane %v1847, %v1853
        %v1856 = vsel %vm1844, %v1854, 0.0
        %v1857 = vadd.f32 %v1820, %v1856
        %1858 = vrot.lane.b32.xlu0 %v927, 1
        %v1859 = vpop.permute.xlu0 %1858
        %1860 = vrot.lane.b32.xlu0 %v928, 1
        %v1861 = vpop.permute.xlu0 %1860
        %vm1862 = vcmp.lt.s32.totalorder %v982, 1
        %v1863 = vsel %vm1862, %v1859, %v1861
        %v1864 = vsel %vm1862, %v1861, %v1859
        %1865 = vrot.lane.b32.xlu0 %v941, 1
        %v1866 = vpop.permute.xlu0 %1865
        %1867 = vrot.lane.b32.xlu0 %v954, 1
        %v1868 = vpop.permute.xlu0 %1867
        %v1869 = vsel %vm1862, %v1866, %v1868
        %v1870 = vsel %vm1862, %v1868, %v1866
        %s1871 = sld [smem:[#allocation2 + $0x17]]
        %s1872 = sld [smem:[#allocation2 + $0x48]]
        %v1873 = vstv %s1871
        %v1874 = vmul.f32 %v1873, %v1864
        %v1875 = vmul.f32 %v1873, %v1863
        %v1876 = vstv %s1872
        %v1877 = vmul.f32 %v1876, %v1870
        %v1878 = vmul.f32 %v1876, %v1869
        %v1879 = vadd.f32 %v1874, %v1877
        %v1880 = vadd.f32 %v1875, %v1878
        %vm1881 = vmand %vm967, %vm1087
        %v1884 = vcombine.low %v1879, %v1880
        %v1886 = vunpack.c.l.s4 1983009808
        %v1887 = vunpack.c.0.s8 %v1886
        %v1888 = vlaneseq
        %v1889 = vshrl.u32 %v1888, 7
        %v1890 = vsub.s32 %v1887, %v1889
        %v1891 = vrot.slane %v1884, %v1890
        %v1893 = vsel %vm1881, %v1891, 0.0
        %v1894 = vadd.f32 %v1857, %v1893
        %s1895 = sld [smem:[#allocation2 + $0x18]]
        %s1896 = sld [smem:[#allocation2 + $0x49]]
        %v1897 = vstv %s1895
        %v1898 = vmul.f32 %v1897, %v927
        %v1899 = vmul.f32 %v1897, %v928
        %v1900 = vstv %s1896
        %v1901 = vmul.f32 %v1900, %v941
        %v1902 = vmul.f32 %v1900, %v954
        %v1903 = vadd.f32 %v1898, %v1901
        %v1904 = vadd.f32 %v1899, %v1902
        %vm1905 = vmand %vm967, %vm1128
        %v1908 = vcombine.low %v1903, %v1904
        %v1910 = vunpack.c.l.s4 1983009808
        %v1911 = vunpack.c.0.s8 %v1910
        %v1912 = vlaneseq
        %v1913 = vshrl.u32 %v1912, 7
        %v1914 = vsub.s32 %v1911, %v1913
        %v1915 = vrot.slane %v1908, %v1914
        %v1917 = vsel %vm1905, %v1915, 0.0
        %v1918 = vadd.f32 %v1894, %v1917
        %1919 = vrot.lane.b32.xlu0 %v927, 127
        %v1920 = vpop.permute.xlu0 %1919
        %1921 = vrot.lane.b32.xlu0 %v928, 127
        %v1922 = vpop.permute.xlu0 %1921
        %vm1923 = vcmp.lt.s32.totalorder %v982, 127
        %v1924 = vsel %vm1923, %v1920, %v1922
        %v1925 = vsel %vm1923, %v1922, %v1920
        %1926 = vrot.lane.b32.xlu0 %v941, 127
        %v1927 = vpop.permute.xlu0 %1926
        %1928 = vrot.lane.b32.xlu0 %v954, 127
        %v1929 = vpop.permute.xlu0 %1928
        %v1930 = vsel %vm1923, %v1927, %v1929
        %v1931 = vsel %vm1923, %v1929, %v1927
        %s1932 = sld [smem:[#allocation2 + $0x19]]
        %s1933 = sld [smem:[#allocation2 + $0x4a]]
        %v1934 = vstv %s1932
        %v1935 = vmul.f32 %v1934, %v1924
        %v1936 = vmul.f32 %v1934, %v1925
        %v1937 = vstv %s1933
        %v1938 = vmul.f32 %v1937, %v1930
        %v1939 = vmul.f32 %v1937, %v1931
        %v1940 = vadd.f32 %v1935, %v1938
        %v1941 = vadd.f32 %v1936, %v1939
        %vm1942 = vmand %vm967, %vm1169
        %v1945 = vcombine.low %v1940, %v1941
        %v1947 = vunpack.c.l.s4 1983009808
        %v1948 = vunpack.c.0.s8 %v1947
        %v1949 = vlaneseq
        %v1950 = vshrl.u32 %v1949, 7
        %v1951 = vsub.s32 %v1948, %v1950
        %v1952 = vrot.slane %v1945, %v1951
        %v1954 = vsel %vm1942, %v1952, 0.0
        %v1955 = vadd.f32 %v1918, %v1954
        %1956 = vrot.lane.b32.xlu0 %v927, 126
        %v1957 = vpop.permute.xlu0 %1956
        %1958 = vrot.lane.b32.xlu0 %v928, 126
        %v1959 = vpop.permute.xlu0 %1958
        %vm1960 = vcmp.lt.s32.totalorder %v982, 126
        %v1961 = vsel %vm1960, %v1957, %v1959
        %v1962 = vsel %vm1960, %v1959, %v1957
        %1963 = vrot.lane.b32.xlu0 %v941, 126
        %v1964 = vpop.permute.xlu0 %1963
        %1965 = vrot.lane.b32.xlu0 %v954, 126
        %v1966 = vpop.permute.xlu0 %1965
        %v1967 = vsel %vm1960, %v1964, %v1966
        %v1968 = vsel %vm1960, %v1966, %v1964
        %s1969 = sld [smem:[#allocation2 + $0x1a]]
        %s1970 = sld [smem:[#allocation2 + $0x4b]]
        %v1971 = vstv %s1969
        %v1972 = vmul.f32 %v1971, %v1961
        %v1973 = vmul.f32 %v1971, %v1962
        %v1974 = vstv %s1970
        %v1975 = vmul.f32 %v1974, %v1967
        %v1976 = vmul.f32 %v1974, %v1968
        %v1977 = vadd.f32 %v1972, %v1975
        %v1978 = vadd.f32 %v1973, %v1976
        %vm1979 = vmand %vm967, %vm1210
        %v1982 = vcombine.low %v1977, %v1978
        %v1984 = vunpack.c.l.s4 1983009808
        %v1985 = vunpack.c.0.s8 %v1984
        %v1986 = vlaneseq
        %v1987 = vshrl.u32 %v1986, 7
        %v1988 = vsub.s32 %v1985, %v1987
        %v1989 = vrot.slane %v1982, %v1988
        %v1991 = vsel %vm1979, %v1989, 0.0
        %v1992 = vadd.f32 %v1955, %v1991
        %1993 = vrot.lane.b32.xlu0 %v927, 125
        %v1994 = vpop.permute.xlu0 %1993
        %1995 = vrot.lane.b32.xlu0 %v928, 125
        %v1996 = vpop.permute.xlu0 %1995
        %vm1997 = vcmp.lt.s32.totalorder %v982, 125
        %v1998 = vsel %vm1997, %v1994, %v1996
        %v1999 = vsel %vm1997, %v1996, %v1994
        %2000 = vrot.lane.b32.xlu0 %v941, 125
        %v2001 = vpop.permute.xlu0 %2000
        %2002 = vrot.lane.b32.xlu0 %v954, 125
        %v2003 = vpop.permute.xlu0 %2002
        %v2004 = vsel %vm1997, %v2001, %v2003
        %v2005 = vsel %vm1997, %v2003, %v2001
        %s2006 = sld [smem:[#allocation2 + $0x1b]]
        %s2007 = sld [smem:[#allocation2 + $0x4c]]
        %v2008 = vstv %s2006
        %v2009 = vmul.f32 %v2008, %v1998
        %v2010 = vmul.f32 %v2008, %v1999
        %v2011 = vstv %s2007
        %v2012 = vmul.f32 %v2011, %v2004
        %v2013 = vmul.f32 %v2011, %v2005
        %v2014 = vadd.f32 %v2009, %v2012
        %v2015 = vadd.f32 %v2010, %v2013
        %vm2016 = vmand %vm967, %vm1251
        %v2019 = vcombine.low %v2014, %v2015
        %v2021 = vunpack.c.l.s4 1983009808
        %v2022 = vunpack.c.0.s8 %v2021
        %v2023 = vlaneseq
        %v2024 = vshrl.u32 %v2023, 7
        %v2025 = vsub.s32 %v2022, %v2024
        %v2026 = vrot.slane %v2019, %v2025
        %v2028 = vsel %vm2016, %v2026, 0.0
        %v2029 = vadd.f32 %v1992, %v2028
        %2030 = vrot.lane.b32.xlu0 %v927, 115
        %v2031 = vpop.permute.xlu0 %2030
        %2032 = vrot.lane.b32.xlu0 %v928, 115
        %v2033 = vpop.permute.xlu0 %2032
        %vm2034 = vcmp.lt.s32.totalorder %v982, 115
        %v2035 = vsel %vm2034, %v2031, %v2033
        %v2036 = vsel %vm2034, %v2033, %v2031
        %2037 = vrot.lane.b32.xlu0 %v941, 115
        %v2038 = vpop.permute.xlu0 %2037
        %2039 = vrot.lane.b32.xlu0 %v954, 115
        %v2040 = vpop.permute.xlu0 %2039
        %v2041 = vsel %vm2034, %v2038, %v2040
        %v2042 = vsel %vm2034, %v2040, %v2038
        %s2043 = sld [smem:[#allocation2 + $0x1c]]
        %s2044 = sld [smem:[#allocation2 + $0x4d]]
        %v2045 = vstv %s2043
        %v2046 = vmul.f32 %v2045, %v2035
        %v2047 = vmul.f32 %v2045, %v2036
        %v2048 = vstv %s2044
        %v2049 = vmul.f32 %v2048, %v2041
        %v2050 = vmul.f32 %v2048, %v2042
        %v2051 = vadd.f32 %v2046, %v2049
        %v2052 = vadd.f32 %v2047, %v2050
        %vm2053 = vmand %vm970, %vm1005
        %v2056 = vcombine.low %v2051, %v2052
        %v2058 = vunpack.c.l.s4 1983009808
        %v2059 = vunpack.c.0.s8 %v2058
        %v2060 = vlaneseq
        %v2061 = vshrl.u32 %v2060, 7
        %v2062 = vsub.s32 %v2059, %v2061
        %v2063 = vrot.slane %v2056, %v2062
        %v2065 = vsel %vm2053, %v2063, 0.0
        %v2066 = vadd.f32 %v2029, %v2065
        %2067 = vrot.lane.b32.xlu0 %v927, 114
        %v2068 = vpop.permute.xlu0 %2067
        %2069 = vrot.lane.b32.xlu0 %v928, 114
        %v2070 = vpop.permute.xlu0 %2069
        %vm2071 = vcmp.lt.s32.totalorder %v982, 114
        %v2072 = vsel %vm2071, %v2068, %v2070
        %v2073 = vsel %vm2071, %v2070, %v2068
        %2074 = vrot.lane.b32.xlu0 %v941, 114
        %v2075 = vpop.permute.xlu0 %2074
        %2076 = vrot.lane.b32.xlu0 %v954, 114
        %v2077 = vpop.permute.xlu0 %2076
        %v2078 = vsel %vm2071, %v2075, %v2077
        %v2079 = vsel %vm2071, %v2077, %v2075
        %s2080 = sld [smem:[#allocation2 + $0x1d]]
        %s2081 = sld [smem:[#allocation2 + $0x4e]]
        %v2082 = vstv %s2080
        %v2083 = vmul.f32 %v2082, %v2072
        %v2084 = vmul.f32 %v2082, %v2073
        %v2085 = vstv %s2081
        %v2086 = vmul.f32 %v2085, %v2078
        %v2087 = vmul.f32 %v2085, %v2079
        %v2088 = vadd.f32 %v2083, %v2086
        %v2089 = vadd.f32 %v2084, %v2087
        %vm2090 = vmand %vm970, %vm1046
        %v2093 = vcombine.low %v2088, %v2089
        %v2095 = vunpack.c.l.s4 1983009808
        %v2096 = vunpack.c.0.s8 %v2095
        %v2097 = vlaneseq
        %v2098 = vshrl.u32 %v2097, 7
        %v2099 = vsub.s32 %v2096, %v2098
        %v2100 = vrot.slane %v2093, %v2099
        %v2102 = vsel %vm2090, %v2100, 0.0
        %v2103 = vadd.f32 %v2066, %v2102
        %2104 = vrot.lane.b32.xlu0 %v927, 113
        %v2105 = vpop.permute.xlu0 %2104
        %2106 = vrot.lane.b32.xlu0 %v928, 113
        %v2107 = vpop.permute.xlu0 %2106
        %vm2108 = vcmp.lt.s32.totalorder %v982, 113
        %v2109 = vsel %vm2108, %v2105, %v2107
        %v2110 = vsel %vm2108, %v2107, %v2105
        %2111 = vrot.lane.b32.xlu0 %v941, 113
        %v2112 = vpop.permute.xlu0 %2111
        %2113 = vrot.lane.b32.xlu0 %v954, 113
        %v2114 = vpop.permute.xlu0 %2113
        %v2115 = vsel %vm2108, %v2112, %v2114
        %v2116 = vsel %vm2108, %v2114, %v2112
        %s2117 = sld [smem:[#allocation2 + $0x1e]]
        %s2118 = sld [smem:[#allocation2 + $0x4f]]
        %v2119 = vstv %s2117
        %v2120 = vmul.f32 %v2119, %v2109
        %v2121 = vmul.f32 %v2119, %v2110
        %v2122 = vstv %s2118
        %v2123 = vmul.f32 %v2122, %v2115
        %v2124 = vmul.f32 %v2122, %v2116
        %v2125 = vadd.f32 %v2120, %v2123
        %v2126 = vadd.f32 %v2121, %v2124
        %vm2127 = vmand %vm970, %vm1087
        %v2130 = vcombine.low %v2125, %v2126
        %v2132 = vunpack.c.l.s4 1983009808
        %v2133 = vunpack.c.0.s8 %v2132
        %v2134 = vlaneseq
        %v2135 = vshrl.u32 %v2134, 7
        %v2136 = vsub.s32 %v2133, %v2135
        %v2137 = vrot.slane %v2130, %v2136
        %v2139 = vsel %vm2127, %v2137, 0.0
        %v2140 = vadd.f32 %v2103, %v2139
        %2141 = vrot.lane.b32.xlu0 %v927, 112
        %v2142 = vpop.permute.xlu0 %2141
        %2143 = vrot.lane.b32.xlu0 %v928, 112
        %v2144 = vpop.permute.xlu0 %2143
        %vm2145 = vcmp.lt.s32.totalorder %v982, 112
        %v2146 = vsel %vm2145, %v2142, %v2144
        %v2147 = vsel %vm2145, %v2144, %v2142
        %2148 = vrot.lane.b32.xlu0 %v941, 112
        %v2149 = vpop.permute.xlu0 %2148
        %2150 = vrot.lane.b32.xlu0 %v954, 112
        %v2151 = vpop.permute.xlu0 %2150
        %v2152 = vsel %vm2145, %v2149, %v2151
        %v2153 = vsel %vm2145, %v2151, %v2149
        %s2154 = sld [smem:[#allocation2 + $0x1f]]
        %s2155 = sld [smem:[#allocation2 + $0x50]]
        %v2156 = vstv %s2154
        %v2157 = vmul.f32 %v2156, %v2146
        %v2158 = vmul.f32 %v2156, %v2147
        %v2159 = vstv %s2155
        %v2160 = vmul.f32 %v2159, %v2152
        %v2161 = vmul.f32 %v2159, %v2153
        %v2162 = vadd.f32 %v2157, %v2160
        %v2163 = vadd.f32 %v2158, %v2161
        %vm2164 = vmand %vm970, %vm1128
        %v2167 = vcombine.low %v2162, %v2163
        %v2169 = vunpack.c.l.s4 1983009808
        %v2170 = vunpack.c.0.s8 %v2169
        %v2171 = vlaneseq
        %v2172 = vshrl.u32 %v2171, 7
        %v2173 = vsub.s32 %v2170, %v2172
        %v2174 = vrot.slane %v2167, %v2173
        %v2176 = vsel %vm2164, %v2174, 0.0
        %v2177 = vadd.f32 %v2140, %v2176
        %2178 = vrot.lane.b32.xlu0 %v927, 111
        %v2179 = vpop.permute.xlu0 %2178
        %2180 = vrot.lane.b32.xlu0 %v928, 111
        %v2181 = vpop.permute.xlu0 %2180
        %vm2182 = vcmp.lt.s32.totalorder %v982, 111
        %v2183 = vsel %vm2182, %v2179, %v2181
        %v2184 = vsel %vm2182, %v2181, %v2179
        %2185 = vrot.lane.b32.xlu0 %v941, 111
        %v2186 = vpop.permute.xlu0 %2185
        %2187 = vrot.lane.b32.xlu0 %v954, 111
        %v2188 = vpop.permute.xlu0 %2187
        %v2189 = vsel %vm2182, %v2186, %v2188
        %v2190 = vsel %vm2182, %v2188, %v2186
        %s2191 = sld [smem:[#allocation2 + $0x20]]
        %s2192 = sld [smem:[#allocation2 + $0x51]]
        %v2193 = vstv %s2191
        %v2194 = vmul.f32 %v2193, %v2183
        %v2195 = vmul.f32 %v2193, %v2184
        %v2196 = vstv %s2192
        %v2197 = vmul.f32 %v2196, %v2189
        %v2198 = vmul.f32 %v2196, %v2190
        %v2199 = vadd.f32 %v2194, %v2197
        %v2200 = vadd.f32 %v2195, %v2198
        %vm2201 = vmand %vm970, %vm1169
        %v2204 = vcombine.low %v2199, %v2200
        %v2206 = vunpack.c.l.s4 1983009808
        %v2207 = vunpack.c.0.s8 %v2206
        %v2208 = vlaneseq
        %v2209 = vshrl.u32 %v2208, 7
        %v2210 = vsub.s32 %v2207, %v2209
        %v2211 = vrot.slane %v2204, %v2210
        %v2213 = vsel %vm2201, %v2211, 0.0
        %v2214 = vadd.f32 %v2177, %v2213
        %2215 = vrot.lane.b32.xlu0 %v927, 110
        %v2216 = vpop.permute.xlu0 %2215
        %2217 = vrot.lane.b32.xlu0 %v928, 110
        %v2218 = vpop.permute.xlu0 %2217
        %vm2219 = vcmp.lt.s32.totalorder %v982, 110
        %v2220 = vsel %vm2219, %v2216, %v2218
        %v2221 = vsel %vm2219, %v2218, %v2216
        %2222 = vrot.lane.b32.xlu0 %v941, 110
        %v2223 = vpop.permute.xlu0 %2222
        %2224 = vrot.lane.b32.xlu0 %v954, 110
        %v2225 = vpop.permute.xlu0 %2224
        %v2226 = vsel %vm2219, %v2223, %v2225
        %v2227 = vsel %vm2219, %v2225, %v2223
        %s2228 = sld [smem:[#allocation2 + $0x21]]
        %s2229 = sld [smem:[#allocation2 + $0x52]]
        %v2230 = vstv %s2228
        %v2231 = vmul.f32 %v2230, %v2220
        %v2232 = vmul.f32 %v2230, %v2221
        %v2233 = vstv %s2229
        %v2234 = vmul.f32 %v2233, %v2226
        %v2235 = vmul.f32 %v2233, %v2227
        %v2236 = vadd.f32 %v2231, %v2234
        %v2237 = vadd.f32 %v2232, %v2235
        %vm2238 = vmand %vm970, %vm1210
        %v2241 = vcombine.low %v2236, %v2237
        %v2243 = vunpack.c.l.s4 1983009808
        %v2244 = vunpack.c.0.s8 %v2243
        %v2245 = vlaneseq
        %v2246 = vshrl.u32 %v2245, 7
        %v2247 = vsub.s32 %v2244, %v2246
        %v2248 = vrot.slane %v2241, %v2247
        %v2250 = vsel %vm2238, %v2248, 0.0
        %v2251 = vadd.f32 %v2214, %v2250
        %2252 = vrot.lane.b32.xlu0 %v927, 109
        %v2253 = vpop.permute.xlu0 %2252
        %2254 = vrot.lane.b32.xlu0 %v928, 109
        %v2255 = vpop.permute.xlu0 %2254
        %vm2256 = vcmp.lt.s32.totalorder %v982, 109
        %v2257 = vsel %vm2256, %v2253, %v2255
        %v2258 = vsel %vm2256, %v2255, %v2253
        %2259 = vrot.lane.b32.xlu0 %v941, 109
        %v2260 = vpop.permute.xlu0 %2259
        %2261 = vrot.lane.b32.xlu0 %v954, 109
        %v2262 = vpop.permute.xlu0 %2261
        %v2263 = vsel %vm2256, %v2260, %v2262
        %v2264 = vsel %vm2256, %v2262, %v2260
        %s2265 = sld [smem:[#allocation2 + $0x22]]
        %s2266 = sld [smem:[#allocation2 + $0x53]]
        %v2267 = vstv %s2265
        %v2268 = vmul.f32 %v2267, %v2257
        %v2269 = vmul.f32 %v2267, %v2258
        %v2270 = vstv %s2266
        %v2271 = vmul.f32 %v2270, %v2263
        %v2272 = vmul.f32 %v2270, %v2264
        %v2273 = vadd.f32 %v2268, %v2271
        %v2274 = vadd.f32 %v2269, %v2272
        %vm2275 = vmand %vm970, %vm1251
        %v2278 = vcombine.low %v2273, %v2274
        %v2280 = vunpack.c.l.s4 1983009808
        %v2281 = vunpack.c.0.s8 %v2280
        %v2282 = vlaneseq
        %v2283 = vshrl.u32 %v2282, 7
        %v2284 = vsub.s32 %v2281, %v2283
        %v2285 = vrot.slane %v2278, %v2284
        %v2287 = vsel %vm2275, %v2285, 0.0
        %v2288 = vadd.f32 %v2251, %v2287
        %2289 = vrot.lane.b32.xlu0 %v927, 99
        %v2290 = vpop.permute.xlu0 %2289
        %2291 = vrot.lane.b32.xlu0 %v928, 99
        %v2292 = vpop.permute.xlu0 %2291
        %vm2293 = vcmp.lt.s32.totalorder %v982, 99
        %v2294 = vsel %vm2293, %v2290, %v2292
        %v2295 = vsel %vm2293, %v2292, %v2290
        %2296 = vrot.lane.b32.xlu0 %v941, 99
        %v2297 = vpop.permute.xlu0 %2296
        %2298 = vrot.lane.b32.xlu0 %v954, 99
        %v2299 = vpop.permute.xlu0 %2298
        %v2300 = vsel %vm2293, %v2297, %v2299
        %v2301 = vsel %vm2293, %v2299, %v2297
        %s2302 = sld [smem:[#allocation2 + $0x23]]
        %s2303 = sld [smem:[#allocation2 + $0x54]]
        %v2304 = vstv %s2302
        %v2305 = vmul.f32 %v2304, %v2294
        %v2306 = vmul.f32 %v2304, %v2295
        %v2307 = vstv %s2303
        %v2308 = vmul.f32 %v2307, %v2300
        %v2309 = vmul.f32 %v2307, %v2301
        %v2310 = vadd.f32 %v2305, %v2308
        %v2311 = vadd.f32 %v2306, %v2309
        %vm2312 = vmand %vm973, %vm1005
        %v2315 = vcombine.low %v2310, %v2311
        %v2317 = vunpack.c.l.s4 1983009808
        %v2318 = vunpack.c.0.s8 %v2317
        %v2319 = vlaneseq
        %v2320 = vshrl.u32 %v2319, 7
        %v2321 = vsub.s32 %v2318, %v2320
        %v2322 = vrot.slane %v2315, %v2321
        %v2324 = vsel %vm2312, %v2322, 0.0
        %v2325 = vadd.f32 %v2288, %v2324
        %2326 = vrot.lane.b32.xlu0 %v927, 98
        %v2327 = vpop.permute.xlu0 %2326
        %2328 = vrot.lane.b32.xlu0 %v928, 98
        %v2329 = vpop.permute.xlu0 %2328
        %vm2330 = vcmp.lt.s32.totalorder %v982, 98
        %v2331 = vsel %vm2330, %v2327, %v2329
        %v2332 = vsel %vm2330, %v2329, %v2327
        %2333 = vrot.lane.b32.xlu0 %v941, 98
        %v2334 = vpop.permute.xlu0 %2333
        %2335 = vrot.lane.b32.xlu0 %v954, 98
        %v2336 = vpop.permute.xlu0 %2335
        %v2337 = vsel %vm2330, %v2334, %v2336
        %v2338 = vsel %vm2330, %v2336, %v2334
        %s2339 = sld [smem:[#allocation2 + $0x24]]
        %s2340 = sld [smem:[#allocation2 + $0x55]]
        %v2341 = vstv %s2339
        %v2342 = vmul.f32 %v2341, %v2331
        %v2343 = vmul.f32 %v2341, %v2332
        %v2344 = vstv %s2340
        %v2345 = vmul.f32 %v2344, %v2337
        %v2346 = vmul.f32 %v2344, %v2338
        %v2347 = vadd.f32 %v2342, %v2345
        %v2348 = vadd.f32 %v2343, %v2346
        %vm2349 = vmand %vm973, %vm1046
        %v2352 = vcombine.low %v2347, %v2348
        %v2354 = vunpack.c.l.s4 1983009808
        %v2355 = vunpack.c.0.s8 %v2354
        %v2356 = vlaneseq
        %v2357 = vshrl.u32 %v2356, 7
        %v2358 = vsub.s32 %v2355, %v2357
        %v2359 = vrot.slane %v2352, %v2358
        %v2361 = vsel %vm2349, %v2359, 0.0
        %v2362 = vadd.f32 %v2325, %v2361
        %2363 = vrot.lane.b32.xlu0 %v927, 97
        %v2364 = vpop.permute.xlu0 %2363
        %2365 = vrot.lane.b32.xlu0 %v928, 97
        %v2366 = vpop.permute.xlu0 %2365
        %vm2367 = vcmp.lt.s32.totalorder %v982, 97
        %v2368 = vsel %vm2367, %v2364, %v2366
        %v2369 = vsel %vm2367, %v2366, %v2364
        %2370 = vrot.lane.b32.xlu0 %v941, 97
        %v2371 = vpop.permute.xlu0 %2370
        %2372 = vrot.lane.b32.xlu0 %v954, 97
        %v2373 = vpop.permute.xlu0 %2372
        %v2374 = vsel %vm2367, %v2371, %v2373
        %v2375 = vsel %vm2367, %v2373, %v2371
        %s2376 = sld [smem:[#allocation2 + $0x25]]
        %s2377 = sld [smem:[#allocation2 + $0x56]]
        %v2378 = vstv %s2376
        %v2379 = vmul.f32 %v2378, %v2368
        %v2380 = vmul.f32 %v2378, %v2369
        %v2381 = vstv %s2377
        %v2382 = vmul.f32 %v2381, %v2374
        %v2383 = vmul.f32 %v2381, %v2375
        %v2384 = vadd.f32 %v2379, %v2382
        %v2385 = vadd.f32 %v2380, %v2383
        %vm2386 = vmand %vm973, %vm1087
        %v2389 = vcombine.low %v2384, %v2385
        %v2391 = vunpack.c.l.s4 1983009808
        %v2392 = vunpack.c.0.s8 %v2391
        %v2393 = vlaneseq
        %v2394 = vshrl.u32 %v2393, 7
        %v2395 = vsub.s32 %v2392, %v2394
        %v2396 = vrot.slane %v2389, %v2395
        %v2398 = vsel %vm2386, %v2396, 0.0
        %v2399 = vadd.f32 %v2362, %v2398
        %2400 = vrot.lane.b32.xlu0 %v927, 96
        %v2401 = vpop.permute.xlu0 %2400
        %2402 = vrot.lane.b32.xlu0 %v928, 96
        %v2403 = vpop.permute.xlu0 %2402
        %vm2404 = vcmp.lt.s32.totalorder %v982, 96
        %v2405 = vsel %vm2404, %v2401, %v2403
        %v2406 = vsel %vm2404, %v2403, %v2401
        %2407 = vrot.lane.b32.xlu0 %v941, 96
        %v2408 = vpop.permute.xlu0 %2407
        %2409 = vrot.lane.b32.xlu0 %v954, 96
        %v2410 = vpop.permute.xlu0 %2409
        %v2411 = vsel %vm2404, %v2408, %v2410
        %v2412 = vsel %vm2404, %v2410, %v2408
        %s2413 = sld [smem:[#allocation2 + $0x26]]
        %s2414 = sld [smem:[#allocation2 + $0x57]]
        %v2415 = vstv %s2413
        %v2416 = vmul.f32 %v2415, %v2405
        %v2417 = vmul.f32 %v2415, %v2406
        %v2418 = vstv %s2414
        %v2419 = vmul.f32 %v2418, %v2411
        %v2420 = vmul.f32 %v2418, %v2412
        %v2421 = vadd.f32 %v2416, %v2419
        %v2422 = vadd.f32 %v2417, %v2420
        %vm2423 = vmand %vm973, %vm1128
        %v2426 = vcombine.low %v2421, %v2422
        %v2428 = vunpack.c.l.s4 1983009808
        %v2429 = vunpack.c.0.s8 %v2428
        %v2430 = vlaneseq
        %v2431 = vshrl.u32 %v2430, 7
        %v2432 = vsub.s32 %v2429, %v2431
        %v2433 = vrot.slane %v2426, %v2432
        %v2435 = vsel %vm2423, %v2433, 0.0
        %v2436 = vadd.f32 %v2399, %v2435
        %2437 = vrot.lane.b32.xlu0 %v927, 95
        %v2438 = vpop.permute.xlu0 %2437
        %2439 = vrot.lane.b32.xlu0 %v928, 95
        %v2440 = vpop.permute.xlu0 %2439
        %vm2441 = vcmp.lt.s32.totalorder %v982, 95
        %v2442 = vsel %vm2441, %v2438, %v2440
        %v2443 = vsel %vm2441, %v2440, %v2438
        %2444 = vrot.lane.b32.xlu0 %v941, 95
        %v2445 = vpop.permute.xlu0 %2444
        %2446 = vrot.lane.b32.xlu0 %v954, 95
        %v2447 = vpop.permute.xlu0 %2446
        %v2448 = vsel %vm2441, %v2445, %v2447
        %v2449 = vsel %vm2441, %v2447, %v2445
        %s2450 = sld [smem:[#allocation2 + $0x27]]
        %s2451 = sld [smem:[#allocation2 + $0x58]]
        %v2452 = vstv %s2450
        %v2453 = vmul.f32 %v2452, %v2442
        %v2454 = vmul.f32 %v2452, %v2443
        %v2455 = vstv %s2451
        %v2456 = vmul.f32 %v2455, %v2448
        %v2457 = vmul.f32 %v2455, %v2449
        %v2458 = vadd.f32 %v2453, %v2456
        %v2459 = vadd.f32 %v2454, %v2457
        %vm2460 = vmand %vm973, %vm1169
        %v2463 = vcombine.low %v2458, %v2459
        %v2465 = vunpack.c.l.s4 1983009808
        %v2466 = vunpack.c.0.s8 %v2465
        %v2467 = vlaneseq
        %v2468 = vshrl.u32 %v2467, 7
        %v2469 = vsub.s32 %v2466, %v2468
        %v2470 = vrot.slane %v2463, %v2469
        %v2472 = vsel %vm2460, %v2470, 0.0
        %v2473 = vadd.f32 %v2436, %v2472
        %2474 = vrot.lane.b32.xlu0 %v927, 94
        %v2475 = vpop.permute.xlu0 %2474
        %2476 = vrot.lane.b32.xlu0 %v928, 94
        %v2477 = vpop.permute.xlu0 %2476
        %vm2478 = vcmp.lt.s32.totalorder %v982, 94
        %v2479 = vsel %vm2478, %v2475, %v2477
        %v2480 = vsel %vm2478, %v2477, %v2475
        %2481 = vrot.lane.b32.xlu0 %v941, 94
        %v2482 = vpop.permute.xlu0 %2481
        %2483 = vrot.lane.b32.xlu0 %v954, 94
        %v2484 = vpop.permute.xlu0 %2483
        %v2485 = vsel %vm2478, %v2482, %v2484
        %v2486 = vsel %vm2478, %v2484, %v2482
        %s2487 = sld [smem:[#allocation2 + $0x28]]
        %s2488 = sld [smem:[#allocation2 + $0x59]]
        %v2489 = vstv %s2487
        %v2490 = vmul.f32 %v2489, %v2479
        %v2491 = vmul.f32 %v2489, %v2480
        %v2492 = vstv %s2488
        %v2493 = vmul.f32 %v2492, %v2485
        %v2494 = vmul.f32 %v2492, %v2486
        %v2495 = vadd.f32 %v2490, %v2493
        %v2496 = vadd.f32 %v2491, %v2494
        %vm2497 = vmand %vm973, %vm1210
        %v2500 = vcombine.low %v2495, %v2496
        %v2502 = vunpack.c.l.s4 1983009808
        %v2503 = vunpack.c.0.s8 %v2502
        %v2504 = vlaneseq
        %v2505 = vshrl.u32 %v2504, 7
        %v2506 = vsub.s32 %v2503, %v2505
        %v2507 = vrot.slane %v2500, %v2506
        %v2509 = vsel %vm2497, %v2507, 0.0
        %v2510 = vadd.f32 %v2473, %v2509
        %2511 = vrot.lane.b32.xlu0 %v927, 93
        %v2512 = vpop.permute.xlu0 %2511
        %2513 = vrot.lane.b32.xlu0 %v928, 93
        %v2514 = vpop.permute.xlu0 %2513
        %vm2515 = vcmp.lt.s32.totalorder %v982, 93
        %v2516 = vsel %vm2515, %v2512, %v2514
        %v2517 = vsel %vm2515, %v2514, %v2512
        %2518 = vrot.lane.b32.xlu0 %v941, 93
        %v2519 = vpop.permute.xlu0 %2518
        %2520 = vrot.lane.b32.xlu0 %v954, 93
        %v2521 = vpop.permute.xlu0 %2520
        %v2522 = vsel %vm2515, %v2519, %v2521
        %v2523 = vsel %vm2515, %v2521, %v2519
        %s2524 = sld [smem:[#allocation2 + $0x29]]
        %s2525 = sld [smem:[#allocation2 + $0x5a]]
        %v2526 = vstv %s2524
        %v2527 = vmul.f32 %v2526, %v2516
        %v2528 = vmul.f32 %v2526, %v2517
        %v2529 = vstv %s2525
        %v2530 = vmul.f32 %v2529, %v2522
        %v2531 = vmul.f32 %v2529, %v2523
        %v2532 = vadd.f32 %v2527, %v2530
        %v2533 = vadd.f32 %v2528, %v2531
        %vm2534 = vmand %vm973, %vm1251
        %v2537 = vcombine.low %v2532, %v2533
        %v2539 = vunpack.c.l.s4 1983009808
        %v2540 = vunpack.c.0.s8 %v2539
        %v2541 = vlaneseq
        %v2542 = vshrl.u32 %v2541, 7
        %v2543 = vsub.s32 %v2540, %v2542
        %v2544 = vrot.slane %v2537, %v2543
        %v2546 = vsel %vm2534, %v2544, 0.0
        %v2547 = vadd.f32 %v2510, %v2546
        %2548 = vrot.lane.b32.xlu0 %v927, 83
        %v2549 = vpop.permute.xlu0 %2548
        %2550 = vrot.lane.b32.xlu0 %v928, 83
        %v2551 = vpop.permute.xlu0 %2550
        %vm2552 = vcmp.lt.s32.totalorder %v982, 83
        %v2553 = vsel %vm2552, %v2549, %v2551
        %v2554 = vsel %vm2552, %v2551, %v2549
        %2555 = vrot.lane.b32.xlu0 %v941, 83
        %v2556 = vpop.permute.xlu0 %2555
        %2557 = vrot.lane.b32.xlu0 %v954, 83
        %v2558 = vpop.permute.xlu0 %2557
        %v2559 = vsel %vm2552, %v2556, %v2558
        %v2560 = vsel %vm2552, %v2558, %v2556
        %s2561 = sld [smem:[#allocation2 + $0x2a]]
        %s2562 = sld [smem:[#allocation2 + $0x5b]]
        %v2563 = vstv %s2561
        %v2564 = vmul.f32 %v2563, %v2553
        %v2565 = vmul.f32 %v2563, %v2554
        %v2566 = vstv %s2562
        %v2567 = vmul.f32 %v2566, %v2559
        %v2568 = vmul.f32 %v2566, %v2560
        %v2569 = vadd.f32 %v2564, %v2567
        %v2570 = vadd.f32 %v2565, %v2568
        %vm2571 = vmand %vm976, %vm1005
        %v2574 = vcombine.low %v2569, %v2570
        %v2576 = vunpack.c.l.s4 1983009808
        %v2577 = vunpack.c.0.s8 %v2576
        %v2578 = vlaneseq
        %v2579 = vshrl.u32 %v2578, 7
        %v2580 = vsub.s32 %v2577, %v2579
        %v2581 = vrot.slane %v2574, %v2580
        %v2583 = vsel %vm2571, %v2581, 0.0
        %v2584 = vadd.f32 %v2547, %v2583
        %2585 = vrot.lane.b32.xlu0 %v927, 82
        %v2586 = vpop.permute.xlu0 %2585
        %2587 = vrot.lane.b32.xlu0 %v928, 82
        %v2588 = vpop.permute.xlu0 %2587
        %vm2589 = vcmp.lt.s32.totalorder %v982, 82
        %v2590 = vsel %vm2589, %v2586, %v2588
        %v2591 = vsel %vm2589, %v2588, %v2586
        %2592 = vrot.lane.b32.xlu0 %v941, 82
        %v2593 = vpop.permute.xlu0 %2592
        %2594 = vrot.lane.b32.xlu0 %v954, 82
        %v2595 = vpop.permute.xlu0 %2594
        %v2596 = vsel %vm2589, %v2593, %v2595
        %v2597 = vsel %vm2589, %v2595, %v2593
        %s2598 = sld [smem:[#allocation2 + $0x2b]]
        %s2599 = sld [smem:[#allocation2 + $0x5c]]
        %v2600 = vstv %s2598
        %v2601 = vmul.f32 %v2600, %v2590
        %v2602 = vmul.f32 %v2600, %v2591
        %v2603 = vstv %s2599
        %v2604 = vmul.f32 %v2603, %v2596
        %v2605 = vmul.f32 %v2603, %v2597
        %v2606 = vadd.f32 %v2601, %v2604
        %v2607 = vadd.f32 %v2602, %v2605
        %vm2608 = vmand %vm976, %vm1046
        %v2611 = vcombine.low %v2606, %v2607
        %v2613 = vunpack.c.l.s4 1983009808
        %v2614 = vunpack.c.0.s8 %v2613
        %v2615 = vlaneseq
        %v2616 = vshrl.u32 %v2615, 7
        %v2617 = vsub.s32 %v2614, %v2616
        %v2618 = vrot.slane %v2611, %v2617
        %v2620 = vsel %vm2608, %v2618, 0.0
        %v2621 = vadd.f32 %v2584, %v2620
        %2622 = vrot.lane.b32.xlu0 %v927, 81
        %v2623 = vpop.permute.xlu0 %2622
        %2624 = vrot.lane.b32.xlu0 %v928, 81
        %v2625 = vpop.permute.xlu0 %2624
        %vm2626 = vcmp.lt.s32.totalorder %v982, 81
        %v2627 = vsel %vm2626, %v2623, %v2625
        %v2628 = vsel %vm2626, %v2625, %v2623
        %2629 = vrot.lane.b32.xlu0 %v941, 81
        %v2630 = vpop.permute.xlu0 %2629
        %2631 = vrot.lane.b32.xlu0 %v954, 81
        %v2632 = vpop.permute.xlu0 %2631
        %v2633 = vsel %vm2626, %v2630, %v2632
        %v2634 = vsel %vm2626, %v2632, %v2630
        %s2635 = sld [smem:[#allocation2 + $0x2c]]
        %s2636 = sld [smem:[#allocation2 + $0x5d]]
        %v2637 = vstv %s2635
        %v2638 = vmul.f32 %v2637, %v2627
        %v2639 = vmul.f32 %v2637, %v2628
        %v2640 = vstv %s2636
        %v2641 = vmul.f32 %v2640, %v2633
        %v2642 = vmul.f32 %v2640, %v2634
        %v2643 = vadd.f32 %v2638, %v2641
        %v2644 = vadd.f32 %v2639, %v2642
        %vm2645 = vmand %vm976, %vm1087
        %v2648 = vcombine.low %v2643, %v2644
        %v2650 = vunpack.c.l.s4 1983009808
        %v2651 = vunpack.c.0.s8 %v2650
        %v2652 = vlaneseq
        %v2653 = vshrl.u32 %v2652, 7
        %v2654 = vsub.s32 %v2651, %v2653
        %v2655 = vrot.slane %v2648, %v2654
        %v2657 = vsel %vm2645, %v2655, 0.0
        %v2658 = vadd.f32 %v2621, %v2657
        %2659 = vrot.lane.b32.xlu0 %v927, 80
        %v2660 = vpop.permute.xlu0 %2659
        %2661 = vrot.lane.b32.xlu0 %v928, 80
        %v2662 = vpop.permute.xlu0 %2661
        %vm2663 = vcmp.lt.s32.totalorder %v982, 80
        %v2664 = vsel %vm2663, %v2660, %v2662
        %v2665 = vsel %vm2663, %v2662, %v2660
        %2666 = vrot.lane.b32.xlu0 %v941, 80
        %v2667 = vpop.permute.xlu0 %2666
        %2668 = vrot.lane.b32.xlu0 %v954, 80
        %v2669 = vpop.permute.xlu0 %2668
        %v2670 = vsel %vm2663, %v2667, %v2669
        %v2671 = vsel %vm2663, %v2669, %v2667
        %s2672 = sld [smem:[#allocation2 + $0x2d]]
        %s2673 = sld [smem:[#allocation2 + $0x5e]]
        %v2674 = vstv %s2672
        %v2675 = vmul.f32 %v2674, %v2664
        %v2676 = vmul.f32 %v2674, %v2665
        %v2677 = vstv %s2673
        %v2678 = vmul.f32 %v2677, %v2670
        %v2679 = vmul.f32 %v2677, %v2671
        %v2680 = vadd.f32 %v2675, %v2678
        %v2681 = vadd.f32 %v2676, %v2679
        %vm2682 = vmand %vm976, %vm1128
        %v2685 = vcombine.low %v2680, %v2681
        %v2687 = vunpack.c.l.s4 1983009808
        %v2688 = vunpack.c.0.s8 %v2687
        %v2689 = vlaneseq
        %v2690 = vshrl.u32 %v2689, 7
        %v2691 = vsub.s32 %v2688, %v2690
        %v2692 = vrot.slane %v2685, %v2691
        %v2694 = vsel %vm2682, %v2692, 0.0
        %v2695 = vadd.f32 %v2658, %v2694
        %2696 = vrot.lane.b32.xlu0 %v927, 79
        %v2697 = vpop.permute.xlu0 %2696
        %2698 = vrot.lane.b32.xlu0 %v928, 79
        %v2699 = vpop.permute.xlu0 %2698
        %vm2700 = vcmp.lt.s32.totalorder %v982, 79
        %v2701 = vsel %vm2700, %v2697, %v2699
        %v2702 = vsel %vm2700, %v2699, %v2697
        %2703 = vrot.lane.b32.xlu0 %v941, 79
        %v2704 = vpop.permute.xlu0 %2703
        %2705 = vrot.lane.b32.xlu0 %v954, 79
        %v2706 = vpop.permute.xlu0 %2705
        %v2707 = vsel %vm2700, %v2704, %v2706
        %v2708 = vsel %vm2700, %v2706, %v2704
        %s2709 = sld [smem:[#allocation2 + $0x2e]]
        %s2710 = sld [smem:[#allocation2 + $0x5f]]
        %v2711 = vstv %s2709
        %v2712 = vmul.f32 %v2711, %v2701
        %v2713 = vmul.f32 %v2711, %v2702
        %v2714 = vstv %s2710
        %v2715 = vmul.f32 %v2714, %v2707
        %v2716 = vmul.f32 %v2714, %v2708
        %v2717 = vadd.f32 %v2712, %v2715
        %v2718 = vadd.f32 %v2713, %v2716
        %vm2719 = vmand %vm976, %vm1169
        %v2722 = vcombine.low %v2717, %v2718
        %v2724 = vunpack.c.l.s4 1983009808
        %v2725 = vunpack.c.0.s8 %v2724
        %v2726 = vlaneseq
        %v2727 = vshrl.u32 %v2726, 7
        %v2728 = vsub.s32 %v2725, %v2727
        %v2729 = vrot.slane %v2722, %v2728
        %v2731 = vsel %vm2719, %v2729, 0.0
        %v2732 = vadd.f32 %v2695, %v2731
        %2733 = vrot.lane.b32.xlu0 %v927, 78
        %v2734 = vpop.permute.xlu0 %2733
        %2735 = vrot.lane.b32.xlu0 %v928, 78
        %v2736 = vpop.permute.xlu0 %2735
        %vm2737 = vcmp.lt.s32.totalorder %v982, 78
        %v2738 = vsel %vm2737, %v2734, %v2736
        %v2739 = vsel %vm2737, %v2736, %v2734
        %2740 = vrot.lane.b32.xlu0 %v941, 78
        %v2741 = vpop.permute.xlu0 %2740
        %2742 = vrot.lane.b32.xlu0 %v954, 78
        %v2743 = vpop.permute.xlu0 %2742
        %v2744 = vsel %vm2737, %v2741, %v2743
        %v2745 = vsel %vm2737, %v2743, %v2741
        %s2746 = sld [smem:[#allocation2 + $0x2f]]
        %s2747 = sld [smem:[#allocation2 + $0x60]]
        %v2748 = vstv %s2746
        %v2749 = vmul.f32 %v2748, %v2738
        %v2750 = vmul.f32 %v2748, %v2739
        %v2751 = vstv %s2747
        %v2752 = vmul.f32 %v2751, %v2744
        %v2753 = vmul.f32 %v2751, %v2745
        %v2754 = vadd.f32 %v2749, %v2752
        %v2755 = vadd.f32 %v2750, %v2753
        %vm2756 = vmand %vm976, %vm1210
        %v2759 = vcombine.low %v2754, %v2755
        %v2761 = vunpack.c.l.s4 1983009808
        %v2762 = vunpack.c.0.s8 %v2761
        %v2763 = vlaneseq
        %v2764 = vshrl.u32 %v2763, 7
        %v2765 = vsub.s32 %v2762, %v2764
        %v2766 = vrot.slane %v2759, %v2765
        %v2768 = vsel %vm2756, %v2766, 0.0
        %v2769 = vadd.f32 %v2732, %v2768
        %2770 = vrot.lane.b32.xlu0 %v927, 77
        %v2771 = vpop.permute.xlu0 %2770
        %2772 = vrot.lane.b32.xlu0 %v928, 77
        %v2773 = vpop.permute.xlu0 %2772
        %vm2774 = vcmp.lt.s32.totalorder %v982, 77
        %v2775 = vsel %vm2774, %v2771, %v2773
        %v2776 = vsel %vm2774, %v2773, %v2771
        %2777 = vrot.lane.b32.xlu0 %v941, 77
        %v2778 = vpop.permute.xlu0 %2777
        %2779 = vrot.lane.b32.xlu0 %v954, 77
        %v2780 = vpop.permute.xlu0 %2779
        %v2781 = vsel %vm2774, %v2778, %v2780
        %v2782 = vsel %vm2774, %v2780, %v2778
        %s2783 = sld [smem:[#allocation2 + $0x30]]
        %s2784 = sld [smem:[#allocation2 + $0x61]]
        %v2785 = vstv %s2783
        %v2786 = vmul.f32 %v2785, %v2775
        %v2787 = vmul.f32 %v2785, %v2776
        %v2788 = vstv %s2784
        %v2789 = vmul.f32 %v2788, %v2781
        %v2790 = vmul.f32 %v2788, %v2782
        %v2791 = vadd.f32 %v2786, %v2789
        %v2792 = vadd.f32 %v2787, %v2790
        %vm2793 = vmand %vm976, %vm1251
        %v2796 = vcombine.low %v2791, %v2792
        %v2798 = vunpack.c.l.s4 1983009808
        %v2799 = vunpack.c.0.s8 %v2798
        %v2800 = vlaneseq
        %v2801 = vshrl.u32 %v2800, 7
        %v2802 = vsub.s32 %v2799, %v2801
        %v2803 = vrot.slane %v2796, %v2802
        %v2805 = vsel %vm2793, %v2803, 0.0
        %v2806 = vadd.f32 %v2769, %v2805
        %v2807 = vsub.f32 0.0, %v2806
        %v2808 = vmul.f32 %v2807, 1.442695
        %v2809 = vpow.pop %v2808
        %v2810 = vadd.f32 %v2809, 1.0
        %v2811 = vrcp.pop %v2810
        %v2812 = vmul.f32 1.0, %v2811
        %v2814 = vlaneseq
        %v2815 = vshrl.u32 %v2814, 7
        %v2816 = vsub.s32 0, %v2815
        %v2817 = vrot.slane %v2812, %v2816
        %v2818 = vlaneseq
        %v2819 = vshrl.u32 %v2818, 7
        %v2820 = vsub.s32 2, %v2819
        %v2821 = vrot.slane %v2812, %v2820
        %v2824 = vlaneseq
        %v2825 = vshrl.u32 %v2824, 7
        %v2826 = vsub.s32 0, %v2825
        %v2827 = vrot.slane %v2817, %v2826
        %v2828 = vlaneseq
        %v2829 = vshrl.u32 %v2828, 7
        %v2830 = vsub.s32 0, %v2829
        %v2831 = vrot.slane %v2821, %v2830
        %v2832 = vmul.f32 %v884, %v2827
        %v2833 = vmul.f32 %v885, %v2831
        %v2834 = vmul.f32 %v886, %v2827
        %v2835 = vmul.f32 %v887, %v2831
        %v2836 = vmul.f32 %v888, %v2827
        %v2837 = vmul.f32 %v889, %v2831
        %v2838 = vmul.f32 %v890, %v2827
        %v2839 = vmul.f32 %v891, %v2831
        %v2840 = vmul.f32 %v892, %v2827
        %v2841 = vmul.f32 %v893, %v2831
        %v2842 = vmul.f32 %v894, %v2827
        %v2843 = vmul.f32 %v895, %v2831
        %v2844 = vmul.f32 %v896, %v2827
        %v2845 = vmul.f32 %v897, %v2831
        %v2846 = vmul.f32 %v898, %v2827
        %v2847 = vmul.f32 %v899, %v2831
        %2848 = vst [vmem:[%s238] sm:$0xff] %v2832
        %2849 = vst [vmem:[%s238 + $0x8] sm:$0xff] %v2833
        %2850 = vst [vmem:[%s238 + $0x10] sm:$0xff] %v2834
        %2851 = vst [vmem:[%s238 + $0x18] sm:$0xff] %v2835
        %2852 = vst [vmem:[%s238 + $0x20] sm:$0xff] %v2836
        %2853 = vst [vmem:[%s238 + $0x28] sm:$0xff] %v2837
        %2854 = vst [vmem:[%s238 + $0x30] sm:$0xff] %v2838
        %2855 = vst [vmem:[%s238 + $0x38] sm:$0xff] %v2839
        %2856 = vst [vmem:[%s238 + $0x40] sm:$0xff] %v2840
        %2857 = vst [vmem:[%s238 + $0x48] sm:$0xff] %v2841
        %2858 = vst [vmem:[%s238 + $0x50] sm:$0xff] %v2842
        %2859 = vst [vmem:[%s238 + $0x58] sm:$0xff] %v2843
        %2860 = vst [vmem:[%s238 + $0x60] sm:$0xff] %v2844
        %2861 = vst [vmem:[%s238 + $0x68] sm:$0xff] %v2845
        %2862 = vst [vmem:[%s238 + $0x70] sm:$0xff] %v2846
        %2863 = vst [vmem:[%s238 + $0x78] sm:$0xff] %v2847
        %p2864 = scmp.lt.s32.totalorder %s17, 1
        %s2865 = scalar_select %p2864, %s17, 1
        %s2866 = smul.addr %s2865, 16
        %s2867 = smul.addr %s2866, 8
        %s2868 = scalar_lea.vmem %s5, %s2867
        // Predicated region
        $region45: #{cbam_forward.1} parent=39 // pred_check
          %p2869 = pneg %p145
        $region46: #{cbam_forward.1} parent=39 // pred_check_branch
          %2871 = sbr.rel (%p2869) target = $region48
        $region47: #{cbam_forward.1} parent=39 // pred_region
          _
        $region48: #{cbam_forward.1} parent=39 // pred_fallthru
          _
      $region40: #{cbam_forward.1} parent=5 // pred_fallthru
        _
      %p2872 = scmp.le.s32.totalorder 2, %s12
      // Predicated region
      $region49: #{cbam_forward.1} parent=5 // pred_check
        %p2873 = pneg %p2872
      $region50: #{cbam_forward.1} parent=5 // pred_check_branch
        %2875 = sbr.rel (%p2873) target = $region52
      $region51: #{cbam_forward.1} parent=5 // pred_region
        %s2876 = ssub.s32 %s12, 2
        // Predicated region
        $region53: #{cbam_forward.1} parent=51 // pred_check
          %p2877 = pneg %p151
        $region54: #{cbam_forward.1} parent=51 // pred_check_branch
          %2879 = sbr.rel (%p2877) target = $region56
        $region55: #{cbam_forward.1} parent=51 // pred_region
          %p2880 = scmp.lt.s32.totalorder %s18, 1
          %s2881 = scalar_select %p2880, %s18, 1
          %s2882 = smul.addr %s2881, 16
          %s2883 = smul.addr %s2882, 8
          %s2884 = scalar_lea.vmem %s5, %s2883
        $region56: #{cbam_forward.1} parent=51 // pred_fallthru
          _
      $region52: #{cbam_forward.1} parent=5 // pred_fallthru
        _
    $region6: #{cbam_forward.1} parent=1 // loop_footer
      %s16 = sadd.s32 1, %s12
    $region7: #{cbam_forward.1} parent=1 // loop_footer_branch
      %11 = sbr.rel target = $region3
    $region8: #{cbam_forward.1} parent=1 // loop_exit
      _
    %2885 = vsyncpa [#allocation3], 1
    %s2886 = scalar_lea.sflag [#allocation3], 1
    %2887 = vsyncpa %s2886, 1

</llo_original>
